<compile_context>
chip_gen: v5e
topology: v5e:2x2
jax: 0.10.0
libtpu: 0.0.40
codegen_flags: <defaults>
</compile_context>

<pallas_src>
import functools

import jax
import jax.numpy as jnp
from jax.experimental import pallas as pl
from jax.experimental.pallas import tpu as pltpu

# ----------------------- FFN config (consistent with FeedForward.__init__) -----------------------
DIM = 128
MULTIPLE_OF = 128
FFN_DIM_MULTIPLIER = None
SEQ_LEN = 256          # number of tokens (rows)
HIDDEN_CHUNK = 128     # lane-tile-sized chunk of the hidden dim inside the kernel


def _ffn_hidden(dim, hidden_dim, multiple_of, ffn_dim_multiplier=None):
    hidden_dim = int(2 * hidden_dim / 3)
    if ffn_dim_multiplier is not None:
        hidden_dim = int(ffn_dim_multiplier * hidden_dim)
    return multiple_of * ((hidden_dim + multiple_of - 1) // multiple_of)


HIDDEN = _ffn_hidden(DIM, 4 * DIM, MULTIPLE_OF, FFN_DIM_MULTIPLIER)   # 384


def _num_tensorcores():
    """1 TC on v5e/v6e, 2 TCs per chip on v7x (string sniff; default 1)."""
    try:
        kind = jax.devices()[0].device_kind.lower()
    except Exception:  # pragma: no cover - defensive
        return 1
    return 2 if "7" in kind else 1


# ----------------------------------- fused FFN kernel -----------------------------------
def _ffn_kernel(x_ref, w13_ref, w2_ref, o_ref, *, hidden, chunk):
    # x_ref:   [tm, D]   bf16
    # w13_ref: [D, 2H]   bf16 (pre-transposed: x @ w13_t == x @ W13.T), first H cols = w1
    # w2_ref:  [H, D]    bf16 (pre-transposed)
    # o_ref:   [tm, D]   f32
    x = x_ref[...]                                    # bf16, fed straight to the MXU
    acc = jnp.zeros(o_ref.shape, jnp.float32)

    # Hidden dim processed in 128-lane chunks: the [tm, 2H] intermediate never
    # exists, keeping the live vreg set small (no guaranteed spills).
    n_chunks = hidden // chunk
    for c in range(n_chunks):                         # static, fully unrolled
        lo = c * chunk
        # MXU matmuls, bf16 operands, f32 accumulation.  Static ref slices are views.
        x1 = jnp.dot(x, w13_ref[:, lo:lo + chunk],
                     preferred_element_type=jnp.float32)                    # [tm, chunk] f32
        x3 = jnp.dot(x, w13_ref[:, hidden + lo:hidden + lo + chunk],
                     preferred_element_type=jnp.float32)                    # [tm, chunk] f32
        # SwiGLU elementwise in f32 (correct on v5e; sigmoid -> EUP slot).
        h = (x1 * jax.nn.sigmoid(x1)) * x3                                  # [tm, chunk] f32
        # Second MXU matmul consumes h directly from vregs; accumulate in f32.
        acc = acc + jnp.dot(h.astype(jnp.bfloat16), w2_ref[lo:lo + chunk, :],
                            preferred_element_type=jnp.float32)             # [tm, D] f32

    o_ref[...] = acc                                  # single lane-dense store (D = 128)


def feed_forward(x_bf16, w13_t_bf16, w2_t_bf16, *, block_m=None):
    """Fused SwiGLU FFN.

    x_bf16:      [M, D]   bf16 activations
    w13_t_bf16:  [D, 2H]  bf16 (transposed w13 weight, [w1 | w3] along the out dim)
    w2_t_bf16:   [H, D]   bf16 (transposed w2 weight)
    returns      [M, D]   f32
    """
    M, D = x_bf16.shape
    D2, H2 = w13_t_bf16.shape
    H = H2 // 2
    assert D == D2 and w2_t_bf16.shape == (H, D)
    assert H % HIDDEN_CHUNK == 0

    if block_m is None:
        # Single grid step per TensorCore: v5e/v6e -> grid=(1,), v7x -> grid=(2,).
        block_m = max(8, M // _num_tensorcores())
    block_m = min(block_m, M)
    assert M % block_m == 0, "token count must be a multiple of the row tile"
    grid = (M // block_m,)

    return pl.pallas_call(
        functools.partial(_ffn_kernel, hidden=H, chunk=HIDDEN_CHUNK),
        out_shape=jax.ShapeDtypeStruct((M, D), jnp.float32),
        grid=grid,
        in_specs=[
            pl.BlockSpec((block_m, D), lambda i: (i, 0)),      # x row tile (pipelined)
            pl.BlockSpec((D, 2 * H), lambda i: (0, 0)),        # w13 panel (VMEM-resident)
            pl.BlockSpec((H, D), lambda i: (0, 0)),            # w2 panel (VMEM-resident)
        ],
        out_specs=pl.BlockSpec((block_m, D), lambda i: (i, 0)),   # lane-dense (D = 128)
        compiler_params=pltpu.CompilerParams(
            # Only matters for the 2-TC split on v7x; harmless (no-op) on v5e/v6e.
            dimension_semantics=("parallel",),
        ),
    )(x_bf16, w13_t_bf16, w2_t_bf16)


# ----------------------------------- reference & main -----------------------------------
def feed_forward_ref(x_f32, w13_t_f32, w2_t_f32, hidden):
    x13 = x_f32 @ w13_t_f32
    x1, x3 = x13[:, :hidden], x13[:, hidden:]
    return (jax.nn.silu(x1) * x3) @ w2_t_f32


if __name__ == "__main__":
    key = jax.random.PRNGKey(0)
    kx, k13, k2 = jax.random.split(key, 3)

    # Weights stored pre-transposed as [in_features, out_features] so the kernel does x @ W,
    # and kept in bf16 from the start (cast hoisted out of the per-call path).
    x_bf = jax.random.normal(kx, (SEQ_LEN, DIM), dtype=jnp.float32).astype(jnp.bfloat16)
    w13_bf = (0.02 * jax.random.normal(k13, (DIM, 2 * HIDDEN), dtype=jnp.float32)
              ).astype(jnp.bfloat16)
    w2_bf = (0.02 * jax.random.normal(k2, (HIDDEN, DIM), dtype=jnp.float32)
             ).astype(jnp.bfloat16)

    out = feed_forward(x_bf, w13_bf, w2_bf)
    out = jax.block_until_ready(out)

    assert out.shape == (SEQ_LEN, DIM), out.shape
    assert out.dtype == jnp.float32
    assert bool(jnp.all(jnp.isfinite(out)))

    # Reference in f32 from the same bf16 inputs; loose tolerance because the kernel
    # feeds bf16 operands (incl. the bf16-quantized SwiGLU result) to the MXU.
    ref = feed_forward_ref(x_bf.astype(jnp.float32),
                           w13_bf.astype(jnp.float32),
                           w2_bf.astype(jnp.float32),
                           HIDDEN)
    assert bool(jnp.allclose(out, ref, rtol=5e-2, atol=1e-3)), (
        float(jnp.max(jnp.abs(out - ref))))

    print("KERNEL_OK")
</pallas_src>

<mosaic_0001>
module attributes {stable_mosaic.version = 11 : i64} {
  func.func @_ffn_kernel(%arg0: i32, %arg1: memref<256x128xbf16, #tpu.memory_space<vmem>>, %arg2: memref<128x768xbf16, #tpu.memory_space<vmem>>, %arg3: memref<384x128xbf16, #tpu.memory_space<vmem>>, %arg4: memref<256x128xf32, #tpu.memory_space<vmem>>) attributes {dimension_semantics = [#tpu.dimension_semantics<parallel>], iteration_bounds = array<i64: 1>, scalar_prefetch = 0 : i64, scratch_operands = 0 : i64, tpu.core_type = #tpu.core_type<tc>, window_params = [{transform_indices = @transform_0, window_bounds = array<i64: 256, 128>}, {pipeline_mode = #tpu.pipeline_mode<synchronous>, transform_indices = @transform_1, window_bounds = array<i64: 128, 768>}, {pipeline_mode = #tpu.pipeline_mode<synchronous>, transform_indices = @transform_2, window_bounds = array<i64: 384, 128>}, {transform_indices = @transform_3, window_bounds = array<i64: 256, 128>}]} {
    %c0 = arith.constant 0 : index
    %c0_0 = arith.constant 0 : index
    %0 = vector.load %arg1[%c0, %c0_0] : memref<256x128xbf16, #tpu.memory_space<vmem>>, vector<256x128xbf16>
    %cst = arith.constant 0.000000e+00 : f32
    %1 = vector.broadcast %cst : f32 to vector<256x128xf32>
    %c0_1 = arith.constant 0 : index
    %c0_2 = arith.constant 0 : index
    %2 = vector.load %arg2[%c0_1, %c0_2] : memref<128x768xbf16, #tpu.memory_space<vmem>>, vector<128x128xbf16>
    %cst_3 = arith.constant dense<0.000000e+00> : vector<256x128xf32>
    %3 = tpu.matmul %0, %2, %cst_3 {dimension_numbers = #tpu.dot_dimension_numbers<[1], [0], [0], [1], [0, 0, 1, 1], [], []>} : vector<256x128xbf16>, vector<128x128xbf16>, vector<256x128xf32> -> vector<256x128xf32>
    %c0_4 = arith.constant 0 : index
    %c384 = arith.constant 384 : index
    %4 = vector.load %arg2[%c0_4, %c384] : memref<128x768xbf16, #tpu.memory_space<vmem>>, vector<128x128xbf16>
    %cst_5 = arith.constant dense<0.000000e+00> : vector<256x128xf32>
    %5 = tpu.matmul %0, %4, %cst_5 {dimension_numbers = #tpu.dot_dimension_numbers<[1], [0], [0], [1], [0, 0, 1, 1], [], []>} : vector<256x128xbf16>, vector<128x128xbf16>, vector<256x128xf32> -> vector<256x128xf32>
    %6 = arith.negf %3 : vector<256x128xf32>
    %7 = math.exp %6 : vector<256x128xf32>
    %cst_6 = arith.constant 1.000000e+00 : f32
    %8 = vector.broadcast %cst_6 : f32 to vector<256x128xf32>
    %9 = arith.addf %8, %7 : vector<256x128xf32>
    %10 = arith.divf %8, %9 : vector<256x128xf32>
    %11 = arith.mulf %3, %10 : vector<256x128xf32>
    %12 = arith.mulf %11, %5 : vector<256x128xf32>
    %13 = arith.truncf %12 : vector<256x128xf32> to vector<256x128xbf16>
    %c0_7 = arith.constant 0 : index
    %c0_8 = arith.constant 0 : index
    %14 = vector.load %arg3[%c0_7, %c0_8] : memref<384x128xbf16, #tpu.memory_space<vmem>>, vector<128x128xbf16>
    %cst_9 = arith.constant dense<0.000000e+00> : vector<256x128xf32>
    %15 = tpu.matmul %13, %14, %cst_9 {dimension_numbers = #tpu.dot_dimension_numbers<[1], [0], [0], [1], [0, 0, 1, 1], [], []>} : vector<256x128xbf16>, vector<128x128xbf16>, vector<256x128xf32> -> vector<256x128xf32>
    %16 = arith.addf %1, %15 : vector<256x128xf32>
    %c0_10 = arith.constant 0 : index
    %c128 = arith.constant 128 : index
    %17 = vector.load %arg2[%c0_10, %c128] : memref<128x768xbf16, #tpu.memory_space<vmem>>, vector<128x128xbf16>
    %cst_11 = arith.constant dense<0.000000e+00> : vector<256x128xf32>
    %18 = tpu.matmul %0, %17, %cst_11 {dimension_numbers = #tpu.dot_dimension_numbers<[1], [0], [0], [1], [0, 0, 1, 1], [], []>} : vector<256x128xbf16>, vector<128x128xbf16>, vector<256x128xf32> -> vector<256x128xf32>
    %c0_12 = arith.constant 0 : index
    %c512 = arith.constant 512 : index
    %19 = vector.load %arg2[%c0_12, %c512] : memref<128x768xbf16, #tpu.memory_space<vmem>>, vector<128x128xbf16>
    %cst_13 = arith.constant dense<0.000000e+00> : vector<256x128xf32>
    %20 = tpu.matmul %0, %19, %cst_13 {dimension_numbers = #tpu.dot_dimension_numbers<[1], [0], [0], [1], [0, 0, 1, 1], [], []>} : vector<256x128xbf16>, vector<128x128xbf16>, vector<256x128xf32> -> vector<256x128xf32>
    %21 = arith.negf %18 : vector<256x128xf32>
    %22 = math.exp %21 : vector<256x128xf32>
    %cst_14 = arith.constant 1.000000e+00 : f32
    %23 = vector.broadcast %cst_14 : f32 to vector<256x128xf32>
    %24 = arith.addf %23, %22 : vector<256x128xf32>
    %25 = arith.divf %23, %24 : vector<256x128xf32>
    %26 = arith.mulf %18, %25 : vector<256x128xf32>
    %27 = arith.mulf %26, %20 : vector<256x128xf32>
    %28 = arith.truncf %27 : vector<256x128xf32> to vector<256x128xbf16>
    %c128_15 = arith.constant 128 : index
    %c0_16 = arith.constant 0 : index
    %29 = vector.load %arg3[%c128_15, %c0_16] : memref<384x128xbf16, #tpu.memory_space<vmem>>, vector<128x128xbf16>
    %cst_17 = arith.constant dense<0.000000e+00> : vector<256x128xf32>
    %30 = tpu.matmul %28, %29, %cst_17 {dimension_numbers = #tpu.dot_dimension_numbers<[1], [0], [0], [1], [0, 0, 1, 1], [], []>} : vector<256x128xbf16>, vector<128x128xbf16>, vector<256x128xf32> -> vector<256x128xf32>
    %31 = arith.addf %16, %30 : vector<256x128xf32>
    %c0_18 = arith.constant 0 : index
    %c256 = arith.constant 256 : index
    %32 = vector.load %arg2[%c0_18, %c256] : memref<128x768xbf16, #tpu.memory_space<vmem>>, vector<128x128xbf16>
    %cst_19 = arith.constant dense<0.000000e+00> : vector<256x128xf32>
    %33 = tpu.matmul %0, %32, %cst_19 {dimension_numbers = #tpu.dot_dimension_numbers<[1], [0], [0], [1], [0, 0, 1, 1], [], []>} : vector<256x128xbf16>, vector<128x128xbf16>, vector<256x128xf32> -> vector<256x128xf32>
    %c0_20 = arith.constant 0 : index
    %c640 = arith.constant 640 : index
    %34 = vector.load %arg2[%c0_20, %c640] : memref<128x768xbf16, #tpu.memory_space<vmem>>, vector<128x128xbf16>
    %cst_21 = arith.constant dense<0.000000e+00> : vector<256x128xf32>
    %35 = tpu.matmul %0, %34, %cst_21 {dimension_numbers = #tpu.dot_dimension_numbers<[1], [0], [0], [1], [0, 0, 1, 1], [], []>} : vector<256x128xbf16>, vector<128x128xbf16>, vector<256x128xf32> -> vector<256x128xf32>
    %36 = arith.negf %33 : vector<256x128xf32>
    %37 = math.exp %36 : vector<256x128xf32>
    %cst_22 = arith.constant 1.000000e+00 : f32
    %38 = vector.broadcast %cst_22 : f32 to vector<256x128xf32>
    %39 = arith.addf %38, %37 : vector<256x128xf32>
    %40 = arith.divf %38, %39 : vector<256x128xf32>
    %41 = arith.mulf %33, %40 : vector<256x128xf32>
    %42 = arith.mulf %41, %35 : vector<256x128xf32>
    %43 = arith.truncf %42 : vector<256x128xf32> to vector<256x128xbf16>
    %c256_23 = arith.constant 256 : index
    %c0_24 = arith.constant 0 : index
    %44 = vector.load %arg3[%c256_23, %c0_24] : memref<384x128xbf16, #tpu.memory_space<vmem>>, vector<128x128xbf16>
    %cst_25 = arith.constant dense<0.000000e+00> : vector<256x128xf32>
    %45 = tpu.matmul %43, %44, %cst_25 {dimension_numbers = #tpu.dot_dimension_numbers<[1], [0], [0], [1], [0, 0, 1, 1], [], []>} : vector<256x128xbf16>, vector<128x128xbf16>, vector<256x128xf32> -> vector<256x128xf32>
    %46 = arith.addf %31, %45 : vector<256x128xf32>
    %c0_26 = arith.constant 0 : index
    %c0_27 = arith.constant 0 : index
    %47 = vector.load %arg4[%c0_26, %c0_27] : memref<256x128xf32, #tpu.memory_space<vmem>>, vector<256x128xf32>
    tpu.vector_store %arg4[%c0_26, %c0_27], %46 {strides = array<i32>} : memref<256x128xf32, #tpu.memory_space<vmem>>, vector<256x128xf32>,
    return
  }
  func.func @transform_0(%arg0: i32) -> (i32, i32) {
    %c0_i32 = arith.constant 0 : i32
    %c0_i32_0 = arith.constant 0 : i32
    return %arg0, %c0_i32 : i32, i32
  }
  func.func @transform_1(%arg0: i32) -> (i32, i32) {
    %c0_i32 = arith.constant 0 : i32
    %c0_i32_0 = arith.constant 0 : i32
    %c0_i32_1 = arith.constant 0 : i32
    return %c0_i32, %c0_i32_0 : i32, i32
  }
  func.func @transform_2(%arg0: i32) -> (i32, i32) {
    %c0_i32 = arith.constant 0 : i32
    %c0_i32_0 = arith.constant 0 : i32
    %c0_i32_1 = arith.constant 0 : i32
    return %c0_i32, %c0_i32_0 : i32, i32
  }
  func.func @transform_3(%arg0: i32) -> (i32, i32) {
    %c0_i32 = arith.constant 0 : i32
    %c0_i32_0 = arith.constant 0 : i32
    return %arg0, %c0_i32 : i32, i32
  }
}

</mosaic_0001>

<llo_original>
// kernel: tpu_custom_call.1
$region0: #{tpu_custom_call.1}
  #allocation0 [shape = 'u32[]', space=smem, size = 0x4, offset = 0x4, fixed_abs, tag = 'smem constant byte address 0x4 - core index']
  #allocation1 [shape = 'u32[72,128]{1,0:T(1,128)}', space=vmem, size = 0x9000, scoped, tag = 'internal scratch']
  %s0 = inlined_call_operand.hbm [shape: bf16[256,128], index: 0, kind: input, shape index: {}]
  %s1 = inlined_call_operand.hbm [shape: bf16[128,768], index: 1, kind: input, shape index: {}]
  %s2 = inlined_call_operand.hbm [shape: bf16[384,128], index: 2, kind: input, shape index: {}]
  %s3 = inlined_call_operand.hbm [shape: f32[256,128], index: 3, kind: output, shape index: {}]
  %s4 = sld [smem:[#allocation0]]
  $region34: #{tpu_custom_call.1} parent=0
    _
  %s6 = ssub.s32 1, %s4
  %s7 = scalar_select 0, %s6, %s4
  $region1: #{tpu_custom_call.1} parent=0
    #allocation2 [shape = 'u8[65536]{0}', space=vmem, size = 0x10000, scoped, tag = 'input window, operand 0, single buffered']
    #allocation3 [shape = 's32[1]{0}', space=sflag, size = 0x4, scoped, tag = 'scoped memory for tpu_custom_call.1']
    #allocation4 [shape = 's32[1]{0}', space=sflag, size = 0x4, scoped, tag = 'scoped memory for tpu_custom_call.1']
    #allocation5 [shape = 'u8[196608]{0}', space=vmem, size = 0x30000, scoped, tag = 'input window, operand 1, single buffered']
    #allocation6 [shape = 's32[1]{0}', space=sflag, size = 0x4, scoped, tag = 'scoped memory for tpu_custom_call.1']
    #allocation7 [shape = 'u8[98304]{0}', space=vmem, size = 0x18000, scoped, tag = 'input window, operand 2, single buffered']
    #allocation8 [shape = 'u8[131072]{0}', space=vmem, size = 0x20000, scoped, tag = 'output window, operand 0, single buffered']
    %8 = vsyncpa [#allocation3], 0
    %9 = vsyncpa [#allocation6], 0
    %10 = vsyncpa [#allocation4], 0
    // Predicated region
    $region2: #{tpu_custom_call.1} parent=1 // pred_check
      _
    $region3: #{tpu_custom_call.1} parent=1 // pred_check_branch
      %12 = sbr.rel (0) target = $region5
    $region4: #{tpu_custom_call.1} parent=1 // pred_region
      %14 = vsyncadd [#allocation3], 0
      %s15 = sshll.u32 %s0, 4
      %s16 = int_to_ptr.hbm [resolvable:$true] %s15
      %s17 = sshll.u32 [#allocation2], 4
      %s18 = int_to_ptr.vmem [resolvable:$true] %s17
      %23 = dma.hbm_to_vmem [thread:$0]  %s16, 2048, %s18, [#allocation3], 64, 64, 4
    $region5: #{tpu_custom_call.1} parent=1 // pred_fallthru
      _
    // Predicated region
    $region6: #{tpu_custom_call.1} parent=1 // pred_check
      _
    $region7: #{tpu_custom_call.1} parent=1 // pred_check_branch
      %25 = sbr.rel (0) target = $region9
    $region8: #{tpu_custom_call.1} parent=1 // pred_region
      %27 = vsyncadd [#allocation6], 0
      %s28 = sshll.u32 %s1, 4
      %s29 = int_to_ptr.hbm [resolvable:$true] %s28
      %s30 = sshll.u32 [#allocation5], 4
      %s31 = int_to_ptr.vmem [resolvable:$true] %s30
      %36 = dma.hbm_to_vmem [thread:$0]  %s29, 6144, %s31, [#allocation6], 384, 384, 24
    $region9: #{tpu_custom_call.1} parent=1 // pred_fallthru
      _
    // Predicated region
    $region10: #{tpu_custom_call.1} parent=1 // pred_check
      _
    $region11: #{tpu_custom_call.1} parent=1 // pred_check_branch
      %38 = sbr.rel (0) target = $region13
    $region12: #{tpu_custom_call.1} parent=1 // pred_region
      %40 = vsyncadd [#allocation6], 0
      %s41 = sshll.u32 %s2, 4
      %s42 = int_to_ptr.hbm [resolvable:$true] %s41
      %s43 = sshll.u32 [#allocation7], 4
      %s44 = int_to_ptr.vmem [resolvable:$true] %s43
      %49 = dma.hbm_to_vmem [thread:$0]  %s42, 3072, %s44, [#allocation6], 64, 64, 4
    $region13: #{tpu_custom_call.1} parent=1 // pred_fallthru
      _
    // Predicated region
    $region14: #{tpu_custom_call.1} parent=1 // pred_check
      _
    $region15: #{tpu_custom_call.1} parent=1 // pred_check_branch
      %51 = sbr.rel (0) target = $region17
    $region16: #{tpu_custom_call.1} parent=1 // pred_region
      %53 = dma.done [#allocation3], 2048
    $region17: #{tpu_custom_call.1} parent=1 // pred_fallthru
      _
    // Predicated region
    $region18: #{tpu_custom_call.1} parent=1 // pred_check
      _
    $region19: #{tpu_custom_call.1} parent=1 // pred_check_branch
      %55 = sbr.rel (0) target = $region21
    $region20: #{tpu_custom_call.1} parent=1 // pred_region
      %57 = dma.done [#allocation6], 6144
    $region21: #{tpu_custom_call.1} parent=1 // pred_fallthru
      _
    // Predicated region
    $region22: #{tpu_custom_call.1} parent=1 // pred_check
      _
    $region23: #{tpu_custom_call.1} parent=1 // pred_check_branch
      %59 = sbr.rel (0) target = $region25
    $region24: #{tpu_custom_call.1} parent=1 // pred_region
      %61 = dma.done [#allocation6], 3072
    $region25: #{tpu_custom_call.1} parent=1 // pred_fallthru
      _
    %v62 = vld [vmem:[#allocation2] sm:$0xf]
    %v63 = vld [vmem:[#allocation2 + $0x4] sm:$0xf]
    %v64 = vld [vmem:[#allocation2 + $0x8] sm:$0xf]
    %v65 = vld [vmem:[#allocation2 + $0xc] sm:$0xf]
    %v66 = vld [vmem:[#allocation2 + $0x10] sm:$0xf]
    %v67 = vld [vmem:[#allocation2 + $0x14] sm:$0xf]
    %v68 = vld [vmem:[#allocation2 + $0x18] sm:$0xf]
    %v69 = vld [vmem:[#allocation2 + $0x1c] sm:$0xf]
    %v70 = vld [vmem:[#allocation2 + $0x20] sm:$0xf]
    %v71 = vld [vmem:[#allocation2 + $0x24] sm:$0xf]
    %v72 = vld [vmem:[#allocation2 + $0x28] sm:$0xf]
    %v73 = vld [vmem:[#allocation2 + $0x2c] sm:$0xf]
    %v74 = vld [vmem:[#allocation2 + $0x30] sm:$0xf]
    %v75 = vld [vmem:[#allocation2 + $0x34] sm:$0xf]
    %v76 = vld [vmem:[#allocation2 + $0x38] sm:$0xf]
    %v77 = vld [vmem:[#allocation2 + $0x3c] sm:$0xf]
    %v78 = vld [vmem:[#allocation2 + $0x40] sm:$0xf]
    %v79 = vld [vmem:[#allocation2 + $0x44] sm:$0xf]
    %v80 = vld [vmem:[#allocation2 + $0x48] sm:$0xf]
    %v81 = vld [vmem:[#allocation2 + $0x4c] sm:$0xf]
    %v82 = vld [vmem:[#allocation2 + $0x50] sm:$0xf]
    %v83 = vld [vmem:[#allocation2 + $0x54] sm:$0xf]
    %v84 = vld [vmem:[#allocation2 + $0x58] sm:$0xf]
    %v85 = vld [vmem:[#allocation2 + $0x5c] sm:$0xf]
    %v86 = vld [vmem:[#allocation2 + $0x60] sm:$0xf]
    %v87 = vld [vmem:[#allocation2 + $0x64] sm:$0xf]
    %v88 = vld [vmem:[#allocation2 + $0x68] sm:$0xf]
    %v89 = vld [vmem:[#allocation2 + $0x6c] sm:$0xf]
    %v90 = vld [vmem:[#allocation2 + $0x70] sm:$0xf]
    %v91 = vld [vmem:[#allocation2 + $0x74] sm:$0xf]
    %v92 = vld [vmem:[#allocation2 + $0x78] sm:$0xf]
    %v93 = vld [vmem:[#allocation2 + $0x7c] sm:$0xf]
    %v94 = vld [vmem:[#allocation5] sm:$0xf]
    %v95 = vld [vmem:[#allocation5 + $0x18] sm:$0xf]
    %v96 = vld [vmem:[#allocation5 + $0x30] sm:$0xf]
    %v97 = vld [vmem:[#allocation5 + $0x48] sm:$0xf]
    %v98 = vld [vmem:[#allocation5 + $0x60] sm:$0xf]
    %v99 = vld [vmem:[#allocation5 + $0x78] sm:$0xf]
    %v100 = vld [vmem:[#allocation5 + $0x90] sm:$0xf]
    %v101 = vld [vmem:[#allocation5 + $0xa8] sm:$0xf]
    %v102 = vld [vmem:[#allocation5 + $0xc0] sm:$0xf]
    %v103 = vld [vmem:[#allocation5 + $0xd8] sm:$0xf]
    %v104 = vld [vmem:[#allocation5 + $0xf0] sm:$0xf]
    %v105 = vld [vmem:[#allocation5 + $0x108] sm:$0xf]
    %v106 = vld [vmem:[#allocation5 + $0x120] sm:$0xf]
    %v107 = vld [vmem:[#allocation5 + $0x138] sm:$0xf]
    %v108 = vld [vmem:[#allocation5 + $0x150] sm:$0xf]
    %v109 = vld [vmem:[#allocation5 + $0x168] sm:$0xf]
    %v142 = vunpack.c.l.b16 %v62
    %v143 = vunpack.c.l.b16 %v63
    %v144 = vunpack.c.l.b16 %v64
    %v145 = vunpack.c.l.b16 %v65
    %v146 = vunpack.c.l.b16 %v66
    %v147 = vunpack.c.l.b16 %v67
    %v148 = vunpack.c.l.b16 %v68
    %v149 = vunpack.c.l.b16 %v69
    %v150 = vunpack.c.l.b16 %v70
    %v151 = vunpack.c.l.b16 %v71
    %v152 = vunpack.c.l.b16 %v72
    %v153 = vunpack.c.l.b16 %v73
    %v154 = vunpack.c.l.b16 %v74
    %v155 = vunpack.c.l.b16 %v75
    %v156 = vunpack.c.l.b16 %v76
    %v157 = vunpack.c.l.b16 %v77
    %v158 = vunpack.c.l.b16 %v78
    %v159 = vunpack.c.l.b16 %v79
    %v160 = vunpack.c.l.b16 %v80
    %v161 = vunpack.c.l.b16 %v81
    %v162 = vunpack.c.l.b16 %v82
    %v163 = vunpack.c.l.b16 %v83
    %v164 = vunpack.c.l.b16 %v84
    %v165 = vunpack.c.l.b16 %v85
    %v166 = vunpack.c.l.b16 %v86
    %v167 = vunpack.c.l.b16 %v87
    %v168 = vunpack.c.l.b16 %v88
    %v169 = vunpack.c.l.b16 %v89
    %v170 = vunpack.c.l.b16 %v90
    %v171 = vunpack.c.l.b16 %v91
    %v172 = vunpack.c.l.b16 %v92
    %v173 = vunpack.c.l.b16 %v93
    %v174 = vpack.c.b16 %v143, %v142
    %v175 = vpack.c.b16 %v145, %v144
    %v176 = vpack.c.b16 %v147, %v146
    %v177 = vpack.c.b16 %v149, %v148
    %v178 = vpack.c.b16 %v151, %v150
    %v179 = vpack.c.b16 %v153, %v152
    %v180 = vpack.c.b16 %v155, %v154
    %v181 = vpack.c.b16 %v157, %v156
    %v182 = vpack.c.b16 %v159, %v158
    %v183 = vpack.c.b16 %v161, %v160
    %v184 = vpack.c.b16 %v163, %v162
    %v185 = vpack.c.b16 %v165, %v164
    %v186 = vpack.c.b16 %v167, %v166
    %v187 = vpack.c.b16 %v169, %v168
    %v188 = vpack.c.b16 %v171, %v170
    %v189 = vpack.c.b16 %v173, %v172
    %v222 = vunpack.c.l.b16 %v94
    %v223 = vunpack.c.l.b16 %v95
    %v224 = vunpack.c.l.b16 %v96
    %v225 = vunpack.c.l.b16 %v97
    %v226 = vunpack.c.l.b16 %v98
    %v227 = vunpack.c.l.b16 %v99
    %v228 = vunpack.c.l.b16 %v100
    %v229 = vunpack.c.l.b16 %v101
    %v230 = vunpack.c.l.b16 %v102
    %v231 = vunpack.c.l.b16 %v103
    %v232 = vunpack.c.l.b16 %v104
    %v233 = vunpack.c.l.b16 %v105
    %v234 = vunpack.c.l.b16 %v106
    %v235 = vunpack.c.l.b16 %v107
    %v236 = vunpack.c.l.b16 %v108
    %v237 = vunpack.c.l.b16 %v109
    %v238 = vpack.c.b16 %v223, %v222
    %v239 = vpack.c.b16 %v225, %v224
    %v240 = vpack.c.b16 %v227, %v226
    %v241 = vpack.c.b16 %v229, %v228
    %v242 = vpack.c.b16 %v231, %v230
    %v243 = vpack.c.b16 %v233, %v232
    %v244 = vpack.c.b16 %v235, %v234
    %v245 = vpack.c.b16 %v237, %v236
    %254 = vmatpush.bf16.msra.mxu0 %v245
    %255 = vmatpush.bf16.msra.mxu0 %v244
    %256 = vmatpush.bf16.msra.mxu0 %v243
    %257 = vmatpush.bf16.msra.mxu0 %v242
    %258 = vmatpush.bf16.msra.mxu0 %v241
    %259 = vmatpush.bf16.msra.mxu0 %v240
    %260 = vmatpush.bf16.msra.mxu0 %v239
    %261 = vmatpush.bf16.msra.mxu0 %v238
    %262 = vmatmul.bf16.gmra.mxu0 %v174
    %v263 = vpop.f32.mrf.mxu0
    %v264 = vadd.f32 0.0, %v263
    %v265 = vpop.f32.mrf.mxu0
    %v266 = vadd.f32 0.0, %v265
    %267 = vmatmul.bf16.gmra.mxu0 %v175
    %v268 = vpop.f32.mrf.mxu0
    %v269 = vadd.f32 0.0, %v268
    %v270 = vpop.f32.mrf.mxu0
    %v271 = vadd.f32 0.0, %v270
    %272 = vmatmul.bf16.gmra.mxu0 %v176
    %v273 = vpop.f32.mrf.mxu0
    %v274 = vadd.f32 0.0, %v273
    %v275 = vpop.f32.mrf.mxu0
    %v276 = vadd.f32 0.0, %v275
    %277 = vmatmul.bf16.gmra.mxu0 %v177
    %v278 = vpop.f32.mrf.mxu0
    %v279 = vadd.f32 0.0, %v278
    %v280 = vpop.f32.mrf.mxu0
    %v281 = vadd.f32 0.0, %v280
    %282 = vmatmul.bf16.gmra.mxu0 %v178
    %v283 = vpop.f32.mrf.mxu0
    %v284 = vadd.f32 0.0, %v283
    %v285 = vpop.f32.mrf.mxu0
    %v286 = vadd.f32 0.0, %v285
    %287 = vmatmul.bf16.gmra.mxu0 %v179
    %v288 = vpop.f32.mrf.mxu0
    %v289 = vadd.f32 0.0, %v288
    %v290 = vpop.f32.mrf.mxu0
    %v291 = vadd.f32 0.0, %v290
    %292 = vmatmul.bf16.gmra.mxu0 %v180
    %v293 = vpop.f32.mrf.mxu0
    %v294 = vadd.f32 0.0, %v293
    %v295 = vpop.f32.mrf.mxu0
    %v296 = vadd.f32 0.0, %v295
    %297 = vmatmul.bf16.gmra.mxu0 %v181
    %v298 = vpop.f32.mrf.mxu0
    %v299 = vadd.f32 0.0, %v298
    %v300 = vpop.f32.mrf.mxu0
    %v301 = vadd.f32 0.0, %v300
    %302 = vmatmul.bf16.gmra.mxu0 %v182
    %v303 = vpop.f32.mrf.mxu0
    %v304 = vadd.f32 0.0, %v303
    %v305 = vpop.f32.mrf.mxu0
    %v306 = vadd.f32 0.0, %v305
    %307 = vmatmul.bf16.gmra.mxu0 %v183
    %v308 = vpop.f32.mrf.mxu0
    %v309 = vadd.f32 0.0, %v308
    %v310 = vpop.f32.mrf.mxu0
    %v311 = vadd.f32 0.0, %v310
    %312 = vmatmul.bf16.gmra.mxu0 %v184
    %v313 = vpop.f32.mrf.mxu0
    %v314 = vadd.f32 0.0, %v313
    %v315 = vpop.f32.mrf.mxu0
    %v316 = vadd.f32 0.0, %v315
    %317 = vmatmul.bf16.gmra.mxu0 %v185
    %v318 = vpop.f32.mrf.mxu0
    %v319 = vadd.f32 0.0, %v318
    %v320 = vpop.f32.mrf.mxu0
    %v321 = vadd.f32 0.0, %v320
    %322 = vmatmul.bf16.gmra.mxu0 %v186
    %v323 = vpop.f32.mrf.mxu0
    %v324 = vadd.f32 0.0, %v323
    %v325 = vpop.f32.mrf.mxu0
    %v326 = vadd.f32 0.0, %v325
    %327 = vmatmul.bf16.gmra.mxu0 %v187
    %v328 = vpop.f32.mrf.mxu0
    %v329 = vadd.f32 0.0, %v328
    %v330 = vpop.f32.mrf.mxu0
    %v331 = vadd.f32 0.0, %v330
    %332 = vmatmul.bf16.gmra.mxu0 %v188
    %v333 = vpop.f32.mrf.mxu0
    %v334 = vadd.f32 0.0, %v333
    %v335 = vpop.f32.mrf.mxu0
    %v336 = vadd.f32 0.0, %v335
    %337 = vmatmul.bf16.gmra.mxu0 %v189
    %v338 = vpop.f32.mrf.mxu0
    %v339 = vadd.f32 0.0, %v338
    %v340 = vpop.f32.mrf.mxu0
    %v341 = vadd.f32 0.0, %v340
    %342 = vdwg.mxu0
    %v343 = vld [vmem:[#allocation5 + $0xc] sm:$0xf]
    %v344 = vld [vmem:[#allocation5 + $0x24] sm:$0xf]
    %v345 = vld [vmem:[#allocation5 + $0x3c] sm:$0xf]
    %v346 = vld [vmem:[#allocation5 + $0x54] sm:$0xf]
    %v347 = vld [vmem:[#allocation5 + $0x6c] sm:$0xf]
    %v348 = vld [vmem:[#allocation5 + $0x84] sm:$0xf]
    %v349 = vld [vmem:[#allocation5 + $0x9c] sm:$0xf]
    %v350 = vld [vmem:[#allocation5 + $0xb4] sm:$0xf]
    %v351 = vld [vmem:[#allocation5 + $0xcc] sm:$0xf]
    %v352 = vld [vmem:[#allocation5 + $0xe4] sm:$0xf]
    %v353 = vld [vmem:[#allocation5 + $0xfc] sm:$0xf]
    %v354 = vld [vmem:[#allocation5 + $0x114] sm:$0xf]
    %v355 = vld [vmem:[#allocation5 + $0x12c] sm:$0xf]
    %v356 = vld [vmem:[#allocation5 + $0x144] sm:$0xf]
    %v357 = vld [vmem:[#allocation5 + $0x15c] sm:$0xf]
    %v358 = vld [vmem:[#allocation5 + $0x174] sm:$0xf]
    %v375 = vunpack.c.l.b16 %v343
    %v376 = vunpack.c.l.b16 %v344
    %v377 = vunpack.c.l.b16 %v345
    %v378 = vunpack.c.l.b16 %v346
    %v379 = vunpack.c.l.b16 %v347
    %v380 = vunpack.c.l.b16 %v348
    %v381 = vunpack.c.l.b16 %v349
    %v382 = vunpack.c.l.b16 %v350
    %v383 = vunpack.c.l.b16 %v351
    %v384 = vunpack.c.l.b16 %v352
    %v385 = vunpack.c.l.b16 %v353
    %v386 = vunpack.c.l.b16 %v354
    %v387 = vunpack.c.l.b16 %v355
    %v388 = vunpack.c.l.b16 %v356
    %v389 = vunpack.c.l.b16 %v357
    %v390 = vunpack.c.l.b16 %v358
    %v391 = vpack.c.b16 %v376, %v375
    %v392 = vpack.c.b16 %v378, %v377
    %v393 = vpack.c.b16 %v380, %v379
    %v394 = vpack.c.b16 %v382, %v381
    %v395 = vpack.c.b16 %v384, %v383
    %v396 = vpack.c.b16 %v386, %v385
    %v397 = vpack.c.b16 %v388, %v387
    %v398 = vpack.c.b16 %v390, %v389
    %407 = vmatpush.bf16.msra.mxu0 %v398
    %408 = vmatpush.bf16.msra.mxu0 %v397
    %409 = vmatpush.bf16.msra.mxu0 %v396
    %410 = vmatpush.bf16.msra.mxu0 %v395
    %411 = vmatpush.bf16.msra.mxu0 %v394
    %412 = vmatpush.bf16.msra.mxu0 %v393
    %413 = vmatpush.bf16.msra.mxu0 %v392
    %414 = vmatpush.bf16.msra.mxu0 %v391
    %415 = vmatmul.bf16.gmra.mxu0 %v174
    %v416 = vpop.f32.mrf.mxu0
    %v417 = vadd.f32 0.0, %v416
    %v418 = vpop.f32.mrf.mxu0
    %v419 = vadd.f32 0.0, %v418
    %420 = vmatmul.bf16.gmra.mxu0 %v175
    %v421 = vpop.f32.mrf.mxu0
    %v422 = vadd.f32 0.0, %v421
    %v423 = vpop.f32.mrf.mxu0
    %v424 = vadd.f32 0.0, %v423
    %425 = vmatmul.bf16.gmra.mxu0 %v176
    %v426 = vpop.f32.mrf.mxu0
    %v427 = vadd.f32 0.0, %v426
    %v428 = vpop.f32.mrf.mxu0
    %v429 = vadd.f32 0.0, %v428
    %430 = vmatmul.bf16.gmra.mxu0 %v177
    %v431 = vpop.f32.mrf.mxu0
    %v432 = vadd.f32 0.0, %v431
    %v433 = vpop.f32.mrf.mxu0
    %v434 = vadd.f32 0.0, %v433
    %435 = vmatmul.bf16.gmra.mxu0 %v178
    %v436 = vpop.f32.mrf.mxu0
    %v437 = vadd.f32 0.0, %v436
    %v438 = vpop.f32.mrf.mxu0
    %v439 = vadd.f32 0.0, %v438
    %440 = vmatmul.bf16.gmra.mxu0 %v179
    %v441 = vpop.f32.mrf.mxu0
    %v442 = vadd.f32 0.0, %v441
    %v443 = vpop.f32.mrf.mxu0
    %v444 = vadd.f32 0.0, %v443
    %445 = vmatmul.bf16.gmra.mxu0 %v180
    %v446 = vpop.f32.mrf.mxu0
    %v447 = vadd.f32 0.0, %v446
    %v448 = vpop.f32.mrf.mxu0
    %v449 = vadd.f32 0.0, %v448
    %450 = vmatmul.bf16.gmra.mxu0 %v181
    %v451 = vpop.f32.mrf.mxu0
    %v452 = vadd.f32 0.0, %v451
    %v453 = vpop.f32.mrf.mxu0
    %v454 = vadd.f32 0.0, %v453
    %455 = vmatmul.bf16.gmra.mxu0 %v182
    %v456 = vpop.f32.mrf.mxu0
    %v457 = vadd.f32 0.0, %v456
    %v458 = vpop.f32.mrf.mxu0
    %v459 = vadd.f32 0.0, %v458
    %460 = vmatmul.bf16.gmra.mxu0 %v183
    %v461 = vpop.f32.mrf.mxu0
    %v462 = vadd.f32 0.0, %v461
    %v463 = vpop.f32.mrf.mxu0
    %v464 = vadd.f32 0.0, %v463
    %465 = vmatmul.bf16.gmra.mxu0 %v184
    %v466 = vpop.f32.mrf.mxu0
    %v467 = vadd.f32 0.0, %v466
    %v468 = vpop.f32.mrf.mxu0
    %v469 = vadd.f32 0.0, %v468
    %470 = vmatmul.bf16.gmra.mxu0 %v185
    %v471 = vpop.f32.mrf.mxu0
    %v472 = vadd.f32 0.0, %v471
    %v473 = vpop.f32.mrf.mxu0
    %v474 = vadd.f32 0.0, %v473
    %475 = vmatmul.bf16.gmra.mxu0 %v186
    %v476 = vpop.f32.mrf.mxu0
    %v477 = vadd.f32 0.0, %v476
    %v478 = vpop.f32.mrf.mxu0
    %v479 = vadd.f32 0.0, %v478
    %480 = vmatmul.bf16.gmra.mxu0 %v187
    %v481 = vpop.f32.mrf.mxu0
    %v482 = vadd.f32 0.0, %v481
    %v483 = vpop.f32.mrf.mxu0
    %v484 = vadd.f32 0.0, %v483
    %485 = vmatmul.bf16.gmra.mxu0 %v188
    %v486 = vpop.f32.mrf.mxu0
    %v487 = vadd.f32 0.0, %v486
    %v488 = vpop.f32.mrf.mxu0
    %v489 = vadd.f32 0.0, %v488
    %490 = vmatmul.bf16.gmra.mxu0 %v189
    %v491 = vpop.f32.mrf.mxu0
    %v492 = vadd.f32 0.0, %v491
    %v493 = vpop.f32.mrf.mxu0
    %v494 = vadd.f32 0.0, %v493
    %495 = vdwg.mxu0
    %v496 = vxor.u32 %v264, 2147483648
    %v497 = vxor.u32 %v266, 2147483648
    %v498 = vxor.u32 %v269, 2147483648
    %v499 = vxor.u32 %v271, 2147483648
    %v500 = vxor.u32 %v274, 2147483648
    %v501 = vxor.u32 %v276, 2147483648
    %v502 = vxor.u32 %v279, 2147483648
    %v503 = vxor.u32 %v281, 2147483648
    %v504 = vxor.u32 %v284, 2147483648
    %v505 = vxor.u32 %v286, 2147483648
    %v506 = vxor.u32 %v289, 2147483648
    %v507 = vxor.u32 %v291, 2147483648
    %v508 = vxor.u32 %v294, 2147483648
    %v509 = vxor.u32 %v296, 2147483648
    %v510 = vxor.u32 %v299, 2147483648
    %v511 = vxor.u32 %v301, 2147483648
    %v512 = vxor.u32 %v304, 2147483648
    %v513 = vxor.u32 %v306, 2147483648
    %v514 = vxor.u32 %v309, 2147483648
    %v515 = vxor.u32 %v311, 2147483648
    %v516 = vxor.u32 %v314, 2147483648
    %v517 = vxor.u32 %v316, 2147483648
    %v518 = vxor.u32 %v319, 2147483648
    %v519 = vxor.u32 %v321, 2147483648
    %v520 = vxor.u32 %v324, 2147483648
    %v521 = vxor.u32 %v326, 2147483648
    %v522 = vxor.u32 %v329, 2147483648
    %v523 = vxor.u32 %v331, 2147483648
    %v524 = vxor.u32 %v334, 2147483648
    %v525 = vxor.u32 %v336, 2147483648
    %v526 = vxor.u32 %v339, 2147483648
    %v527 = vxor.u32 %v341, 2147483648
    %v528 = vmul.f32 %v496, 1.442695
    %v529 = vpow.pop %v528
    %v530 = vmul.f32 %v497, 1.442695
    %v531 = vpow.pop %v530
    %v532 = vmul.f32 %v498, 1.442695
    %v533 = vpow.pop %v532
    %v534 = vmul.f32 %v499, 1.442695
    %v535 = vpow.pop %v534
    %v536 = vmul.f32 %v500, 1.442695
    %v537 = vpow.pop %v536
    %v538 = vmul.f32 %v501, 1.442695
    %v539 = vpow.pop %v538
    %v540 = vmul.f32 %v502, 1.442695
    %v541 = vpow.pop %v540
    %v542 = vmul.f32 %v503, 1.442695
    %v543 = vpow.pop %v542
    %v544 = vmul.f32 %v504, 1.442695
    %v545 = vpow.pop %v544
    %v546 = vmul.f32 %v505, 1.442695
    %v547 = vpow.pop %v546
    %v548 = vmul.f32 %v506, 1.442695
    %v549 = vpow.pop %v548
    %v550 = vmul.f32 %v507, 1.442695
    %v551 = vpow.pop %v550
    %v552 = vmul.f32 %v508, 1.442695
    %v553 = vpow.pop %v552
    %v554 = vmul.f32 %v509, 1.442695
    %v555 = vpow.pop %v554
    %v556 = vmul.f32 %v510, 1.442695
    %v557 = vpow.pop %v556
    %v558 = vmul.f32 %v511, 1.442695
    %v559 = vpow.pop %v558
    %v560 = vmul.f32 %v512, 1.442695
    %v561 = vpow.pop %v560
    %v562 = vmul.f32 %v513, 1.442695
    %v563 = vpow.pop %v562
    %v564 = vmul.f32 %v514, 1.442695
    %v565 = vpow.pop %v564
    %v566 = vmul.f32 %v515, 1.442695
    %v567 = vpow.pop %v566
    %v568 = vmul.f32 %v516, 1.442695
    %v569 = vpow.pop %v568
    %v570 = vmul.f32 %v517, 1.442695
    %v571 = vpow.pop %v570
    %v572 = vmul.f32 %v518, 1.442695
    %v573 = vpow.pop %v572
    %v574 = vmul.f32 %v519, 1.442695
    %v575 = vpow.pop %v574
    %v576 = vmul.f32 %v520, 1.442695
    %v577 = vpow.pop %v576
    %v578 = vmul.f32 %v521, 1.442695
    %v579 = vpow.pop %v578
    %v580 = vmul.f32 %v522, 1.442695
    %v581 = vpow.pop %v580
    %v582 = vmul.f32 %v523, 1.442695
    %v583 = vpow.pop %v582
    %v584 = vmul.f32 %v524, 1.442695
    %v585 = vpow.pop %v584
    %v586 = vmul.f32 %v525, 1.442695
    %v587 = vpow.pop %v586
    %v588 = vmul.f32 %v526, 1.442695
    %v589 = vpow.pop %v588
    %v590 = vmul.f32 %v527, 1.442695
    %v591 = vpow.pop %v590
    %v592 = vadd.f32 %v529, 1.0
    %v593 = vadd.f32 %v531, 1.0
    %v594 = vadd.f32 %v533, 1.0
    %v595 = vadd.f32 %v535, 1.0
    %v596 = vadd.f32 %v537, 1.0
    %v597 = vadd.f32 %v539, 1.0
    %v598 = vadd.f32 %v541, 1.0
    %v599 = vadd.f32 %v543, 1.0
    %v600 = vadd.f32 %v545, 1.0
    %v601 = vadd.f32 %v547, 1.0
    %v602 = vadd.f32 %v549, 1.0
    %v603 = vadd.f32 %v551, 1.0
    %v604 = vadd.f32 %v553, 1.0
    %v605 = vadd.f32 %v555, 1.0
    %v606 = vadd.f32 %v557, 1.0
    %v607 = vadd.f32 %v559, 1.0
    %v608 = vadd.f32 %v561, 1.0
    %v609 = vadd.f32 %v563, 1.0
    %v610 = vadd.f32 %v565, 1.0
    %v611 = vadd.f32 %v567, 1.0
    %v612 = vadd.f32 %v569, 1.0
    %v613 = vadd.f32 %v571, 1.0
    %v614 = vadd.f32 %v573, 1.0
    %v615 = vadd.f32 %v575, 1.0
    %v616 = vadd.f32 %v577, 1.0
    %v617 = vadd.f32 %v579, 1.0
    %v618 = vadd.f32 %v581, 1.0
    %v619 = vadd.f32 %v583, 1.0
    %v620 = vadd.f32 %v585, 1.0
    %v621 = vadd.f32 %v587, 1.0
    %v622 = vadd.f32 %v589, 1.0
    %v623 = vadd.f32 %v591, 1.0
    %v624 = vrcp.pop %v592
    %v625 = vmul.f32 %v592, %v624
    %v626 = vsub.f32 1.0, %v625
    %v627 = vmul.f32 %v624, %v626
    %v628 = vadd.f32 %v624, %v627
    %vm629 = vweird.f32 %v592
    %vm630 = vweird.f32 %v624
    %vm631 = vmor %vm629, %vm630
    %v632 = vsel %vm631, %v624, %v628
    %v633 = vand.u32 2147483647, %v592
    %vm634 = vcmp.eq.f32.partialorder %v633, 8.507059e+37
    %v635 = vand.u32 %v592, 2147483648
    %v636 = vor.u32 1.1754944e-38, %v635
    %v637 = vsel %vm634, %v636, %v632
    %v638 = vmul.f32 1.0, %v637
    %v639 = vrcp.pop %v593
    %v640 = vmul.f32 %v593, %v639
    %v641 = vsub.f32 1.0, %v640
    %v642 = vmul.f32 %v639, %v641
    %v643 = vadd.f32 %v639, %v642
    %vm644 = vweird.f32 %v593
    %vm645 = vweird.f32 %v639
    %vm646 = vmor %vm644, %vm645
    %v647 = vsel %vm646, %v639, %v643
    %v648 = vand.u32 2147483647, %v593
    %vm649 = vcmp.eq.f32.partialorder %v648, 8.507059e+37
    %v650 = vand.u32 %v593, 2147483648
    %v651 = vor.u32 1.1754944e-38, %v650
    %v652 = vsel %vm649, %v651, %v647
    %v653 = vmul.f32 1.0, %v652
    %v654 = vrcp.pop %v594
    %v655 = vmul.f32 %v594, %v654
    %v656 = vsub.f32 1.0, %v655
    %v657 = vmul.f32 %v654, %v656
    %v658 = vadd.f32 %v654, %v657
    %vm659 = vweird.f32 %v594
    %vm660 = vweird.f32 %v654
    %vm661 = vmor %vm659, %vm660
    %v662 = vsel %vm661, %v654, %v658
    %v663 = vand.u32 2147483647, %v594
    %vm664 = vcmp.eq.f32.partialorder %v663, 8.507059e+37
    %v665 = vand.u32 %v594, 2147483648
    %v666 = vor.u32 1.1754944e-38, %v665
    %v667 = vsel %vm664, %v666, %v662
    %v668 = vmul.f32 1.0, %v667
    %v669 = vrcp.pop %v595
    %v670 = vmul.f32 %v595, %v669
    %v671 = vsub.f32 1.0, %v670
    %v672 = vmul.f32 %v669, %v671
    %v673 = vadd.f32 %v669, %v672
    %vm674 = vweird.f32 %v595
    %vm675 = vweird.f32 %v669
    %vm676 = vmor %vm674, %vm675
    %v677 = vsel %vm676, %v669, %v673
    %v678 = vand.u32 2147483647, %v595
    %vm679 = vcmp.eq.f32.partialorder %v678, 8.507059e+37
    %v680 = vand.u32 %v595, 2147483648
    %v681 = vor.u32 1.1754944e-38, %v680
    %v682 = vsel %vm679, %v681, %v677
    %v683 = vmul.f32 1.0, %v682
    %v684 = vrcp.pop %v596
    %v685 = vmul.f32 %v596, %v684
    %v686 = vsub.f32 1.0, %v685
    %v687 = vmul.f32 %v684, %v686
    %v688 = vadd.f32 %v684, %v687
    %vm689 = vweird.f32 %v596
    %vm690 = vweird.f32 %v684
    %vm691 = vmor %vm689, %vm690
    %v692 = vsel %vm691, %v684, %v688
    %v693 = vand.u32 2147483647, %v596
    %vm694 = vcmp.eq.f32.partialorder %v693, 8.507059e+37
    %v695 = vand.u32 %v596, 2147483648
    %v696 = vor.u32 1.1754944e-38, %v695
    %v697 = vsel %vm694, %v696, %v692
    %v698 = vmul.f32 1.0, %v697
    %v699 = vrcp.pop %v597
    %v700 = vmul.f32 %v597, %v699
    %v701 = vsub.f32 1.0, %v700
    %v702 = vmul.f32 %v699, %v701
    %v703 = vadd.f32 %v699, %v702
    %vm704 = vweird.f32 %v597
    %vm705 = vweird.f32 %v699
    %vm706 = vmor %vm704, %vm705
    %v707 = vsel %vm706, %v699, %v703
    %v708 = vand.u32 2147483647, %v597
    %vm709 = vcmp.eq.f32.partialorder %v708, 8.507059e+37
    %v710 = vand.u32 %v597, 2147483648
    %v711 = vor.u32 1.1754944e-38, %v710
    %v712 = vsel %vm709, %v711, %v707
    %v713 = vmul.f32 1.0, %v712
    %v714 = vrcp.pop %v598
    %v715 = vmul.f32 %v598, %v714
    %v716 = vsub.f32 1.0, %v715
    %v717 = vmul.f32 %v714, %v716
    %v718 = vadd.f32 %v714, %v717
    %vm719 = vweird.f32 %v598
    %vm720 = vweird.f32 %v714
    %vm721 = vmor %vm719, %vm720
    %v722 = vsel %vm721, %v714, %v718
    %v723 = vand.u32 2147483647, %v598
    %vm724 = vcmp.eq.f32.partialorder %v723, 8.507059e+37
    %v725 = vand.u32 %v598, 2147483648
    %v726 = vor.u32 1.1754944e-38, %v725
    %v727 = vsel %vm724, %v726, %v722
    %v728 = vmul.f32 1.0, %v727
    %v729 = vrcp.pop %v599
    %v730 = vmul.f32 %v599, %v729
    %v731 = vsub.f32 1.0, %v730
    %v732 = vmul.f32 %v729, %v731
    %v733 = vadd.f32 %v729, %v732
    %vm734 = vweird.f32 %v599
    %vm735 = vweird.f32 %v729
    %vm736 = vmor %vm734, %vm735
    %v737 = vsel %vm736, %v729, %v733
    %v738 = vand.u32 2147483647, %v599
    %vm739 = vcmp.eq.f32.partialorder %v738, 8.507059e+37
    %v740 = vand.u32 %v599, 2147483648
    %v741 = vor.u32 1.1754944e-38, %v740
    %v742 = vsel %vm739, %v741, %v737
    %v743 = vmul.f32 1.0, %v742
    %v744 = vrcp.pop %v600
    %v745 = vmul.f32 %v600, %v744
    %v746 = vsub.f32 1.0, %v745
    %v747 = vmul.f32 %v744, %v746
    %v748 = vadd.f32 %v744, %v747
    %vm749 = vweird.f32 %v600
    %vm750 = vweird.f32 %v744
    %vm751 = vmor %vm749, %vm750
    %v752 = vsel %vm751, %v744, %v748
    %v753 = vand.u32 2147483647, %v600
    %vm754 = vcmp.eq.f32.partialorder %v753, 8.507059e+37
    %v755 = vand.u32 %v600, 2147483648
    %v756 = vor.u32 1.1754944e-38, %v755
    %v757 = vsel %vm754, %v756, %v752
    %v758 = vmul.f32 1.0, %v757
    %v759 = vrcp.pop %v601
    %v760 = vmul.f32 %v601, %v759
    %v761 = vsub.f32 1.0, %v760
    %v762 = vmul.f32 %v759, %v761
    %v763 = vadd.f32 %v759, %v762
    %vm764 = vweird.f32 %v601
    %vm765 = vweird.f32 %v759
    %vm766 = vmor %vm764, %vm765
    %v767 = vsel %vm766, %v759, %v763
    %v768 = vand.u32 2147483647, %v601
    %vm769 = vcmp.eq.f32.partialorder %v768, 8.507059e+37
    %v770 = vand.u32 %v601, 2147483648
    %v771 = vor.u32 1.1754944e-38, %v770
    %v772 = vsel %vm769, %v771, %v767
    %v773 = vmul.f32 1.0, %v772
    %v774 = vrcp.pop %v602
    %v775 = vmul.f32 %v602, %v774
    %v776 = vsub.f32 1.0, %v775
    %v777 = vmul.f32 %v774, %v776
    %v778 = vadd.f32 %v774, %v777
    %vm779 = vweird.f32 %v602
    %vm780 = vweird.f32 %v774
    %vm781 = vmor %vm779, %vm780
    %v782 = vsel %vm781, %v774, %v778
    %v783 = vand.u32 2147483647, %v602
    %vm784 = vcmp.eq.f32.partialorder %v783, 8.507059e+37
    %v785 = vand.u32 %v602, 2147483648
    %v786 = vor.u32 1.1754944e-38, %v785
    %v787 = vsel %vm784, %v786, %v782
    %v788 = vmul.f32 1.0, %v787
    %v789 = vrcp.pop %v603
    %v790 = vmul.f32 %v603, %v789
    %v791 = vsub.f32 1.0, %v790
    %v792 = vmul.f32 %v789, %v791
    %v793 = vadd.f32 %v789, %v792
    %vm794 = vweird.f32 %v603
    %vm795 = vweird.f32 %v789
    %vm796 = vmor %vm794, %vm795
    %v797 = vsel %vm796, %v789, %v793
    %v798 = vand.u32 2147483647, %v603
    %vm799 = vcmp.eq.f32.partialorder %v798, 8.507059e+37
    %v800 = vand.u32 %v603, 2147483648
    %v801 = vor.u32 1.1754944e-38, %v800
    %v802 = vsel %vm799, %v801, %v797
    %v803 = vmul.f32 1.0, %v802
    %v804 = vrcp.pop %v604
    %v805 = vmul.f32 %v604, %v804
    %v806 = vsub.f32 1.0, %v805
    %v807 = vmul.f32 %v804, %v806
    %v808 = vadd.f32 %v804, %v807
    %vm809 = vweird.f32 %v604
    %vm810 = vweird.f32 %v804
    %vm811 = vmor %vm809, %vm810
    %v812 = vsel %vm811, %v804, %v808
    %v813 = vand.u32 2147483647, %v604
    %vm814 = vcmp.eq.f32.partialorder %v813, 8.507059e+37
    %v815 = vand.u32 %v604, 2147483648
    %v816 = vor.u32 1.1754944e-38, %v815
    %v817 = vsel %vm814, %v816, %v812
    %v818 = vmul.f32 1.0, %v817
    %v819 = vrcp.pop %v605
    %v820 = vmul.f32 %v605, %v819
    %v821 = vsub.f32 1.0, %v820
    %v822 = vmul.f32 %v819, %v821
    %v823 = vadd.f32 %v819, %v822
    %vm824 = vweird.f32 %v605
    %vm825 = vweird.f32 %v819
    %vm826 = vmor %vm824, %vm825
    %v827 = vsel %vm826, %v819, %v823
    %v828 = vand.u32 2147483647, %v605
    %vm829 = vcmp.eq.f32.partialorder %v828, 8.507059e+37
    %v830 = vand.u32 %v605, 2147483648
    %v831 = vor.u32 1.1754944e-38, %v830
    %v832 = vsel %vm829, %v831, %v827
    %v833 = vmul.f32 1.0, %v832
    %v834 = vrcp.pop %v606
    %v835 = vmul.f32 %v606, %v834
    %v836 = vsub.f32 1.0, %v835
    %v837 = vmul.f32 %v834, %v836
    %v838 = vadd.f32 %v834, %v837
    %vm839 = vweird.f32 %v606
    %vm840 = vweird.f32 %v834
    %vm841 = vmor %vm839, %vm840
    %v842 = vsel %vm841, %v834, %v838
    %v843 = vand.u32 2147483647, %v606
    %vm844 = vcmp.eq.f32.partialorder %v843, 8.507059e+37
    %v845 = vand.u32 %v606, 2147483648
    %v846 = vor.u32 1.1754944e-38, %v845
    %v847 = vsel %vm844, %v846, %v842
    %v848 = vmul.f32 1.0, %v847
    %v849 = vrcp.pop %v607
    %v850 = vmul.f32 %v607, %v849
    %v851 = vsub.f32 1.0, %v850
    %v852 = vmul.f32 %v849, %v851
    %v853 = vadd.f32 %v849, %v852
    %vm854 = vweird.f32 %v607
    %vm855 = vweird.f32 %v849
    %vm856 = vmor %vm854, %vm855
    %v857 = vsel %vm856, %v849, %v853
    %v858 = vand.u32 2147483647, %v607
    %vm859 = vcmp.eq.f32.partialorder %v858, 8.507059e+37
    %v860 = vand.u32 %v607, 2147483648
    %v861 = vor.u32 1.1754944e-38, %v860
    %v862 = vsel %vm859, %v861, %v857
    %v863 = vmul.f32 1.0, %v862
    %v864 = vrcp.pop %v608
    %v865 = vmul.f32 %v608, %v864
    %v866 = vsub.f32 1.0, %v865
    %v867 = vmul.f32 %v864, %v866
    %v868 = vadd.f32 %v864, %v867
    %vm869 = vweird.f32 %v608
    %vm870 = vweird.f32 %v864
    %vm871 = vmor %vm869, %vm870
    %v872 = vsel %vm871, %v864, %v868
    %v873 = vand.u32 2147483647, %v608
    %vm874 = vcmp.eq.f32.partialorder %v873, 8.507059e+37
    %v875 = vand.u32 %v608, 2147483648
    %v876 = vor.u32 1.1754944e-38, %v875
    %v877 = vsel %vm874, %v876, %v872
    %v878 = vmul.f32 1.0, %v877
    %v879 = vrcp.pop %v609
    %v880 = vmul.f32 %v609, %v879
    %v881 = vsub.f32 1.0, %v880
    %v882 = vmul.f32 %v879, %v881
    %v883 = vadd.f32 %v879, %v882
    %vm884 = vweird.f32 %v609
    %vm885 = vweird.f32 %v879
    %vm886 = vmor %vm884, %vm885
    %v887 = vsel %vm886, %v879, %v883
    %v888 = vand.u32 2147483647, %v609
    %vm889 = vcmp.eq.f32.partialorder %v888, 8.507059e+37
    %v890 = vand.u32 %v609, 2147483648
    %v891 = vor.u32 1.1754944e-38, %v890
    %v892 = vsel %vm889, %v891, %v887
    %v893 = vmul.f32 1.0, %v892
    %v894 = vrcp.pop %v610
    %v895 = vmul.f32 %v610, %v894
    %v896 = vsub.f32 1.0, %v895
    %v897 = vmul.f32 %v894, %v896
    %v898 = vadd.f32 %v894, %v897
    %vm899 = vweird.f32 %v610
    %vm900 = vweird.f32 %v894
    %vm901 = vmor %vm899, %vm900
    %v902 = vsel %vm901, %v894, %v898
    %v903 = vand.u32 2147483647, %v610
    %vm904 = vcmp.eq.f32.partialorder %v903, 8.507059e+37
    %v905 = vand.u32 %v610, 2147483648
    %v906 = vor.u32 1.1754944e-38, %v905
    %v907 = vsel %vm904, %v906, %v902
    %v908 = vmul.f32 1.0, %v907
    %v909 = vrcp.pop %v611
    %v910 = vmul.f32 %v611, %v909
    %v911 = vsub.f32 1.0, %v910
    %v912 = vmul.f32 %v909, %v911
    %v913 = vadd.f32 %v909, %v912
    %vm914 = vweird.f32 %v611
    %vm915 = vweird.f32 %v909
    %vm916 = vmor %vm914, %vm915
    %v917 = vsel %vm916, %v909, %v913
    %v918 = vand.u32 2147483647, %v611
    %vm919 = vcmp.eq.f32.partialorder %v918, 8.507059e+37
    %v920 = vand.u32 %v611, 2147483648
    %v921 = vor.u32 1.1754944e-38, %v920
    %v922 = vsel %vm919, %v921, %v917
    %v923 = vmul.f32 1.0, %v922
    %v924 = vrcp.pop %v612
    %v925 = vmul.f32 %v612, %v924
    %v926 = vsub.f32 1.0, %v925
    %v927 = vmul.f32 %v924, %v926
    %v928 = vadd.f32 %v924, %v927
    %vm929 = vweird.f32 %v612
    %vm930 = vweird.f32 %v924
    %vm931 = vmor %vm929, %vm930
    %v932 = vsel %vm931, %v924, %v928
    %v933 = vand.u32 2147483647, %v612
    %vm934 = vcmp.eq.f32.partialorder %v933, 8.507059e+37
    %v935 = vand.u32 %v612, 2147483648
    %v936 = vor.u32 1.1754944e-38, %v935
    %v937 = vsel %vm934, %v936, %v932
    %v938 = vmul.f32 1.0, %v937
    %v939 = vrcp.pop %v613
    %v940 = vmul.f32 %v613, %v939
    %v941 = vsub.f32 1.0, %v940
    %v942 = vmul.f32 %v939, %v941
    %v943 = vadd.f32 %v939, %v942
    %vm944 = vweird.f32 %v613
    %vm945 = vweird.f32 %v939
    %vm946 = vmor %vm944, %vm945
    %v947 = vsel %vm946, %v939, %v943
    %v948 = vand.u32 2147483647, %v613
    %vm949 = vcmp.eq.f32.partialorder %v948, 8.507059e+37
    %v950 = vand.u32 %v613, 2147483648
    %v951 = vor.u32 1.1754944e-38, %v950
    %v952 = vsel %vm949, %v951, %v947
    %v953 = vmul.f32 1.0, %v952
    %v954 = vrcp.pop %v614
    %v955 = vmul.f32 %v614, %v954
    %v956 = vsub.f32 1.0, %v955
    %v957 = vmul.f32 %v954, %v956
    %v958 = vadd.f32 %v954, %v957
    %vm959 = vweird.f32 %v614
    %vm960 = vweird.f32 %v954
    %vm961 = vmor %vm959, %vm960
    %v962 = vsel %vm961, %v954, %v958
    %v963 = vand.u32 2147483647, %v614
    %vm964 = vcmp.eq.f32.partialorder %v963, 8.507059e+37
    %v965 = vand.u32 %v614, 2147483648
    %v966 = vor.u32 1.1754944e-38, %v965
    %v967 = vsel %vm964, %v966, %v962
    %v968 = vmul.f32 1.0, %v967
    %v969 = vrcp.pop %v615
    %v970 = vmul.f32 %v615, %v969
    %v971 = vsub.f32 1.0, %v970
    %v972 = vmul.f32 %v969, %v971
    %v973 = vadd.f32 %v969, %v972
    %vm974 = vweird.f32 %v615
    %vm975 = vweird.f32 %v969
    %vm976 = vmor %vm974, %vm975
    %v977 = vsel %vm976, %v969, %v973
    %v978 = vand.u32 2147483647, %v615
    %vm979 = vcmp.eq.f32.partialorder %v978, 8.507059e+37
    %v980 = vand.u32 %v615, 2147483648
    %v981 = vor.u32 1.1754944e-38, %v980
    %v982 = vsel %vm979, %v981, %v977
    %v983 = vmul.f32 1.0, %v982
    %v984 = vrcp.pop %v616
    %v985 = vmul.f32 %v616, %v984
    %v986 = vsub.f32 1.0, %v985
    %v987 = vmul.f32 %v984, %v986
    %v988 = vadd.f32 %v984, %v987
    %vm989 = vweird.f32 %v616
    %vm990 = vweird.f32 %v984
    %vm991 = vmor %vm989, %vm990
    %v992 = vsel %vm991, %v984, %v988
    %v993 = vand.u32 2147483647, %v616
    %vm994 = vcmp.eq.f32.partialorder %v993, 8.507059e+37
    %v995 = vand.u32 %v616, 2147483648
    %v996 = vor.u32 1.1754944e-38, %v995
    %v997 = vsel %vm994, %v996, %v992
    %v998 = vmul.f32 1.0, %v997
    %v999 = vrcp.pop %v617
    %v1000 = vmul.f32 %v617, %v999
    %v1001 = vsub.f32 1.0, %v1000
    %v1002 = vmul.f32 %v999, %v1001
    %v1003 = vadd.f32 %v999, %v1002
    %vm1004 = vweird.f32 %v617
    %vm1005 = vweird.f32 %v999
    %vm1006 = vmor %vm1004, %vm1005
    %v1007 = vsel %vm1006, %v999, %v1003
    %v1008 = vand.u32 2147483647, %v617
    %vm1009 = vcmp.eq.f32.partialorder %v1008, 8.507059e+37
    %v1010 = vand.u32 %v617, 2147483648
    %v1011 = vor.u32 1.1754944e-38, %v1010
    %v1012 = vsel %vm1009, %v1011, %v1007
    %v1013 = vmul.f32 1.0, %v1012
    %v1014 = vrcp.pop %v618
    %v1015 = vmul.f32 %v618, %v1014
    %v1016 = vsub.f32 1.0, %v1015
    %v1017 = vmul.f32 %v1014, %v1016
    %v1018 = vadd.f32 %v1014, %v1017
    %vm1019 = vweird.f32 %v618
    %vm1020 = vweird.f32 %v1014
    %vm1021 = vmor %vm1019, %vm1020
    %v1022 = vsel %vm1021, %v1014, %v1018
    %v1023 = vand.u32 2147483647, %v618
    %vm1024 = vcmp.eq.f32.partialorder %v1023, 8.507059e+37
    %v1025 = vand.u32 %v618, 2147483648
    %v1026 = vor.u32 1.1754944e-38, %v1025
    %v1027 = vsel %vm1024, %v1026, %v1022
    %v1028 = vmul.f32 1.0, %v1027
    %v1029 = vrcp.pop %v619
    %v1030 = vmul.f32 %v619, %v1029
    %v1031 = vsub.f32 1.0, %v1030
    %v1032 = vmul.f32 %v1029, %v1031
    %v1033 = vadd.f32 %v1029, %v1032
    %vm1034 = vweird.f32 %v619
    %vm1035 = vweird.f32 %v1029
    %vm1036 = vmor %vm1034, %vm1035
    %v1037 = vsel %vm1036, %v1029, %v1033
    %v1038 = vand.u32 2147483647, %v619
    %vm1039 = vcmp.eq.f32.partialorder %v1038, 8.507059e+37
    %v1040 = vand.u32 %v619, 2147483648
    %v1041 = vor.u32 1.1754944e-38, %v1040
    %v1042 = vsel %vm1039, %v1041, %v1037
    %v1043 = vmul.f32 1.0, %v1042
    %v1044 = vrcp.pop %v620
    %v1045 = vmul.f32 %v620, %v1044
    %v1046 = vsub.f32 1.0, %v1045
    %v1047 = vmul.f32 %v1044, %v1046
    %v1048 = vadd.f32 %v1044, %v1047
    %vm1049 = vweird.f32 %v620
    %vm1050 = vweird.f32 %v1044
    %vm1051 = vmor %vm1049, %vm1050
    %v1052 = vsel %vm1051, %v1044, %v1048
    %v1053 = vand.u32 2147483647, %v620
    %vm1054 = vcmp.eq.f32.partialorder %v1053, 8.507059e+37
    %v1055 = vand.u32 %v620, 2147483648
    %v1056 = vor.u32 1.1754944e-38, %v1055
    %v1057 = vsel %vm1054, %v1056, %v1052
    %v1058 = vmul.f32 1.0, %v1057
    %v1059 = vrcp.pop %v621
    %v1060 = vmul.f32 %v621, %v1059
    %v1061 = vsub.f32 1.0, %v1060
    %v1062 = vmul.f32 %v1059, %v1061
    %v1063 = vadd.f32 %v1059, %v1062
    %vm1064 = vweird.f32 %v621
    %vm1065 = vweird.f32 %v1059
    %vm1066 = vmor %vm1064, %vm1065
    %v1067 = vsel %vm1066, %v1059, %v1063
    %v1068 = vand.u32 2147483647, %v621
    %vm1069 = vcmp.eq.f32.partialorder %v1068, 8.507059e+37
    %v1070 = vand.u32 %v621, 2147483648
    %v1071 = vor.u32 1.1754944e-38, %v1070
    %v1072 = vsel %vm1069, %v1071, %v1067
    %v1073 = vmul.f32 1.0, %v1072
    %v1074 = vrcp.pop %v622
    %v1075 = vmul.f32 %v622, %v1074
    %v1076 = vsub.f32 1.0, %v1075
    %v1077 = vmul.f32 %v1074, %v1076
    %v1078 = vadd.f32 %v1074, %v1077
    %vm1079 = vweird.f32 %v622
    %vm1080 = vweird.f32 %v1074
    %vm1081 = vmor %vm1079, %vm1080
    %v1082 = vsel %vm1081, %v1074, %v1078
    %v1083 = vand.u32 2147483647, %v622
    %vm1084 = vcmp.eq.f32.partialorder %v1083, 8.507059e+37
    %v1085 = vand.u32 %v622, 2147483648
    %v1086 = vor.u32 1.1754944e-38, %v1085
    %v1087 = vsel %vm1084, %v1086, %v1082
    %v1088 = vmul.f32 1.0, %v1087
    %v1089 = vrcp.pop %v623
    %v1090 = vmul.f32 %v623, %v1089
    %v1091 = vsub.f32 1.0, %v1090
    %v1092 = vmul.f32 %v1089, %v1091
    %v1093 = vadd.f32 %v1089, %v1092
    %vm1094 = vweird.f32 %v623
    %vm1095 = vweird.f32 %v1089
    %vm1096 = vmor %vm1094, %vm1095
    %v1097 = vsel %vm1096, %v1089, %v1093
    %v1098 = vand.u32 2147483647, %v623
    %vm1099 = vcmp.eq.f32.partialorder %v1098, 8.507059e+37
    %v1100 = vand.u32 %v623, 2147483648
    %v1101 = vor.u32 1.1754944e-38, %v1100
    %v1102 = vsel %vm1099, %v1101, %v1097
    %v1103 = vmul.f32 1.0, %v1102
    %v1104 = vmul.f32 %v264, %v638
    %v1105 = vmul.f32 %v266, %v653
    %v1106 = vmul.f32 %v269, %v668
    %v1107 = vmul.f32 %v271, %v683
    %v1108 = vmul.f32 %v274, %v698
    %v1109 = vmul.f32 %v276, %v713
    %v1110 = vmul.f32 %v279, %v728
    %v1111 = vmul.f32 %v281, %v743
    %v1112 = vmul.f32 %v284, %v758
    %v1113 = vmul.f32 %v286, %v773
    %v1114 = vmul.f32 %v289, %v788
    %v1115 = vmul.f32 %v291, %v803
    %v1116 = vmul.f32 %v294, %v818
    %v1117 = vmul.f32 %v296, %v833
    %v1118 = vmul.f32 %v299, %v848
    %v1119 = vmul.f32 %v301, %v863
    %v1120 = vmul.f32 %v304, %v878
    %v1121 = vmul.f32 %v306, %v893
    %v1122 = vmul.f32 %v309, %v908
    %v1123 = vmul.f32 %v311, %v923
    %v1124 = vmul.f32 %v314, %v938
    %v1125 = vmul.f32 %v316, %v953
    %v1126 = vmul.f32 %v319, %v968
    %v1127 = vmul.f32 %v321, %v983
    %v1128 = vmul.f32 %v324, %v998
    %v1129 = vmul.f32 %v326, %v1013
    %v1130 = vmul.f32 %v329, %v1028
    %v1131 = vmul.f32 %v331, %v1043
    %v1132 = vmul.f32 %v334, %v1058
    %v1133 = vmul.f32 %v336, %v1073
    %v1134 = vmul.f32 %v339, %v1088
    %v1135 = vmul.f32 %v341, %v1103
    %v1136 = vmul.f32 %v1104, %v417
    %v1137 = vmul.f32 %v1105, %v419
    %v1138 = vmul.f32 %v1106, %v422
    %v1139 = vmul.f32 %v1107, %v424
    %v1140 = vmul.f32 %v1108, %v427
    %v1141 = vmul.f32 %v1109, %v429
    %v1142 = vmul.f32 %v1110, %v432
    %v1143 = vmul.f32 %v1111, %v434
    %v1144 = vmul.f32 %v1112, %v437
    %v1145 = vmul.f32 %v1113, %v439
    %v1146 = vmul.f32 %v1114, %v442
    %v1147 = vmul.f32 %v1115, %v444
    %v1148 = vmul.f32 %v1116, %v447
    %v1149 = vmul.f32 %v1117, %v449
    %v1150 = vmul.f32 %v1118, %v452
    %v1151 = vmul.f32 %v1119, %v454
    %v1152 = vmul.f32 %v1120, %v457
    %v1153 = vmul.f32 %v1121, %v459
    %v1154 = vmul.f32 %v1122, %v462
    %v1155 = vmul.f32 %v1123, %v464
    %v1156 = vmul.f32 %v1124, %v467
    %v1157 = vmul.f32 %v1125, %v469
    %v1158 = vmul.f32 %v1126, %v472
    %v1159 = vmul.f32 %v1127, %v474
    %v1160 = vmul.f32 %v1128, %v477
    %v1161 = vmul.f32 %v1129, %v479
    %v1162 = vmul.f32 %v1130, %v482
    %v1163 = vmul.f32 %v1131, %v484
    %v1164 = vmul.f32 %v1132, %v487
    %v1165 = vmul.f32 %v1133, %v489
    %v1166 = vmul.f32 %v1134, %v492
    %v1167 = vmul.f32 %v1135, %v494
    %v1168 = vpack.c.bf16 %v1137, %v1136
    %v1169 = vpack.c.bf16 %v1139, %v1138
    %v1170 = vpack.c.bf16 %v1141, %v1140
    %v1171 = vpack.c.bf16 %v1143, %v1142
    %v1172 = vpack.c.bf16 %v1145, %v1144
    %v1173 = vpack.c.bf16 %v1147, %v1146
    %v1174 = vpack.c.bf16 %v1149, %v1148
    %v1175 = vpack.c.bf16 %v1151, %v1150
    %v1176 = vpack.c.bf16 %v1153, %v1152
    %v1177 = vpack.c.bf16 %v1155, %v1154
    %v1178 = vpack.c.bf16 %v1157, %v1156
    %v1179 = vpack.c.bf16 %v1159, %v1158
    %v1180 = vpack.c.bf16 %v1161, %v1160
    %v1181 = vpack.c.bf16 %v1163, %v1162
    %v1182 = vpack.c.bf16 %v1165, %v1164
    %v1183 = vpack.c.bf16 %v1167, %v1166
    %v1184 = vld [vmem:[#allocation7] sm:$0xf]
    %v1185 = vld [vmem:[#allocation7 + $0x4] sm:$0xf]
    %v1186 = vld [vmem:[#allocation7 + $0x8] sm:$0xf]
    %v1187 = vld [vmem:[#allocation7 + $0xc] sm:$0xf]
    %v1188 = vld [vmem:[#allocation7 + $0x10] sm:$0xf]
    %v1189 = vld [vmem:[#allocation7 + $0x14] sm:$0xf]
    %v1190 = vld [vmem:[#allocation7 + $0x18] sm:$0xf]
    %v1191 = vld [vmem:[#allocation7 + $0x1c] sm:$0xf]
    %v1192 = vld [vmem:[#allocation7 + $0x20] sm:$0xf]
    %v1193 = vld [vmem:[#allocation7 + $0x24] sm:$0xf]
    %v1194 = vld [vmem:[#allocation7 + $0x28] sm:$0xf]
    %v1195 = vld [vmem:[#allocation7 + $0x2c] sm:$0xf]
    %v1196 = vld [vmem:[#allocation7 + $0x30] sm:$0xf]
    %v1197 = vld [vmem:[#allocation7 + $0x34] sm:$0xf]
    %v1198 = vld [vmem:[#allocation7 + $0x38] sm:$0xf]
    %v1199 = vld [vmem:[#allocation7 + $0x3c] sm:$0xf]
    %v1200 = vld [vmem:[#allocation5 + $0x4] sm:$0xf]
    %v1201 = vld [vmem:[#allocation5 + $0x1c] sm:$0xf]
    %v1202 = vld [vmem:[#allocation5 + $0x34] sm:$0xf]
    %v1203 = vld [vmem:[#allocation5 + $0x4c] sm:$0xf]
    %v1204 = vld [vmem:[#allocation5 + $0x64] sm:$0xf]
    %v1205 = vld [vmem:[#allocation5 + $0x7c] sm:$0xf]
    %v1206 = vld [vmem:[#allocation5 + $0x94] sm:$0xf]
    %v1207 = vld [vmem:[#allocation5 + $0xac] sm:$0xf]
    %v1208 = vld [vmem:[#allocation5 + $0xc4] sm:$0xf]
    %v1209 = vld [vmem:[#allocation5 + $0xdc] sm:$0xf]
    %v1210 = vld [vmem:[#allocation5 + $0xf4] sm:$0xf]
    %v1211 = vld [vmem:[#allocation5 + $0x10c] sm:$0xf]
    %v1212 = vld [vmem:[#allocation5 + $0x124] sm:$0xf]
    %v1213 = vld [vmem:[#allocation5 + $0x13c] sm:$0xf]
    %v1214 = vld [vmem:[#allocation5 + $0x154] sm:$0xf]
    %v1215 = vld [vmem:[#allocation5 + $0x16c] sm:$0xf]
    %v1232 = vunpack.c.l.b16 %v1200
    %v1233 = vunpack.c.l.b16 %v1201
    %v1234 = vunpack.c.l.b16 %v1202
    %v1235 = vunpack.c.l.b16 %v1203
    %v1236 = vunpack.c.l.b16 %v1204
    %v1237 = vunpack.c.l.b16 %v1205
    %v1238 = vunpack.c.l.b16 %v1206
    %v1239 = vunpack.c.l.b16 %v1207
    %v1240 = vunpack.c.l.b16 %v1208
    %v1241 = vunpack.c.l.b16 %v1209
    %v1242 = vunpack.c.l.b16 %v1210
    %v1243 = vunpack.c.l.b16 %v1211
    %v1244 = vunpack.c.l.b16 %v1212
    %v1245 = vunpack.c.l.b16 %v1213
    %v1246 = vunpack.c.l.b16 %v1214
    %v1247 = vunpack.c.l.b16 %v1215
    %v1248 = vpack.c.b16 %v1233, %v1232
    %v1249 = vpack.c.b16 %v1235, %v1234
    %v1250 = vpack.c.b16 %v1237, %v1236
    %v1251 = vpack.c.b16 %v1239, %v1238
    %v1252 = vpack.c.b16 %v1241, %v1240
    %v1253 = vpack.c.b16 %v1243, %v1242
    %v1254 = vpack.c.b16 %v1245, %v1244
    %v1255 = vpack.c.b16 %v1247, %v1246
    %1264 = vmatpush.bf16.msra.mxu0 %v1255
    %1265 = vmatpush.bf16.msra.mxu0 %v1254
    %1266 = vmatpush.bf16.msra.mxu0 %v1253
    %1267 = vmatpush.bf16.msra.mxu0 %v1252
    %1268 = vmatpush.bf16.msra.mxu0 %v1251
    %1269 = vmatpush.bf16.msra.mxu0 %v1250
    %1270 = vmatpush.bf16.msra.mxu0 %v1249
    %1271 = vmatpush.bf16.msra.mxu0 %v1248
    %1272 = vmatmul.bf16.gmra.mxu0 %v174
    %v1273 = vpop.f32.mrf.mxu0
    %v1274 = vadd.f32 0.0, %v1273
    %v1275 = vpop.f32.mrf.mxu0
    %v1276 = vadd.f32 0.0, %v1275
    %1277 = vmatmul.bf16.gmra.mxu0 %v175
    %v1278 = vpop.f32.mrf.mxu0
    %v1279 = vadd.f32 0.0, %v1278
    %v1280 = vpop.f32.mrf.mxu0
    %v1281 = vadd.f32 0.0, %v1280
    %1282 = vmatmul.bf16.gmra.mxu0 %v176
    %v1283 = vpop.f32.mrf.mxu0
    %v1284 = vadd.f32 0.0, %v1283
    %v1285 = vpop.f32.mrf.mxu0
    %v1286 = vadd.f32 0.0, %v1285
    %1287 = vmatmul.bf16.gmra.mxu0 %v177
    %v1288 = vpop.f32.mrf.mxu0
    %v1289 = vadd.f32 0.0, %v1288
    %v1290 = vpop.f32.mrf.mxu0
    %v1291 = vadd.f32 0.0, %v1290
    %1292 = vmatmul.bf16.gmra.mxu0 %v178
    %v1293 = vpop.f32.mrf.mxu0
    %v1294 = vadd.f32 0.0, %v1293
    %v1295 = vpop.f32.mrf.mxu0
    %v1296 = vadd.f32 0.0, %v1295
    %1297 = vmatmul.bf16.gmra.mxu0 %v179
    %v1298 = vpop.f32.mrf.mxu0
    %v1299 = vadd.f32 0.0, %v1298
    %v1300 = vpop.f32.mrf.mxu0
    %v1301 = vadd.f32 0.0, %v1300
    %1302 = vmatmul.bf16.gmra.mxu0 %v180
    %v1303 = vpop.f32.mrf.mxu0
    %v1304 = vadd.f32 0.0, %v1303
    %v1305 = vpop.f32.mrf.mxu0
    %v1306 = vadd.f32 0.0, %v1305
    %1307 = vmatmul.bf16.gmra.mxu0 %v181
    %v1308 = vpop.f32.mrf.mxu0
    %v1309 = vadd.f32 0.0, %v1308
    %v1310 = vpop.f32.mrf.mxu0
    %v1311 = vadd.f32 0.0, %v1310
    %1312 = vmatmul.bf16.gmra.mxu0 %v182
    %v1313 = vpop.f32.mrf.mxu0
    %v1314 = vadd.f32 0.0, %v1313
    %v1315 = vpop.f32.mrf.mxu0
    %v1316 = vadd.f32 0.0, %v1315
    %1317 = vmatmul.bf16.gmra.mxu0 %v183
    %v1318 = vpop.f32.mrf.mxu0
    %v1319 = vadd.f32 0.0, %v1318
    %v1320 = vpop.f32.mrf.mxu0
    %v1321 = vadd.f32 0.0, %v1320
    %1322 = vmatmul.bf16.gmra.mxu0 %v184
    %v1323 = vpop.f32.mrf.mxu0
    %v1324 = vadd.f32 0.0, %v1323
    %v1325 = vpop.f32.mrf.mxu0
    %v1326 = vadd.f32 0.0, %v1325
    %1327 = vmatmul.bf16.gmra.mxu0 %v185
    %v1328 = vpop.f32.mrf.mxu0
    %v1329 = vadd.f32 0.0, %v1328
    %v1330 = vpop.f32.mrf.mxu0
    %v1331 = vadd.f32 0.0, %v1330
    %1332 = vmatmul.bf16.gmra.mxu0 %v186
    %v1333 = vpop.f32.mrf.mxu0
    %v1334 = vadd.f32 0.0, %v1333
    %v1335 = vpop.f32.mrf.mxu0
    %v1336 = vadd.f32 0.0, %v1335
    %1337 = vmatmul.bf16.gmra.mxu0 %v187
    %v1338 = vpop.f32.mrf.mxu0
    %v1339 = vadd.f32 0.0, %v1338
    %v1340 = vpop.f32.mrf.mxu0
    %v1341 = vadd.f32 0.0, %v1340
    %1342 = vmatmul.bf16.gmra.mxu0 %v188
    %v1343 = vpop.f32.mrf.mxu0
    %v1344 = vadd.f32 0.0, %v1343
    %v1345 = vpop.f32.mrf.mxu0
    %v1346 = vadd.f32 0.0, %v1345
    %1347 = vmatmul.bf16.gmra.mxu0 %v189
    %v1348 = vpop.f32.mrf.mxu0
    %v1349 = vadd.f32 0.0, %v1348
    %v1350 = vpop.f32.mrf.mxu0
    %v1351 = vadd.f32 0.0, %v1350
    %1352 = vdwg.mxu0
    %v1353 = vld [vmem:[#allocation5 + $0x10] sm:$0xf]
    %v1354 = vld [vmem:[#allocation5 + $0x28] sm:$0xf]
    %v1355 = vld [vmem:[#allocation5 + $0x40] sm:$0xf]
    %v1356 = vld [vmem:[#allocation5 + $0x58] sm:$0xf]
    %v1357 = vld [vmem:[#allocation5 + $0x70] sm:$0xf]
    %v1358 = vld [vmem:[#allocation5 + $0x88] sm:$0xf]
    %v1359 = vld [vmem:[#allocation5 + $0xa0] sm:$0xf]
    %v1360 = vld [vmem:[#allocation5 + $0xb8] sm:$0xf]
    %v1361 = vld [vmem:[#allocation5 + $0xd0] sm:$0xf]
    %v1362 = vld [vmem:[#allocation5 + $0xe8] sm:$0xf]
    %v1363 = vld [vmem:[#allocation5 + $0x100] sm:$0xf]
    %v1364 = vld [vmem:[#allocation5 + $0x118] sm:$0xf]
    %v1365 = vld [vmem:[#allocation5 + $0x130] sm:$0xf]
    %v1366 = vld [vmem:[#allocation5 + $0x148] sm:$0xf]
    %v1367 = vld [vmem:[#allocation5 + $0x160] sm:$0xf]
    %v1368 = vld [vmem:[#allocation5 + $0x178] sm:$0xf]
    %v1385 = vunpack.c.l.b16 %v1353
    %v1386 = vunpack.c.l.b16 %v1354
    %v1387 = vunpack.c.l.b16 %v1355
    %v1388 = vunpack.c.l.b16 %v1356
    %v1389 = vunpack.c.l.b16 %v1357
    %v1390 = vunpack.c.l.b16 %v1358
    %v1391 = vunpack.c.l.b16 %v1359
    %v1392 = vunpack.c.l.b16 %v1360
    %v1393 = vunpack.c.l.b16 %v1361
    %v1394 = vunpack.c.l.b16 %v1362
    %v1395 = vunpack.c.l.b16 %v1363
    %v1396 = vunpack.c.l.b16 %v1364
    %v1397 = vunpack.c.l.b16 %v1365
    %v1398 = vunpack.c.l.b16 %v1366
    %v1399 = vunpack.c.l.b16 %v1367
    %v1400 = vunpack.c.l.b16 %v1368
    %v1401 = vpack.c.b16 %v1386, %v1385
    %v1402 = vpack.c.b16 %v1388, %v1387
    %v1403 = vpack.c.b16 %v1390, %v1389
    %v1404 = vpack.c.b16 %v1392, %v1391
    %v1405 = vpack.c.b16 %v1394, %v1393
    %v1406 = vpack.c.b16 %v1396, %v1395
    %v1407 = vpack.c.b16 %v1398, %v1397
    %v1408 = vpack.c.b16 %v1400, %v1399
    %1417 = vmatpush.bf16.msra.mxu0 %v1408
    %1418 = vmatpush.bf16.msra.mxu0 %v1407
    %1419 = vmatpush.bf16.msra.mxu0 %v1406
    %1420 = vmatpush.bf16.msra.mxu0 %v1405
    %1421 = vmatpush.bf16.msra.mxu0 %v1404
    %1422 = vmatpush.bf16.msra.mxu0 %v1403
    %1423 = vmatpush.bf16.msra.mxu0 %v1402
    %1424 = vmatpush.bf16.msra.mxu0 %v1401
    %1425 = vmatmul.bf16.gmra.mxu0 %v174
    %v1426 = vpop.f32.mrf.mxu0
    %v1427 = vadd.f32 0.0, %v1426
    %v1428 = vpop.f32.mrf.mxu0
    %v1429 = vadd.f32 0.0, %v1428
    %1430 = vmatmul.bf16.gmra.mxu0 %v175
    %v1431 = vpop.f32.mrf.mxu0
    %v1432 = vadd.f32 0.0, %v1431
    %v1433 = vpop.f32.mrf.mxu0
    %v1434 = vadd.f32 0.0, %v1433
    %1435 = vmatmul.bf16.gmra.mxu0 %v176
    %v1436 = vpop.f32.mrf.mxu0
    %v1437 = vadd.f32 0.0, %v1436
    %v1438 = vpop.f32.mrf.mxu0
    %v1439 = vadd.f32 0.0, %v1438
    %1440 = vmatmul.bf16.gmra.mxu0 %v177
    %v1441 = vpop.f32.mrf.mxu0
    %v1442 = vadd.f32 0.0, %v1441
    %v1443 = vpop.f32.mrf.mxu0
    %v1444 = vadd.f32 0.0, %v1443
    %1445 = vmatmul.bf16.gmra.mxu0 %v178
    %v1446 = vpop.f32.mrf.mxu0
    %v1447 = vadd.f32 0.0, %v1446
    %v1448 = vpop.f32.mrf.mxu0
    %v1449 = vadd.f32 0.0, %v1448
    %1450 = vmatmul.bf16.gmra.mxu0 %v179
    %v1451 = vpop.f32.mrf.mxu0
    %v1452 = vadd.f32 0.0, %v1451
    %v1453 = vpop.f32.mrf.mxu0
    %v1454 = vadd.f32 0.0, %v1453
    %1455 = vmatmul.bf16.gmra.mxu0 %v180
    %v1456 = vpop.f32.mrf.mxu0
    %v1457 = vadd.f32 0.0, %v1456
    %v1458 = vpop.f32.mrf.mxu0
    %v1459 = vadd.f32 0.0, %v1458
    %1460 = vmatmul.bf16.gmra.mxu0 %v181
    %v1461 = vpop.f32.mrf.mxu0
    %v1462 = vadd.f32 0.0, %v1461
    %v1463 = vpop.f32.mrf.mxu0
    %v1464 = vadd.f32 0.0, %v1463
    %1465 = vmatmul.bf16.gmra.mxu0 %v182
    %v1466 = vpop.f32.mrf.mxu0
    %v1467 = vadd.f32 0.0, %v1466
    %v1468 = vpop.f32.mrf.mxu0
    %v1469 = vadd.f32 0.0, %v1468
    %1470 = vmatmul.bf16.gmra.mxu0 %v183
    %v1471 = vpop.f32.mrf.mxu0
    %v1472 = vadd.f32 0.0, %v1471
    %v1473 = vpop.f32.mrf.mxu0
    %v1474 = vadd.f32 0.0, %v1473
    %1475 = vmatmul.bf16.gmra.mxu0 %v184
    %v1476 = vpop.f32.mrf.mxu0
    %v1477 = vadd.f32 0.0, %v1476
    %v1478 = vpop.f32.mrf.mxu0
    %v1479 = vadd.f32 0.0, %v1478
    %1480 = vmatmul.bf16.gmra.mxu0 %v185
    %v1481 = vpop.f32.mrf.mxu0
    %v1482 = vadd.f32 0.0, %v1481
    %v1483 = vpop.f32.mrf.mxu0
    %v1484 = vadd.f32 0.0, %v1483
    %1485 = vmatmul.bf16.gmra.mxu0 %v186
    %v1486 = vpop.f32.mrf.mxu0
    %v1487 = vadd.f32 0.0, %v1486
    %v1488 = vpop.f32.mrf.mxu0
    %v1489 = vadd.f32 0.0, %v1488
    %1490 = vmatmul.bf16.gmra.mxu0 %v187
    %v1491 = vpop.f32.mrf.mxu0
    %v1492 = vadd.f32 0.0, %v1491
    %v1493 = vpop.f32.mrf.mxu0
    %v1494 = vadd.f32 0.0, %v1493
    %1495 = vmatmul.bf16.gmra.mxu0 %v188
    %v1496 = vpop.f32.mrf.mxu0
    %v1497 = vadd.f32 0.0, %v1496
    %v1498 = vpop.f32.mrf.mxu0
    %v1499 = vadd.f32 0.0, %v1498
    %1500 = vmatmul.bf16.gmra.mxu0 %v189
    %v1501 = vpop.f32.mrf.mxu0
    %v1502 = vadd.f32 0.0, %v1501
    %v1503 = vpop.f32.mrf.mxu0
    %v1504 = vadd.f32 0.0, %v1503
    %1505 = vdwg.mxu0
    %v1506 = vxor.u32 %v1274, 2147483648
    %v1507 = vxor.u32 %v1276, 2147483648
    %v1508 = vxor.u32 %v1279, 2147483648
    %v1509 = vxor.u32 %v1281, 2147483648
    %v1510 = vxor.u32 %v1284, 2147483648
    %v1511 = vxor.u32 %v1286, 2147483648
    %v1512 = vxor.u32 %v1289, 2147483648
    %v1513 = vxor.u32 %v1291, 2147483648
    %v1514 = vxor.u32 %v1294, 2147483648
    %v1515 = vxor.u32 %v1296, 2147483648
    %v1516 = vxor.u32 %v1299, 2147483648
    %v1517 = vxor.u32 %v1301, 2147483648
    %v1518 = vxor.u32 %v1304, 2147483648
    %v1519 = vxor.u32 %v1306, 2147483648
    %v1520 = vxor.u32 %v1309, 2147483648
    %v1521 = vxor.u32 %v1311, 2147483648
    %v1522 = vxor.u32 %v1314, 2147483648
    %v1523 = vxor.u32 %v1316, 2147483648
    %v1524 = vxor.u32 %v1319, 2147483648
    %v1525 = vxor.u32 %v1321, 2147483648
    %v1526 = vxor.u32 %v1324, 2147483648
    %v1527 = vxor.u32 %v1326, 2147483648
    %v1528 = vxor.u32 %v1329, 2147483648
    %v1529 = vxor.u32 %v1331, 2147483648
    %v1530 = vxor.u32 %v1334, 2147483648
    %v1531 = vxor.u32 %v1336, 2147483648
    %v1532 = vxor.u32 %v1339, 2147483648
    %v1533 = vxor.u32 %v1341, 2147483648
    %v1534 = vxor.u32 %v1344, 2147483648
    %v1535 = vxor.u32 %v1346, 2147483648
    %v1536 = vxor.u32 %v1349, 2147483648
    %v1537 = vxor.u32 %v1351, 2147483648
    %v1538 = vmul.f32 %v1506, 1.442695
    %v1539 = vpow.pop %v1538
    %v1540 = vmul.f32 %v1507, 1.442695
    %v1541 = vpow.pop %v1540
    %v1542 = vmul.f32 %v1508, 1.442695
    %v1543 = vpow.pop %v1542
    %v1544 = vmul.f32 %v1509, 1.442695
    %v1545 = vpow.pop %v1544
    %v1546 = vmul.f32 %v1510, 1.442695
    %v1547 = vpow.pop %v1546
    %v1548 = vmul.f32 %v1511, 1.442695
    %v1549 = vpow.pop %v1548
    %v1550 = vmul.f32 %v1512, 1.442695
    %v1551 = vpow.pop %v1550
    %v1552 = vmul.f32 %v1513, 1.442695
    %v1553 = vpow.pop %v1552
    %v1554 = vmul.f32 %v1514, 1.442695
    %v1555 = vpow.pop %v1554
    %v1556 = vmul.f32 %v1515, 1.442695
    %v1557 = vpow.pop %v1556
    %v1558 = vmul.f32 %v1516, 1.442695
    %v1559 = vpow.pop %v1558
    %v1560 = vmul.f32 %v1517, 1.442695
    %v1561 = vpow.pop %v1560
    %v1562 = vmul.f32 %v1518, 1.442695
    %v1563 = vpow.pop %v1562
    %v1564 = vmul.f32 %v1519, 1.442695
    %v1565 = vpow.pop %v1564
    %v1566 = vmul.f32 %v1520, 1.442695
    %v1567 = vpow.pop %v1566
    %v1568 = vmul.f32 %v1521, 1.442695
    %v1569 = vpow.pop %v1568
    %v1570 = vmul.f32 %v1522, 1.442695
    %v1571 = vpow.pop %v1570
    %v1572 = vmul.f32 %v1523, 1.442695
    %v1573 = vpow.pop %v1572
    %v1574 = vmul.f32 %v1524, 1.442695
    %v1575 = vpow.pop %v1574
    %v1576 = vmul.f32 %v1525, 1.442695
    %v1577 = vpow.pop %v1576
    %v1578 = vmul.f32 %v1526, 1.442695
    %v1579 = vpow.pop %v1578
    %v1580 = vmul.f32 %v1527, 1.442695
    %v1581 = vpow.pop %v1580
    %v1582 = vmul.f32 %v1528, 1.442695
    %v1583 = vpow.pop %v1582
    %v1584 = vmul.f32 %v1529, 1.442695
    %v1585 = vpow.pop %v1584
    %v1586 = vmul.f32 %v1530, 1.442695
    %v1587 = vpow.pop %v1586
    %v1588 = vmul.f32 %v1531, 1.442695
    %v1589 = vpow.pop %v1588
    %v1590 = vmul.f32 %v1532, 1.442695
    %v1591 = vpow.pop %v1590
    %v1592 = vmul.f32 %v1533, 1.442695
    %v1593 = vpow.pop %v1592
    %v1594 = vmul.f32 %v1534, 1.442695
    %v1595 = vpow.pop %v1594
    %v1596 = vmul.f32 %v1535, 1.442695
    %v1597 = vpow.pop %v1596
    %v1598 = vmul.f32 %v1536, 1.442695
    %v1599 = vpow.pop %v1598
    %v1600 = vmul.f32 %v1537, 1.442695
    %v1601 = vpow.pop %v1600
    %v1602 = vadd.f32 %v1539, 1.0
    %v1603 = vadd.f32 %v1541, 1.0
    %v1604 = vadd.f32 %v1543, 1.0
    %v1605 = vadd.f32 %v1545, 1.0
    %v1606 = vadd.f32 %v1547, 1.0
    %v1607 = vadd.f32 %v1549, 1.0
    %v1608 = vadd.f32 %v1551, 1.0
    %v1609 = vadd.f32 %v1553, 1.0
    %v1610 = vadd.f32 %v1555, 1.0
    %v1611 = vadd.f32 %v1557, 1.0
    %v1612 = vadd.f32 %v1559, 1.0
    %v1613 = vadd.f32 %v1561, 1.0
    %v1614 = vadd.f32 %v1563, 1.0
    %v1615 = vadd.f32 %v1565, 1.0
    %v1616 = vadd.f32 %v1567, 1.0
    %v1617 = vadd.f32 %v1569, 1.0
    %v1618 = vadd.f32 %v1571, 1.0
    %v1619 = vadd.f32 %v1573, 1.0
    %v1620 = vadd.f32 %v1575, 1.0
    %v1621 = vadd.f32 %v1577, 1.0
    %v1622 = vadd.f32 %v1579, 1.0
    %v1623 = vadd.f32 %v1581, 1.0
    %v1624 = vadd.f32 %v1583, 1.0
    %v1625 = vadd.f32 %v1585, 1.0
    %v1626 = vadd.f32 %v1587, 1.0
    %v1627 = vadd.f32 %v1589, 1.0
    %v1628 = vadd.f32 %v1591, 1.0
    %v1629 = vadd.f32 %v1593, 1.0
    %v1630 = vadd.f32 %v1595, 1.0
    %v1631 = vadd.f32 %v1597, 1.0
    %v1632 = vadd.f32 %v1599, 1.0
    %v1633 = vadd.f32 %v1601, 1.0
    %v1634 = vrcp.pop %v1602
    %v1635 = vmul.f32 %v1602, %v1634
    %v1636 = vsub.f32 1.0, %v1635
    %v1637 = vmul.f32 %v1634, %v1636
    %v1638 = vadd.f32 %v1634, %v1637
    %vm1639 = vweird.f32 %v1602
    %vm1640 = vweird.f32 %v1634
    %vm1641 = vmor %vm1639, %vm1640
    %v1642 = vsel %vm1641, %v1634, %v1638
    %v1643 = vand.u32 2147483647, %v1602
    %vm1644 = vcmp.eq.f32.partialorder %v1643, 8.507059e+37
    %v1645 = vand.u32 %v1602, 2147483648
    %v1646 = vor.u32 1.1754944e-38, %v1645
    %v1647 = vsel %vm1644, %v1646, %v1642
    %v1648 = vmul.f32 1.0, %v1647
    %v1649 = vrcp.pop %v1603
    %v1650 = vmul.f32 %v1603, %v1649
    %v1651 = vsub.f32 1.0, %v1650
    %v1652 = vmul.f32 %v1649, %v1651
    %v1653 = vadd.f32 %v1649, %v1652
    %vm1654 = vweird.f32 %v1603
    %vm1655 = vweird.f32 %v1649
    %vm1656 = vmor %vm1654, %vm1655
    %v1657 = vsel %vm1656, %v1649, %v1653
    %v1658 = vand.u32 2147483647, %v1603
    %vm1659 = vcmp.eq.f32.partialorder %v1658, 8.507059e+37
    %v1660 = vand.u32 %v1603, 2147483648
    %v1661 = vor.u32 1.1754944e-38, %v1660
    %v1662 = vsel %vm1659, %v1661, %v1657
    %v1663 = vmul.f32 1.0, %v1662
    %v1664 = vrcp.pop %v1604
    %v1665 = vmul.f32 %v1604, %v1664
    %v1666 = vsub.f32 1.0, %v1665
    %v1667 = vmul.f32 %v1664, %v1666
    %v1668 = vadd.f32 %v1664, %v1667
    %vm1669 = vweird.f32 %v1604
    %vm1670 = vweird.f32 %v1664
    %vm1671 = vmor %vm1669, %vm1670
    %v1672 = vsel %vm1671, %v1664, %v1668
    %v1673 = vand.u32 2147483647, %v1604
    %vm1674 = vcmp.eq.f32.partialorder %v1673, 8.507059e+37
    %v1675 = vand.u32 %v1604, 2147483648
    %v1676 = vor.u32 1.1754944e-38, %v1675
    %v1677 = vsel %vm1674, %v1676, %v1672
    %v1678 = vmul.f32 1.0, %v1677
    %v1679 = vrcp.pop %v1605
    %v1680 = vmul.f32 %v1605, %v1679
    %v1681 = vsub.f32 1.0, %v1680
    %v1682 = vmul.f32 %v1679, %v1681
    %v1683 = vadd.f32 %v1679, %v1682
    %vm1684 = vweird.f32 %v1605
    %vm1685 = vweird.f32 %v1679
    %vm1686 = vmor %vm1684, %vm1685
    %v1687 = vsel %vm1686, %v1679, %v1683
    %v1688 = vand.u32 2147483647, %v1605
    %vm1689 = vcmp.eq.f32.partialorder %v1688, 8.507059e+37
    %v1690 = vand.u32 %v1605, 2147483648
    %v1691 = vor.u32 1.1754944e-38, %v1690
    %v1692 = vsel %vm1689, %v1691, %v1687
    %v1693 = vmul.f32 1.0, %v1692
    %v1694 = vrcp.pop %v1606
    %v1695 = vmul.f32 %v1606, %v1694
    %v1696 = vsub.f32 1.0, %v1695
    %v1697 = vmul.f32 %v1694, %v1696
    %v1698 = vadd.f32 %v1694, %v1697
    %vm1699 = vweird.f32 %v1606
    %vm1700 = vweird.f32 %v1694
    %vm1701 = vmor %vm1699, %vm1700
    %v1702 = vsel %vm1701, %v1694, %v1698
    %v1703 = vand.u32 2147483647, %v1606
    %vm1704 = vcmp.eq.f32.partialorder %v1703, 8.507059e+37
    %v1705 = vand.u32 %v1606, 2147483648
    %v1706 = vor.u32 1.1754944e-38, %v1705
    %v1707 = vsel %vm1704, %v1706, %v1702
    %v1708 = vmul.f32 1.0, %v1707
    %v1709 = vrcp.pop %v1607
    %v1710 = vmul.f32 %v1607, %v1709
    %v1711 = vsub.f32 1.0, %v1710
    %v1712 = vmul.f32 %v1709, %v1711
    %v1713 = vadd.f32 %v1709, %v1712
    %vm1714 = vweird.f32 %v1607
    %vm1715 = vweird.f32 %v1709
    %vm1716 = vmor %vm1714, %vm1715
    %v1717 = vsel %vm1716, %v1709, %v1713
    %v1718 = vand.u32 2147483647, %v1607
    %vm1719 = vcmp.eq.f32.partialorder %v1718, 8.507059e+37
    %v1720 = vand.u32 %v1607, 2147483648
    %v1721 = vor.u32 1.1754944e-38, %v1720
    %v1722 = vsel %vm1719, %v1721, %v1717
    %v1723 = vmul.f32 1.0, %v1722
    %v1724 = vrcp.pop %v1608
    %v1725 = vmul.f32 %v1608, %v1724
    %v1726 = vsub.f32 1.0, %v1725
    %v1727 = vmul.f32 %v1724, %v1726
    %v1728 = vadd.f32 %v1724, %v1727
    %vm1729 = vweird.f32 %v1608
    %vm1730 = vweird.f32 %v1724
    %vm1731 = vmor %vm1729, %vm1730
    %v1732 = vsel %vm1731, %v1724, %v1728
    %v1733 = vand.u32 2147483647, %v1608
    %vm1734 = vcmp.eq.f32.partialorder %v1733, 8.507059e+37
    %v1735 = vand.u32 %v1608, 2147483648
    %v1736 = vor.u32 1.1754944e-38, %v1735
    %v1737 = vsel %vm1734, %v1736, %v1732
    %v1738 = vmul.f32 1.0, %v1737
    %v1739 = vrcp.pop %v1609
    %v1740 = vmul.f32 %v1609, %v1739
    %v1741 = vsub.f32 1.0, %v1740
    %v1742 = vmul.f32 %v1739, %v1741
    %v1743 = vadd.f32 %v1739, %v1742
    %vm1744 = vweird.f32 %v1609
    %vm1745 = vweird.f32 %v1739
    %vm1746 = vmor %vm1744, %vm1745
    %v1747 = vsel %vm1746, %v1739, %v1743
    %v1748 = vand.u32 2147483647, %v1609
    %vm1749 = vcmp.eq.f32.partialorder %v1748, 8.507059e+37
    %v1750 = vand.u32 %v1609, 2147483648
    %v1751 = vor.u32 1.1754944e-38, %v1750
    %v1752 = vsel %vm1749, %v1751, %v1747
    %v1753 = vmul.f32 1.0, %v1752
    %v1754 = vrcp.pop %v1610
    %v1755 = vmul.f32 %v1610, %v1754
    %v1756 = vsub.f32 1.0, %v1755
    %v1757 = vmul.f32 %v1754, %v1756
    %v1758 = vadd.f32 %v1754, %v1757
    %vm1759 = vweird.f32 %v1610
    %vm1760 = vweird.f32 %v1754
    %vm1761 = vmor %vm1759, %vm1760
    %v1762 = vsel %vm1761, %v1754, %v1758
    %v1763 = vand.u32 2147483647, %v1610
    %vm1764 = vcmp.eq.f32.partialorder %v1763, 8.507059e+37
    %v1765 = vand.u32 %v1610, 2147483648
    %v1766 = vor.u32 1.1754944e-38, %v1765
    %v1767 = vsel %vm1764, %v1766, %v1762
    %v1768 = vmul.f32 1.0, %v1767
    %v1769 = vrcp.pop %v1611
    %v1770 = vmul.f32 %v1611, %v1769
    %v1771 = vsub.f32 1.0, %v1770
    %v1772 = vmul.f32 %v1769, %v1771
    %v1773 = vadd.f32 %v1769, %v1772
    %vm1774 = vweird.f32 %v1611
    %vm1775 = vweird.f32 %v1769
    %vm1776 = vmor %vm1774, %vm1775
    %v1777 = vsel %vm1776, %v1769, %v1773
    %v1778 = vand.u32 2147483647, %v1611
    %vm1779 = vcmp.eq.f32.partialorder %v1778, 8.507059e+37
    %v1780 = vand.u32 %v1611, 2147483648
    %v1781 = vor.u32 1.1754944e-38, %v1780
    %v1782 = vsel %vm1779, %v1781, %v1777
    %v1783 = vmul.f32 1.0, %v1782
    %v1784 = vrcp.pop %v1612
    %v1785 = vmul.f32 %v1612, %v1784
    %v1786 = vsub.f32 1.0, %v1785
    %v1787 = vmul.f32 %v1784, %v1786
    %v1788 = vadd.f32 %v1784, %v1787
    %vm1789 = vweird.f32 %v1612
    %vm1790 = vweird.f32 %v1784
    %vm1791 = vmor %vm1789, %vm1790
    %v1792 = vsel %vm1791, %v1784, %v1788
    %v1793 = vand.u32 2147483647, %v1612
    %vm1794 = vcmp.eq.f32.partialorder %v1793, 8.507059e+37
    %v1795 = vand.u32 %v1612, 2147483648
    %v1796 = vor.u32 1.1754944e-38, %v1795
    %v1797 = vsel %vm1794, %v1796, %v1792
    %v1798 = vmul.f32 1.0, %v1797
    %v1799 = vrcp.pop %v1613
    %v1800 = vmul.f32 %v1613, %v1799
    %v1801 = vsub.f32 1.0, %v1800
    %v1802 = vmul.f32 %v1799, %v1801
    %v1803 = vadd.f32 %v1799, %v1802
    %vm1804 = vweird.f32 %v1613
    %vm1805 = vweird.f32 %v1799
    %vm1806 = vmor %vm1804, %vm1805
    %v1807 = vsel %vm1806, %v1799, %v1803
    %v1808 = vand.u32 2147483647, %v1613
    %vm1809 = vcmp.eq.f32.partialorder %v1808, 8.507059e+37
    %v1810 = vand.u32 %v1613, 2147483648
    %v1811 = vor.u32 1.1754944e-38, %v1810
    %v1812 = vsel %vm1809, %v1811, %v1807
    %v1813 = vmul.f32 1.0, %v1812
    %v1814 = vrcp.pop %v1614
    %v1815 = vmul.f32 %v1614, %v1814
    %v1816 = vsub.f32 1.0, %v1815
    %v1817 = vmul.f32 %v1814, %v1816
    %v1818 = vadd.f32 %v1814, %v1817
    %vm1819 = vweird.f32 %v1614
    %vm1820 = vweird.f32 %v1814
    %vm1821 = vmor %vm1819, %vm1820
    %v1822 = vsel %vm1821, %v1814, %v1818
    %v1823 = vand.u32 2147483647, %v1614
    %vm1824 = vcmp.eq.f32.partialorder %v1823, 8.507059e+37
    %v1825 = vand.u32 %v1614, 2147483648
    %v1826 = vor.u32 1.1754944e-38, %v1825
    %v1827 = vsel %vm1824, %v1826, %v1822
    %v1828 = vmul.f32 1.0, %v1827
    %v1829 = vrcp.pop %v1615
    %v1830 = vmul.f32 %v1615, %v1829
    %v1831 = vsub.f32 1.0, %v1830
    %v1832 = vmul.f32 %v1829, %v1831
    %v1833 = vadd.f32 %v1829, %v1832
    %vm1834 = vweird.f32 %v1615
    %vm1835 = vweird.f32 %v1829
    %vm1836 = vmor %vm1834, %vm1835
    %v1837 = vsel %vm1836, %v1829, %v1833
    %v1838 = vand.u32 2147483647, %v1615
    %vm1839 = vcmp.eq.f32.partialorder %v1838, 8.507059e+37
    %v1840 = vand.u32 %v1615, 2147483648
    %v1841 = vor.u32 1.1754944e-38, %v1840
    %v1842 = vsel %vm1839, %v1841, %v1837
    %v1843 = vmul.f32 1.0, %v1842
    %v1844 = vrcp.pop %v1616
    %v1845 = vmul.f32 %v1616, %v1844
    %v1846 = vsub.f32 1.0, %v1845
    %v1847 = vmul.f32 %v1844, %v1846
    %v1848 = vadd.f32 %v1844, %v1847
    %vm1849 = vweird.f32 %v1616
    %vm1850 = vweird.f32 %v1844
    %vm1851 = vmor %vm1849, %vm1850
    %v1852 = vsel %vm1851, %v1844, %v1848
    %v1853 = vand.u32 2147483647, %v1616
    %vm1854 = vcmp.eq.f32.partialorder %v1853, 8.507059e+37
    %v1855 = vand.u32 %v1616, 2147483648
    %v1856 = vor.u32 1.1754944e-38, %v1855
    %v1857 = vsel %vm1854, %v1856, %v1852
    %v1858 = vmul.f32 1.0, %v1857
    %v1859 = vrcp.pop %v1617
    %v1860 = vmul.f32 %v1617, %v1859
    %v1861 = vsub.f32 1.0, %v1860
    %v1862 = vmul.f32 %v1859, %v1861
    %v1863 = vadd.f32 %v1859, %v1862
    %vm1864 = vweird.f32 %v1617
    %vm1865 = vweird.f32 %v1859
    %vm1866 = vmor %vm1864, %vm1865
    %v1867 = vsel %vm1866, %v1859, %v1863
    %v1868 = vand.u32 2147483647, %v1617
    %vm1869 = vcmp.eq.f32.partialorder %v1868, 8.507059e+37
    %v1870 = vand.u32 %v1617, 2147483648
    %v1871 = vor.u32 1.1754944e-38, %v1870
    %v1872 = vsel %vm1869, %v1871, %v1867
    %v1873 = vmul.f32 1.0, %v1872
    %v1874 = vrcp.pop %v1618
    %v1875 = vmul.f32 %v1618, %v1874
    %v1876 = vsub.f32 1.0, %v1875
    %v1877 = vmul.f32 %v1874, %v1876
    %v1878 = vadd.f32 %v1874, %v1877
    %vm1879 = vweird.f32 %v1618
    %vm1880 = vweird.f32 %v1874
    %vm1881 = vmor %vm1879, %vm1880
    %v1882 = vsel %vm1881, %v1874, %v1878
    %v1883 = vand.u32 2147483647, %v1618
    %vm1884 = vcmp.eq.f32.partialorder %v1883, 8.507059e+37
    %v1885 = vand.u32 %v1618, 2147483648
    %v1886 = vor.u32 1.1754944e-38, %v1885
    %v1887 = vsel %vm1884, %v1886, %v1882
    %v1888 = vmul.f32 1.0, %v1887
    %v1889 = vrcp.pop %v1619
    %v1890 = vmul.f32 %v1619, %v1889
    %v1891 = vsub.f32 1.0, %v1890
    %v1892 = vmul.f32 %v1889, %v1891
    %v1893 = vadd.f32 %v1889, %v1892
    %vm1894 = vweird.f32 %v1619
    %vm1895 = vweird.f32 %v1889
    %vm1896 = vmor %vm1894, %vm1895
    %v1897 = vsel %vm1896, %v1889, %v1893
    %v1898 = vand.u32 2147483647, %v1619
    %vm1899 = vcmp.eq.f32.partialorder %v1898, 8.507059e+37
    %v1900 = vand.u32 %v1619, 2147483648
    %v1901 = vor.u32 1.1754944e-38, %v1900
    %v1902 = vsel %vm1899, %v1901, %v1897
    %v1903 = vmul.f32 1.0, %v1902
    %v1904 = vrcp.pop %v1620
    %v1905 = vmul.f32 %v1620, %v1904
    %v1906 = vsub.f32 1.0, %v1905
    %v1907 = vmul.f32 %v1904, %v1906
    %v1908 = vadd.f32 %v1904, %v1907
    %vm1909 = vweird.f32 %v1620
    %vm1910 = vweird.f32 %v1904
    %vm1911 = vmor %vm1909, %vm1910
    %v1912 = vsel %vm1911, %v1904, %v1908
    %v1913 = vand.u32 2147483647, %v1620
    %vm1914 = vcmp.eq.f32.partialorder %v1913, 8.507059e+37
    %v1915 = vand.u32 %v1620, 2147483648
    %v1916 = vor.u32 1.1754944e-38, %v1915
    %v1917 = vsel %vm1914, %v1916, %v1912
    %v1918 = vmul.f32 1.0, %v1917
    %v1919 = vrcp.pop %v1621
    %v1920 = vmul.f32 %v1621, %v1919
    %v1921 = vsub.f32 1.0, %v1920
    %v1922 = vmul.f32 %v1919, %v1921
    %v1923 = vadd.f32 %v1919, %v1922
    %vm1924 = vweird.f32 %v1621
    %vm1925 = vweird.f32 %v1919
    %vm1926 = vmor %vm1924, %vm1925
    %v1927 = vsel %vm1926, %v1919, %v1923
    %v1928 = vand.u32 2147483647, %v1621
    %vm1929 = vcmp.eq.f32.partialorder %v1928, 8.507059e+37
    %v1930 = vand.u32 %v1621, 2147483648
    %v1931 = vor.u32 1.1754944e-38, %v1930
    %v1932 = vsel %vm1929, %v1931, %v1927
    %v1933 = vmul.f32 1.0, %v1932
    %v1934 = vrcp.pop %v1622
    %v1935 = vmul.f32 %v1622, %v1934
    %v1936 = vsub.f32 1.0, %v1935
    %v1937 = vmul.f32 %v1934, %v1936
    %v1938 = vadd.f32 %v1934, %v1937
    %vm1939 = vweird.f32 %v1622
    %vm1940 = vweird.f32 %v1934
    %vm1941 = vmor %vm1939, %vm1940
    %v1942 = vsel %vm1941, %v1934, %v1938
    %v1943 = vand.u32 2147483647, %v1622
    %vm1944 = vcmp.eq.f32.partialorder %v1943, 8.507059e+37
    %v1945 = vand.u32 %v1622, 2147483648
    %v1946 = vor.u32 1.1754944e-38, %v1945
    %v1947 = vsel %vm1944, %v1946, %v1942
    %v1948 = vmul.f32 1.0, %v1947
    %v1949 = vrcp.pop %v1623
    %v1950 = vmul.f32 %v1623, %v1949
    %v1951 = vsub.f32 1.0, %v1950
    %v1952 = vmul.f32 %v1949, %v1951
    %v1953 = vadd.f32 %v1949, %v1952
    %vm1954 = vweird.f32 %v1623
    %vm1955 = vweird.f32 %v1949
    %vm1956 = vmor %vm1954, %vm1955
    %v1957 = vsel %vm1956, %v1949, %v1953
    %v1958 = vand.u32 2147483647, %v1623
    %vm1959 = vcmp.eq.f32.partialorder %v1958, 8.507059e+37
    %v1960 = vand.u32 %v1623, 2147483648
    %v1961 = vor.u32 1.1754944e-38, %v1960
    %v1962 = vsel %vm1959, %v1961, %v1957
    %v1963 = vmul.f32 1.0, %v1962
    %v1964 = vrcp.pop %v1624
    %v1965 = vmul.f32 %v1624, %v1964
    %v1966 = vsub.f32 1.0, %v1965
    %v1967 = vmul.f32 %v1964, %v1966
    %v1968 = vadd.f32 %v1964, %v1967
    %vm1969 = vweird.f32 %v1624
    %vm1970 = vweird.f32 %v1964
    %vm1971 = vmor %vm1969, %vm1970
    %v1972 = vsel %vm1971, %v1964, %v1968
    %v1973 = vand.u32 2147483647, %v1624
    %vm1974 = vcmp.eq.f32.partialorder %v1973, 8.507059e+37
    %v1975 = vand.u32 %v1624, 2147483648
    %v1976 = vor.u32 1.1754944e-38, %v1975
    %v1977 = vsel %vm1974, %v1976, %v1972
    %v1978 = vmul.f32 1.0, %v1977
    %v1979 = vrcp.pop %v1625
    %v1980 = vmul.f32 %v1625, %v1979
    %v1981 = vsub.f32 1.0, %v1980
    %v1982 = vmul.f32 %v1979, %v1981
    %v1983 = vadd.f32 %v1979, %v1982
    %vm1984 = vweird.f32 %v1625
    %vm1985 = vweird.f32 %v1979
    %vm1986 = vmor %vm1984, %vm1985
    %v1987 = vsel %vm1986, %v1979, %v1983
    %v1988 = vand.u32 2147483647, %v1625
    %vm1989 = vcmp.eq.f32.partialorder %v1988, 8.507059e+37
    %v1990 = vand.u32 %v1625, 2147483648
    %v1991 = vor.u32 1.1754944e-38, %v1990
    %v1992 = vsel %vm1989, %v1991, %v1987
    %v1993 = vmul.f32 1.0, %v1992
    %v1994 = vrcp.pop %v1626
    %v1995 = vmul.f32 %v1626, %v1994
    %v1996 = vsub.f32 1.0, %v1995
    %v1997 = vmul.f32 %v1994, %v1996
    %v1998 = vadd.f32 %v1994, %v1997
    %vm1999 = vweird.f32 %v1626
    %vm2000 = vweird.f32 %v1994
    %vm2001 = vmor %vm1999, %vm2000
    %v2002 = vsel %vm2001, %v1994, %v1998
    %v2003 = vand.u32 2147483647, %v1626
    %vm2004 = vcmp.eq.f32.partialorder %v2003, 8.507059e+37
    %v2005 = vand.u32 %v1626, 2147483648
    %v2006 = vor.u32 1.1754944e-38, %v2005
    %v2007 = vsel %vm2004, %v2006, %v2002
    %v2008 = vmul.f32 1.0, %v2007
    %v2009 = vrcp.pop %v1627
    %v2010 = vmul.f32 %v1627, %v2009
    %v2011 = vsub.f32 1.0, %v2010
    %v2012 = vmul.f32 %v2009, %v2011
    %v2013 = vadd.f32 %v2009, %v2012
    %vm2014 = vweird.f32 %v1627
    %vm2015 = vweird.f32 %v2009
    %vm2016 = vmor %vm2014, %vm2015
    %v2017 = vsel %vm2016, %v2009, %v2013
    %v2018 = vand.u32 2147483647, %v1627
    %vm2019 = vcmp.eq.f32.partialorder %v2018, 8.507059e+37
    %v2020 = vand.u32 %v1627, 2147483648
    %v2021 = vor.u32 1.1754944e-38, %v2020
    %v2022 = vsel %vm2019, %v2021, %v2017
    %v2023 = vmul.f32 1.0, %v2022
    %v2024 = vrcp.pop %v1628
    %v2025 = vmul.f32 %v1628, %v2024
    %v2026 = vsub.f32 1.0, %v2025
    %v2027 = vmul.f32 %v2024, %v2026
    %v2028 = vadd.f32 %v2024, %v2027
    %vm2029 = vweird.f32 %v1628
    %vm2030 = vweird.f32 %v2024
    %vm2031 = vmor %vm2029, %vm2030
    %v2032 = vsel %vm2031, %v2024, %v2028
    %v2033 = vand.u32 2147483647, %v1628
    %vm2034 = vcmp.eq.f32.partialorder %v2033, 8.507059e+37
    %v2035 = vand.u32 %v1628, 2147483648
    %v2036 = vor.u32 1.1754944e-38, %v2035
    %v2037 = vsel %vm2034, %v2036, %v2032
    %v2038 = vmul.f32 1.0, %v2037
    %v2039 = vrcp.pop %v1629
    %v2040 = vmul.f32 %v1629, %v2039
    %v2041 = vsub.f32 1.0, %v2040
    %v2042 = vmul.f32 %v2039, %v2041
    %v2043 = vadd.f32 %v2039, %v2042
    %vm2044 = vweird.f32 %v1629
    %vm2045 = vweird.f32 %v2039
    %vm2046 = vmor %vm2044, %vm2045
    %v2047 = vsel %vm2046, %v2039, %v2043
    %v2048 = vand.u32 2147483647, %v1629
    %vm2049 = vcmp.eq.f32.partialorder %v2048, 8.507059e+37
    %v2050 = vand.u32 %v1629, 2147483648
    %v2051 = vor.u32 1.1754944e-38, %v2050
    %v2052 = vsel %vm2049, %v2051, %v2047
    %v2053 = vmul.f32 1.0, %v2052
    %v2054 = vrcp.pop %v1630
    %v2055 = vmul.f32 %v1630, %v2054
    %v2056 = vsub.f32 1.0, %v2055
    %v2057 = vmul.f32 %v2054, %v2056
    %v2058 = vadd.f32 %v2054, %v2057
    %vm2059 = vweird.f32 %v1630
    %vm2060 = vweird.f32 %v2054
    %vm2061 = vmor %vm2059, %vm2060
    %v2062 = vsel %vm2061, %v2054, %v2058
    %v2063 = vand.u32 2147483647, %v1630
    %vm2064 = vcmp.eq.f32.partialorder %v2063, 8.507059e+37
    %v2065 = vand.u32 %v1630, 2147483648
    %v2066 = vor.u32 1.1754944e-38, %v2065
    %v2067 = vsel %vm2064, %v2066, %v2062
    %v2068 = vmul.f32 1.0, %v2067
    %v2069 = vrcp.pop %v1631
    %v2070 = vmul.f32 %v1631, %v2069
    %v2071 = vsub.f32 1.0, %v2070
    %v2072 = vmul.f32 %v2069, %v2071
    %v2073 = vadd.f32 %v2069, %v2072
    %vm2074 = vweird.f32 %v1631
    %vm2075 = vweird.f32 %v2069
    %vm2076 = vmor %vm2074, %vm2075
    %v2077 = vsel %vm2076, %v2069, %v2073
    %v2078 = vand.u32 2147483647, %v1631
    %vm2079 = vcmp.eq.f32.partialorder %v2078, 8.507059e+37
    %v2080 = vand.u32 %v1631, 2147483648
    %v2081 = vor.u32 1.1754944e-38, %v2080
    %v2082 = vsel %vm2079, %v2081, %v2077
    %v2083 = vmul.f32 1.0, %v2082
    %v2084 = vrcp.pop %v1632
    %v2085 = vmul.f32 %v1632, %v2084
    %v2086 = vsub.f32 1.0, %v2085
    %v2087 = vmul.f32 %v2084, %v2086
    %v2088 = vadd.f32 %v2084, %v2087
    %vm2089 = vweird.f32 %v1632
    %vm2090 = vweird.f32 %v2084
    %vm2091 = vmor %vm2089, %vm2090
    %v2092 = vsel %vm2091, %v2084, %v2088
    %v2093 = vand.u32 2147483647, %v1632
    %vm2094 = vcmp.eq.f32.partialorder %v2093, 8.507059e+37
    %v2095 = vand.u32 %v1632, 2147483648
    %v2096 = vor.u32 1.1754944e-38, %v2095
    %v2097 = vsel %vm2094, %v2096, %v2092
    %v2098 = vmul.f32 1.0, %v2097
    %v2099 = vrcp.pop %v1633
    %v2100 = vmul.f32 %v1633, %v2099
    %v2101 = vsub.f32 1.0, %v2100
    %v2102 = vmul.f32 %v2099, %v2101
    %v2103 = vadd.f32 %v2099, %v2102
    %vm2104 = vweird.f32 %v1633
    %vm2105 = vweird.f32 %v2099
    %vm2106 = vmor %vm2104, %vm2105
    %v2107 = vsel %vm2106, %v2099, %v2103
    %v2108 = vand.u32 2147483647, %v1633
    %vm2109 = vcmp.eq.f32.partialorder %v2108, 8.507059e+37
    %v2110 = vand.u32 %v1633, 2147483648
    %v2111 = vor.u32 1.1754944e-38, %v2110
    %v2112 = vsel %vm2109, %v2111, %v2107
    %v2113 = vmul.f32 1.0, %v2112
    %v2114 = vmul.f32 %v1274, %v1648
    %v2115 = vmul.f32 %v1276, %v1663
    %v2116 = vmul.f32 %v1279, %v1678
    %v2117 = vmul.f32 %v1281, %v1693
    %v2118 = vmul.f32 %v1284, %v1708
    %v2119 = vmul.f32 %v1286, %v1723
    %v2120 = vmul.f32 %v1289, %v1738
    %v2121 = vmul.f32 %v1291, %v1753
    %v2122 = vmul.f32 %v1294, %v1768
    %v2123 = vmul.f32 %v1296, %v1783
    %v2124 = vmul.f32 %v1299, %v1798
    %v2125 = vmul.f32 %v1301, %v1813
    %v2126 = vmul.f32 %v1304, %v1828
    %v2127 = vmul.f32 %v1306, %v1843
    %v2128 = vmul.f32 %v1309, %v1858
    %v2129 = vmul.f32 %v1311, %v1873
    %v2130 = vmul.f32 %v1314, %v1888
    %v2131 = vmul.f32 %v1316, %v1903
    %v2132 = vmul.f32 %v1319, %v1918
    %v2133 = vmul.f32 %v1321, %v1933
    %v2134 = vmul.f32 %v1324, %v1948
    %v2135 = vmul.f32 %v1326, %v1963
    %v2136 = vmul.f32 %v1329, %v1978
    %v2137 = vmul.f32 %v1331, %v1993
    %v2138 = vmul.f32 %v1334, %v2008
    %v2139 = vmul.f32 %v1336, %v2023
    %v2140 = vmul.f32 %v1339, %v2038
    %v2141 = vmul.f32 %v1341, %v2053
    %v2142 = vmul.f32 %v1344, %v2068
    %v2143 = vmul.f32 %v1346, %v2083
    %v2144 = vmul.f32 %v1349, %v2098
    %v2145 = vmul.f32 %v1351, %v2113
    %v2146 = vmul.f32 %v2114, %v1427
    %v2147 = vmul.f32 %v2115, %v1429
    %v2148 = vmul.f32 %v2116, %v1432
    %v2149 = vmul.f32 %v2117, %v1434
    %v2150 = vmul.f32 %v2118, %v1437
    %v2151 = vmul.f32 %v2119, %v1439
    %v2152 = vmul.f32 %v2120, %v1442
    %v2153 = vmul.f32 %v2121, %v1444
    %v2154 = vmul.f32 %v2122, %v1447
    %v2155 = vmul.f32 %v2123, %v1449
    %v2156 = vmul.f32 %v2124, %v1452
    %v2157 = vmul.f32 %v2125, %v1454
    %v2158 = vmul.f32 %v2126, %v1457
    %v2159 = vmul.f32 %v2127, %v1459
    %v2160 = vmul.f32 %v2128, %v1462
    %v2161 = vmul.f32 %v2129, %v1464
    %v2162 = vmul.f32 %v2130, %v1467
    %v2163 = vmul.f32 %v2131, %v1469
    %v2164 = vmul.f32 %v2132, %v1472
    %v2165 = vmul.f32 %v2133, %v1474
    %v2166 = vmul.f32 %v2134, %v1477
    %v2167 = vmul.f32 %v2135, %v1479
    %v2168 = vmul.f32 %v2136, %v1482
    %v2169 = vmul.f32 %v2137, %v1484
    %v2170 = vmul.f32 %v2138, %v1487
    %v2171 = vmul.f32 %v2139, %v1489
    %v2172 = vmul.f32 %v2140, %v1492
    %v2173 = vmul.f32 %v2141, %v1494
    %v2174 = vmul.f32 %v2142, %v1497
    %v2175 = vmul.f32 %v2143, %v1499
    %v2176 = vmul.f32 %v2144, %v1502
    %v2177 = vmul.f32 %v2145, %v1504
    %v2178 = vpack.c.bf16 %v2147, %v2146
    %v2179 = vpack.c.bf16 %v2149, %v2148
    %v2180 = vpack.c.bf16 %v2151, %v2150
    %v2181 = vpack.c.bf16 %v2153, %v2152
    %v2182 = vpack.c.bf16 %v2155, %v2154
    %v2183 = vpack.c.bf16 %v2157, %v2156
    %v2184 = vpack.c.bf16 %v2159, %v2158
    %v2185 = vpack.c.bf16 %v2161, %v2160
    %v2186 = vpack.c.bf16 %v2163, %v2162
    %v2187 = vpack.c.bf16 %v2165, %v2164
    %v2188 = vpack.c.bf16 %v2167, %v2166
    %v2189 = vpack.c.bf16 %v2169, %v2168
    %v2190 = vpack.c.bf16 %v2171, %v2170
    %v2191 = vpack.c.bf16 %v2173, %v2172
    %v2192 = vpack.c.bf16 %v2175, %v2174
    %v2193 = vpack.c.bf16 %v2177, %v2176
    %v2194 = vld [vmem:[#allocation7 + $0x40] sm:$0xf]
    %v2195 = vld [vmem:[#allocation7 + $0x44] sm:$0xf]
    %v2196 = vld [vmem:[#allocation7 + $0x48] sm:$0xf]
    %v2197 = vld [vmem:[#allocation7 + $0x4c] sm:$0xf]
    %v2198 = vld [vmem:[#allocation7 + $0x50] sm:$0xf]
    %v2199 = vld [vmem:[#allocation7 + $0x54] sm:$0xf]
    %v2200 = vld [vmem:[#allocation7 + $0x58] sm:$0xf]
    %v2201 = vld [vmem:[#allocation7 + $0x5c] sm:$0xf]
    %v2202 = vld [vmem:[#allocation7 + $0x60] sm:$0xf]
    %v2203 = vld [vmem:[#allocation7 + $0x64] sm:$0xf]
    %v2204 = vld [vmem:[#allocation7 + $0x68] sm:$0xf]
    %v2205 = vld [vmem:[#allocation7 + $0x6c] sm:$0xf]
    %v2206 = vld [vmem:[#allocation7 + $0x70] sm:$0xf]
    %v2207 = vld [vmem:[#allocation7 + $0x74] sm:$0xf]
    %v2208 = vld [vmem:[#allocation7 + $0x78] sm:$0xf]
    %v2209 = vld [vmem:[#allocation7 + $0x7c] sm:$0xf]
    %v2226 = vunpack.c.l.b16 %v2194
    %v2227 = vunpack.c.l.b16 %v2195
    %v2228 = vunpack.c.l.b16 %v2196
    %v2229 = vunpack.c.l.b16 %v2197
    %v2230 = vunpack.c.l.b16 %v2198
    %v2231 = vunpack.c.l.b16 %v2199
    %v2232 = vunpack.c.l.b16 %v2200
    %v2233 = vunpack.c.l.b16 %v2201
    %v2234 = vunpack.c.l.b16 %v2202
    %v2235 = vunpack.c.l.b16 %v2203
    %v2236 = vunpack.c.l.b16 %v2204
    %v2237 = vunpack.c.l.b16 %v2205
    %v2238 = vunpack.c.l.b16 %v2206
    %v2239 = vunpack.c.l.b16 %v2207
    %v2240 = vunpack.c.l.b16 %v2208
    %v2241 = vunpack.c.l.b16 %v2209
    %v2242 = vpack.c.b16 %v2227, %v2226
    %v2243 = vpack.c.b16 %v2229, %v2228
    %v2244 = vpack.c.b16 %v2231, %v2230
    %v2245 = vpack.c.b16 %v2233, %v2232
    %v2246 = vpack.c.b16 %v2235, %v2234
    %v2247 = vpack.c.b16 %v2237, %v2236
    %v2248 = vpack.c.b16 %v2239, %v2238
    %v2249 = vpack.c.b16 %v2241, %v2240
    %2258 = vmatpush.bf16.msra.mxu0 %v2249
    %2259 = vmatpush.bf16.msra.mxu0 %v2248
    %2260 = vmatpush.bf16.msra.mxu0 %v2247
    %2261 = vmatpush.bf16.msra.mxu0 %v2246
    %2262 = vmatpush.bf16.msra.mxu0 %v2245
    %2263 = vmatpush.bf16.msra.mxu0 %v2244
    %2264 = vmatpush.bf16.msra.mxu0 %v2243
    %2265 = vmatpush.bf16.msra.mxu0 %v2242
    %2266 = vmatmul.bf16.gmra.mxu0 %v2178
    %v2267 = vpop.f32.mrf.mxu0
    %v2268 = vadd.f32 0.0, %v2267
    %v2269 = vpop.f32.mrf.mxu0
    %v2270 = vadd.f32 0.0, %v2269
    %2271 = vmatmul.bf16.gmra.mxu0 %v2179
    %v2272 = vpop.f32.mrf.mxu0
    %v2273 = vadd.f32 0.0, %v2272
    %v2274 = vpop.f32.mrf.mxu0
    %v2275 = vadd.f32 0.0, %v2274
    %2276 = vmatmul.bf16.gmra.mxu0 %v2180
    %v2277 = vpop.f32.mrf.mxu0
    %v2278 = vadd.f32 0.0, %v2277
    %v2279 = vpop.f32.mrf.mxu0
    %v2280 = vadd.f32 0.0, %v2279
    %2281 = vmatmul.bf16.gmra.mxu0 %v2181
    %v2282 = vpop.f32.mrf.mxu0
    %v2283 = vadd.f32 0.0, %v2282
    %v2284 = vpop.f32.mrf.mxu0
    %v2285 = vadd.f32 0.0, %v2284
    %2286 = vmatmul.bf16.gmra.mxu0 %v2182
    %v2287 = vpop.f32.mrf.mxu0
    %v2288 = vadd.f32 0.0, %v2287
    %v2289 = vpop.f32.mrf.mxu0
    %v2290 = vadd.f32 0.0, %v2289
    %2291 = vmatmul.bf16.gmra.mxu0 %v2183
    %v2292 = vpop.f32.mrf.mxu0
    %v2293 = vadd.f32 0.0, %v2292
    %v2294 = vpop.f32.mrf.mxu0
    %v2295 = vadd.f32 0.0, %v2294
    %2296 = vmatmul.bf16.gmra.mxu0 %v2184
    %v2297 = vpop.f32.mrf.mxu0
    %v2298 = vadd.f32 0.0, %v2297
    %v2299 = vpop.f32.mrf.mxu0
    %v2300 = vadd.f32 0.0, %v2299
    %2301 = vmatmul.bf16.gmra.mxu0 %v2185
    %v2302 = vpop.f32.mrf.mxu0
    %v2303 = vadd.f32 0.0, %v2302
    %v2304 = vpop.f32.mrf.mxu0
    %v2305 = vadd.f32 0.0, %v2304
    %2306 = vmatmul.bf16.gmra.mxu0 %v2186
    %v2307 = vpop.f32.mrf.mxu0
    %v2308 = vadd.f32 0.0, %v2307
    %v2309 = vpop.f32.mrf.mxu0
    %v2310 = vadd.f32 0.0, %v2309
    %2311 = vmatmul.bf16.gmra.mxu0 %v2187
    %v2312 = vpop.f32.mrf.mxu0
    %v2313 = vadd.f32 0.0, %v2312
    %v2314 = vpop.f32.mrf.mxu0
    %v2315 = vadd.f32 0.0, %v2314
    %2316 = vmatmul.bf16.gmra.mxu0 %v2188
    %v2317 = vpop.f32.mrf.mxu0
    %v2318 = vadd.f32 0.0, %v2317
    %v2319 = vpop.f32.mrf.mxu0
    %v2320 = vadd.f32 0.0, %v2319
    %2321 = vmatmul.bf16.gmra.mxu0 %v2189
    %v2322 = vpop.f32.mrf.mxu0
    %v2323 = vadd.f32 0.0, %v2322
    %v2324 = vpop.f32.mrf.mxu0
    %v2325 = vadd.f32 0.0, %v2324
    %2326 = vmatmul.bf16.gmra.mxu0 %v2190
    %v2327 = vpop.f32.mrf.mxu0
    %v2328 = vadd.f32 0.0, %v2327
    %v2329 = vpop.f32.mrf.mxu0
    %v2330 = vadd.f32 0.0, %v2329
    %2331 = vmatmul.bf16.gmra.mxu0 %v2191
    %v2332 = vpop.f32.mrf.mxu0
    %v2333 = vadd.f32 0.0, %v2332
    %v2334 = vpop.f32.mrf.mxu0
    %v2335 = vadd.f32 0.0, %v2334
    %2336 = vmatmul.bf16.gmra.mxu0 %v2192
    %v2337 = vpop.f32.mrf.mxu0
    %v2338 = vadd.f32 0.0, %v2337
    %v2339 = vpop.f32.mrf.mxu0
    %v2340 = vadd.f32 0.0, %v2339
    %2341 = vmatmul.bf16.gmra.mxu0 %v2193
    %v2342 = vpop.f32.mrf.mxu0
    %v2343 = vadd.f32 0.0, %v2342
    %v2344 = vpop.f32.mrf.mxu0
    %v2345 = vadd.f32 0.0, %v2344
    %2346 = vdwg.mxu0
    %v2363 = vunpack.c.l.b16 %v1184
    %v2364 = vunpack.c.l.b16 %v1185
    %v2365 = vunpack.c.l.b16 %v1186
    %v2366 = vunpack.c.l.b16 %v1187
    %v2367 = vunpack.c.l.b16 %v1188
    %v2368 = vunpack.c.l.b16 %v1189
    %v2369 = vunpack.c.l.b16 %v1190
    %v2370 = vunpack.c.l.b16 %v1191
    %v2371 = vunpack.c.l.b16 %v1192
    %v2372 = vunpack.c.l.b16 %v1193
    %v2373 = vunpack.c.l.b16 %v1194
    %v2374 = vunpack.c.l.b16 %v1195
    %v2375 = vunpack.c.l.b16 %v1196
    %v2376 = vunpack.c.l.b16 %v1197
    %v2377 = vunpack.c.l.b16 %v1198
    %v2378 = vunpack.c.l.b16 %v1199
    %v2379 = vpack.c.b16 %v2364, %v2363
    %v2380 = vpack.c.b16 %v2366, %v2365
    %v2381 = vpack.c.b16 %v2368, %v2367
    %v2382 = vpack.c.b16 %v2370, %v2369
    %v2383 = vpack.c.b16 %v2372, %v2371
    %v2384 = vpack.c.b16 %v2374, %v2373
    %v2385 = vpack.c.b16 %v2376, %v2375
    %v2386 = vpack.c.b16 %v2378, %v2377
    %2395 = vmatpush.bf16.msra.mxu0 %v2386
    %2396 = vmatpush.bf16.msra.mxu0 %v2385
    %2397 = vmatpush.bf16.msra.mxu0 %v2384
    %2398 = vmatpush.bf16.msra.mxu0 %v2383
    %2399 = vmatpush.bf16.msra.mxu0 %v2382
    %2400 = vmatpush.bf16.msra.mxu0 %v2381
    %2401 = vmatpush.bf16.msra.mxu0 %v2380
    %2402 = vmatpush.bf16.msra.mxu0 %v2379
    %2403 = vmatmul.bf16.gmra.mxu0 %v1168
    %v2404 = vpop.f32.mrf.mxu0
    %v2405 = vadd.f32 %v2268, %v2404
    %v2406 = vpop.f32.mrf.mxu0
    %v2407 = vadd.f32 %v2270, %v2406
    %2408 = vmatmul.bf16.gmra.mxu0 %v1169
    %v2409 = vpop.f32.mrf.mxu0
    %v2410 = vadd.f32 %v2273, %v2409
    %v2411 = vpop.f32.mrf.mxu0
    %v2412 = vadd.f32 %v2275, %v2411
    %2413 = vmatmul.bf16.gmra.mxu0 %v1170
    %v2414 = vpop.f32.mrf.mxu0
    %v2415 = vadd.f32 %v2278, %v2414
    %v2416 = vpop.f32.mrf.mxu0
    %v2417 = vadd.f32 %v2280, %v2416
    %2418 = vmatmul.bf16.gmra.mxu0 %v1171
    %v2419 = vpop.f32.mrf.mxu0
    %v2420 = vadd.f32 %v2283, %v2419
    %v2421 = vpop.f32.mrf.mxu0
    %v2422 = vadd.f32 %v2285, %v2421
    %2423 = vmatmul.bf16.gmra.mxu0 %v1172
    %v2424 = vpop.f32.mrf.mxu0
    %v2425 = vadd.f32 %v2288, %v2424
    %v2426 = vpop.f32.mrf.mxu0
    %v2427 = vadd.f32 %v2290, %v2426
    %2428 = vmatmul.bf16.gmra.mxu0 %v1173
    %v2429 = vpop.f32.mrf.mxu0
    %v2430 = vadd.f32 %v2293, %v2429
    %v2431 = vpop.f32.mrf.mxu0
    %v2432 = vadd.f32 %v2295, %v2431
    %2433 = vmatmul.bf16.gmra.mxu0 %v1174
    %v2434 = vpop.f32.mrf.mxu0
    %v2435 = vadd.f32 %v2298, %v2434
    %v2436 = vpop.f32.mrf.mxu0
    %v2437 = vadd.f32 %v2300, %v2436
    %2438 = vmatmul.bf16.gmra.mxu0 %v1175
    %v2439 = vpop.f32.mrf.mxu0
    %v2440 = vadd.f32 %v2303, %v2439
    %v2441 = vpop.f32.mrf.mxu0
    %v2442 = vadd.f32 %v2305, %v2441
    %2443 = vmatmul.bf16.gmra.mxu0 %v1176
    %v2444 = vpop.f32.mrf.mxu0
    %v2445 = vadd.f32 %v2308, %v2444
    %v2446 = vpop.f32.mrf.mxu0
    %v2447 = vadd.f32 %v2310, %v2446
    %2448 = vmatmul.bf16.gmra.mxu0 %v1177
    %v2449 = vpop.f32.mrf.mxu0
    %v2450 = vadd.f32 %v2313, %v2449
    %v2451 = vpop.f32.mrf.mxu0
    %v2452 = vadd.f32 %v2315, %v2451
    %2453 = vmatmul.bf16.gmra.mxu0 %v1178
    %v2454 = vpop.f32.mrf.mxu0
    %v2455 = vadd.f32 %v2318, %v2454
    %v2456 = vpop.f32.mrf.mxu0
    %v2457 = vadd.f32 %v2320, %v2456
    %2458 = vmatmul.bf16.gmra.mxu0 %v1179
    %v2459 = vpop.f32.mrf.mxu0
    %v2460 = vadd.f32 %v2323, %v2459
    %v2461 = vpop.f32.mrf.mxu0
    %v2462 = vadd.f32 %v2325, %v2461
    %2463 = vmatmul.bf16.gmra.mxu0 %v1180
    %v2464 = vpop.f32.mrf.mxu0
    %v2465 = vadd.f32 %v2328, %v2464
    %v2466 = vpop.f32.mrf.mxu0
    %v2467 = vadd.f32 %v2330, %v2466
    %2468 = vmatmul.bf16.gmra.mxu0 %v1181
    %v2469 = vpop.f32.mrf.mxu0
    %v2470 = vadd.f32 %v2333, %v2469
    %v2471 = vpop.f32.mrf.mxu0
    %v2472 = vadd.f32 %v2335, %v2471
    %2473 = vmatmul.bf16.gmra.mxu0 %v1182
    %v2474 = vpop.f32.mrf.mxu0
    %v2475 = vadd.f32 %v2338, %v2474
    %v2476 = vpop.f32.mrf.mxu0
    %v2477 = vadd.f32 %v2340, %v2476
    %2478 = vmatmul.bf16.gmra.mxu0 %v1183
    %v2479 = vpop.f32.mrf.mxu0
    %v2480 = vadd.f32 %v2343, %v2479
    %v2481 = vpop.f32.mrf.mxu0
    %v2482 = vadd.f32 %v2345, %v2481
    %2483 = vdwg.mxu0
    %v2484 = vld [vmem:[#allocation5 + $0x8] sm:$0xf]
    %v2485 = vld [vmem:[#allocation5 + $0x20] sm:$0xf]
    %v2486 = vld [vmem:[#allocation5 + $0x38] sm:$0xf]
    %v2487 = vld [vmem:[#allocation5 + $0x50] sm:$0xf]
    %v2488 = vld [vmem:[#allocation5 + $0x68] sm:$0xf]
    %v2489 = vld [vmem:[#allocation5 + $0x80] sm:$0xf]
    %v2490 = vld [vmem:[#allocation5 + $0x98] sm:$0xf]
    %v2491 = vld [vmem:[#allocation5 + $0xb0] sm:$0xf]
    %v2492 = vld [vmem:[#allocation5 + $0xc8] sm:$0xf]
    %v2493 = vld [vmem:[#allocation5 + $0xe0] sm:$0xf]
    %v2494 = vld [vmem:[#allocation5 + $0xf8] sm:$0xf]
    %v2495 = vld [vmem:[#allocation5 + $0x110] sm:$0xf]
    %v2496 = vld [vmem:[#allocation5 + $0x128] sm:$0xf]
    %v2497 = vld [vmem:[#allocation5 + $0x140] sm:$0xf]
    %v2498 = vld [vmem:[#allocation5 + $0x158] sm:$0xf]
    %v2499 = vld [vmem:[#allocation5 + $0x170] sm:$0xf]
    %v2516 = vunpack.c.l.b16 %v2484
    %v2517 = vunpack.c.l.b16 %v2485
    %v2518 = vunpack.c.l.b16 %v2486
    %v2519 = vunpack.c.l.b16 %v2487
    %v2520 = vunpack.c.l.b16 %v2488
    %v2521 = vunpack.c.l.b16 %v2489
    %v2522 = vunpack.c.l.b16 %v2490
    %v2523 = vunpack.c.l.b16 %v2491
    %v2524 = vunpack.c.l.b16 %v2492
    %v2525 = vunpack.c.l.b16 %v2493
    %v2526 = vunpack.c.l.b16 %v2494
    %v2527 = vunpack.c.l.b16 %v2495
    %v2528 = vunpack.c.l.b16 %v2496
    %v2529 = vunpack.c.l.b16 %v2497
    %v2530 = vunpack.c.l.b16 %v2498
    %v2531 = vunpack.c.l.b16 %v2499
    %v2532 = vpack.c.b16 %v2517, %v2516
    %v2533 = vpack.c.b16 %v2519, %v2518
    %v2534 = vpack.c.b16 %v2521, %v2520
    %v2535 = vpack.c.b16 %v2523, %v2522
    %v2536 = vpack.c.b16 %v2525, %v2524
    %v2537 = vpack.c.b16 %v2527, %v2526
    %v2538 = vpack.c.b16 %v2529, %v2528
    %v2539 = vpack.c.b16 %v2531, %v2530
    %2548 = vmatpush.bf16.msra.mxu0 %v2539
    %2549 = vmatpush.bf16.msra.mxu0 %v2538
    %2550 = vmatpush.bf16.msra.mxu0 %v2537
    %2551 = vmatpush.bf16.msra.mxu0 %v2536
    %2552 = vmatpush.bf16.msra.mxu0 %v2535
    %2553 = vmatpush.bf16.msra.mxu0 %v2534
    %2554 = vmatpush.bf16.msra.mxu0 %v2533
    %2555 = vmatpush.bf16.msra.mxu0 %v2532
    %2556 = vmatmul.bf16.gmra.mxu0 %v174
    %v2557 = vpop.f32.mrf.mxu0
    %v2558 = vadd.f32 0.0, %v2557
    %v2559 = vpop.f32.mrf.mxu0
    %v2560 = vadd.f32 0.0, %v2559
    %2561 = vmatmul.bf16.gmra.mxu0 %v175
    %v2562 = vpop.f32.mrf.mxu0
    %v2563 = vadd.f32 0.0, %v2562
    %v2564 = vpop.f32.mrf.mxu0
    %v2565 = vadd.f32 0.0, %v2564
    %2566 = vmatmul.bf16.gmra.mxu0 %v176
    %v2567 = vpop.f32.mrf.mxu0
    %v2568 = vadd.f32 0.0, %v2567
    %v2569 = vpop.f32.mrf.mxu0
    %v2570 = vadd.f32 0.0, %v2569
    %2571 = vmatmul.bf16.gmra.mxu0 %v177
    %v2572 = vpop.f32.mrf.mxu0
    %v2573 = vadd.f32 0.0, %v2572
    %v2574 = vpop.f32.mrf.mxu0
    %v2575 = vadd.f32 0.0, %v2574
    %2576 = vmatmul.bf16.gmra.mxu0 %v178
    %v2577 = vpop.f32.mrf.mxu0
    %v2578 = vadd.f32 0.0, %v2577
    %v2579 = vpop.f32.mrf.mxu0
    %v2580 = vadd.f32 0.0, %v2579
    %2581 = vmatmul.bf16.gmra.mxu0 %v179
    %v2582 = vpop.f32.mrf.mxu0
    %v2583 = vadd.f32 0.0, %v2582
    %v2584 = vpop.f32.mrf.mxu0
    %v2585 = vadd.f32 0.0, %v2584
    %2586 = vmatmul.bf16.gmra.mxu0 %v180
    %v2587 = vpop.f32.mrf.mxu0
    %v2588 = vadd.f32 0.0, %v2587
    %v2589 = vpop.f32.mrf.mxu0
    %v2590 = vadd.f32 0.0, %v2589
    %2591 = vmatmul.bf16.gmra.mxu0 %v181
    %v2592 = vpop.f32.mrf.mxu0
    %v2593 = vadd.f32 0.0, %v2592
    %v2594 = vpop.f32.mrf.mxu0
    %v2595 = vadd.f32 0.0, %v2594
    %2596 = vmatmul.bf16.gmra.mxu0 %v182
    %v2597 = vpop.f32.mrf.mxu0
    %v2598 = vadd.f32 0.0, %v2597
    %v2599 = vpop.f32.mrf.mxu0
    %v2600 = vadd.f32 0.0, %v2599
    %2601 = vmatmul.bf16.gmra.mxu0 %v183
    %v2602 = vpop.f32.mrf.mxu0
    %v2603 = vadd.f32 0.0, %v2602
    %v2604 = vpop.f32.mrf.mxu0
    %v2605 = vadd.f32 0.0, %v2604
    %2606 = vmatmul.bf16.gmra.mxu0 %v184
    %v2607 = vpop.f32.mrf.mxu0
    %v2608 = vadd.f32 0.0, %v2607
    %v2609 = vpop.f32.mrf.mxu0
    %v2610 = vadd.f32 0.0, %v2609
    %2611 = vmatmul.bf16.gmra.mxu0 %v185
    %v2612 = vpop.f32.mrf.mxu0
    %v2613 = vadd.f32 0.0, %v2612
    %v2614 = vpop.f32.mrf.mxu0
    %v2615 = vadd.f32 0.0, %v2614
    %2616 = vmatmul.bf16.gmra.mxu0 %v186
    %v2617 = vpop.f32.mrf.mxu0
    %v2618 = vadd.f32 0.0, %v2617
    %v2619 = vpop.f32.mrf.mxu0
    %v2620 = vadd.f32 0.0, %v2619
    %2621 = vmatmul.bf16.gmra.mxu0 %v187
    %v2622 = vpop.f32.mrf.mxu0
    %v2623 = vadd.f32 0.0, %v2622
    %v2624 = vpop.f32.mrf.mxu0
    %v2625 = vadd.f32 0.0, %v2624
    %2626 = vmatmul.bf16.gmra.mxu0 %v188
    %v2627 = vpop.f32.mrf.mxu0
    %v2628 = vadd.f32 0.0, %v2627
    %v2629 = vpop.f32.mrf.mxu0
    %v2630 = vadd.f32 0.0, %v2629
    %2631 = vmatmul.bf16.gmra.mxu0 %v189
    %v2632 = vpop.f32.mrf.mxu0
    %v2633 = vadd.f32 0.0, %v2632
    %v2634 = vpop.f32.mrf.mxu0
    %v2635 = vadd.f32 0.0, %v2634
    %2636 = vdwg.mxu0
    %v2637 = vld [vmem:[#allocation5 + $0x14] sm:$0xf]
    %v2638 = vld [vmem:[#allocation5 + $0x2c] sm:$0xf]
    %v2639 = vld [vmem:[#allocation5 + $0x44] sm:$0xf]
    %v2640 = vld [vmem:[#allocation5 + $0x5c] sm:$0xf]
    %v2641 = vld [vmem:[#allocation5 + $0x74] sm:$0xf]
    %v2642 = vld [vmem:[#allocation5 + $0x8c] sm:$0xf]
    %v2643 = vld [vmem:[#allocation5 + $0xa4] sm:$0xf]
    %v2644 = vld [vmem:[#allocation5 + $0xbc] sm:$0xf]
    %v2645 = vld [vmem:[#allocation5 + $0xd4] sm:$0xf]
    %v2646 = vld [vmem:[#allocation5 + $0xec] sm:$0xf]
    %v2647 = vld [vmem:[#allocation5 + $0x104] sm:$0xf]
    %v2648 = vld [vmem:[#allocation5 + $0x11c] sm:$0xf]
    %v2649 = vld [vmem:[#allocation5 + $0x134] sm:$0xf]
    %v2650 = vld [vmem:[#allocation5 + $0x14c] sm:$0xf]
    %v2651 = vld [vmem:[#allocation5 + $0x164] sm:$0xf]
    %v2652 = vld [vmem:[#allocation5 + $0x17c] sm:$0xf]
    %v2669 = vunpack.c.l.b16 %v2637
    %v2670 = vunpack.c.l.b16 %v2638
    %v2671 = vunpack.c.l.b16 %v2639
    %v2672 = vunpack.c.l.b16 %v2640
    %v2673 = vunpack.c.l.b16 %v2641
    %v2674 = vunpack.c.l.b16 %v2642
    %v2675 = vunpack.c.l.b16 %v2643
    %v2676 = vunpack.c.l.b16 %v2644
    %v2677 = vunpack.c.l.b16 %v2645
    %v2678 = vunpack.c.l.b16 %v2646
    %v2679 = vunpack.c.l.b16 %v2647
    %v2680 = vunpack.c.l.b16 %v2648
    %v2681 = vunpack.c.l.b16 %v2649
    %v2682 = vunpack.c.l.b16 %v2650
    %v2683 = vunpack.c.l.b16 %v2651
    %v2684 = vunpack.c.l.b16 %v2652
    %v2685 = vpack.c.b16 %v2670, %v2669
    %v2686 = vpack.c.b16 %v2672, %v2671
    %v2687 = vpack.c.b16 %v2674, %v2673
    %v2688 = vpack.c.b16 %v2676, %v2675
    %v2689 = vpack.c.b16 %v2678, %v2677
    %v2690 = vpack.c.b16 %v2680, %v2679
    %v2691 = vpack.c.b16 %v2682, %v2681
    %v2692 = vpack.c.b16 %v2684, %v2683
    %2701 = vmatpush.bf16.msra.mxu0 %v2692
    %2702 = vmatpush.bf16.msra.mxu0 %v2691
    %2703 = vmatpush.bf16.msra.mxu0 %v2690
    %2704 = vmatpush.bf16.msra.mxu0 %v2689
    %2705 = vmatpush.bf16.msra.mxu0 %v2688
    %2706 = vmatpush.bf16.msra.mxu0 %v2687
    %2707 = vmatpush.bf16.msra.mxu0 %v2686
    %2708 = vmatpush.bf16.msra.mxu0 %v2685
    %2709 = vmatmul.bf16.gmra.mxu0 %v174
    %v2710 = vpop.f32.mrf.mxu0
    %v2711 = vadd.f32 0.0, %v2710
    %v2712 = vpop.f32.mrf.mxu0
    %v2713 = vadd.f32 0.0, %v2712
    %2714 = vmatmul.bf16.gmra.mxu0 %v175
    %v2715 = vpop.f32.mrf.mxu0
    %v2716 = vadd.f32 0.0, %v2715
    %v2717 = vpop.f32.mrf.mxu0
    %v2718 = vadd.f32 0.0, %v2717
    %2719 = vmatmul.bf16.gmra.mxu0 %v176
    %v2720 = vpop.f32.mrf.mxu0
    %v2721 = vadd.f32 0.0, %v2720
    %v2722 = vpop.f32.mrf.mxu0
    %v2723 = vadd.f32 0.0, %v2722
    %2724 = vmatmul.bf16.gmra.mxu0 %v177
    %v2725 = vpop.f32.mrf.mxu0
    %v2726 = vadd.f32 0.0, %v2725
    %v2727 = vpop.f32.mrf.mxu0
    %v2728 = vadd.f32 0.0, %v2727
    %2729 = vmatmul.bf16.gmra.mxu0 %v178
    %v2730 = vpop.f32.mrf.mxu0
    %v2731 = vadd.f32 0.0, %v2730
    %v2732 = vpop.f32.mrf.mxu0
    %v2733 = vadd.f32 0.0, %v2732
    %2734 = vmatmul.bf16.gmra.mxu0 %v179
    %v2735 = vpop.f32.mrf.mxu0
    %v2736 = vadd.f32 0.0, %v2735
    %v2737 = vpop.f32.mrf.mxu0
    %v2738 = vadd.f32 0.0, %v2737
    %2739 = vmatmul.bf16.gmra.mxu0 %v180
    %v2740 = vpop.f32.mrf.mxu0
    %v2741 = vadd.f32 0.0, %v2740
    %v2742 = vpop.f32.mrf.mxu0
    %v2743 = vadd.f32 0.0, %v2742
    %2744 = vmatmul.bf16.gmra.mxu0 %v181
    %v2745 = vpop.f32.mrf.mxu0
    %v2746 = vadd.f32 0.0, %v2745
    %v2747 = vpop.f32.mrf.mxu0
    %v2748 = vadd.f32 0.0, %v2747
    %2749 = vmatmul.bf16.gmra.mxu0 %v182
    %v2750 = vpop.f32.mrf.mxu0
    %v2751 = vadd.f32 0.0, %v2750
    %v2752 = vpop.f32.mrf.mxu0
    %v2753 = vadd.f32 0.0, %v2752
    %2754 = vmatmul.bf16.gmra.mxu0 %v183
    %v2755 = vpop.f32.mrf.mxu0
    %v2756 = vadd.f32 0.0, %v2755
    %v2757 = vpop.f32.mrf.mxu0
    %v2758 = vadd.f32 0.0, %v2757
    %2759 = vmatmul.bf16.gmra.mxu0 %v184
    %v2760 = vpop.f32.mrf.mxu0
    %v2761 = vadd.f32 0.0, %v2760
    %v2762 = vpop.f32.mrf.mxu0
    %v2763 = vadd.f32 0.0, %v2762
    %2764 = vmatmul.bf16.gmra.mxu0 %v185
    %v2765 = vpop.f32.mrf.mxu0
    %v2766 = vadd.f32 0.0, %v2765
    %v2767 = vpop.f32.mrf.mxu0
    %v2768 = vadd.f32 0.0, %v2767
    %2769 = vmatmul.bf16.gmra.mxu0 %v186
    %v2770 = vpop.f32.mrf.mxu0
    %v2771 = vadd.f32 0.0, %v2770
    %v2772 = vpop.f32.mrf.mxu0
    %v2773 = vadd.f32 0.0, %v2772
    %2774 = vmatmul.bf16.gmra.mxu0 %v187
    %v2775 = vpop.f32.mrf.mxu0
    %v2776 = vadd.f32 0.0, %v2775
    %v2777 = vpop.f32.mrf.mxu0
    %v2778 = vadd.f32 0.0, %v2777
    %2779 = vmatmul.bf16.gmra.mxu0 %v188
    %v2780 = vpop.f32.mrf.mxu0
    %v2781 = vadd.f32 0.0, %v2780
    %v2782 = vpop.f32.mrf.mxu0
    %v2783 = vadd.f32 0.0, %v2782
    %2784 = vmatmul.bf16.gmra.mxu0 %v189
    %v2785 = vpop.f32.mrf.mxu0
    %v2786 = vadd.f32 0.0, %v2785
    %v2787 = vpop.f32.mrf.mxu0
    %v2788 = vadd.f32 0.0, %v2787
    %2789 = vdwg.mxu0
    %v2790 = vxor.u32 %v2558, 2147483648
    %v2791 = vxor.u32 %v2560, 2147483648
    %v2792 = vxor.u32 %v2563, 2147483648
    %v2793 = vxor.u32 %v2565, 2147483648
    %v2794 = vxor.u32 %v2568, 2147483648
    %v2795 = vxor.u32 %v2570, 2147483648
    %v2796 = vxor.u32 %v2573, 2147483648
    %v2797 = vxor.u32 %v2575, 2147483648
    %v2798 = vxor.u32 %v2578, 2147483648
    %v2799 = vxor.u32 %v2580, 2147483648
    %v2800 = vxor.u32 %v2583, 2147483648
    %v2801 = vxor.u32 %v2585, 2147483648
    %v2802 = vxor.u32 %v2588, 2147483648
    %v2803 = vxor.u32 %v2590, 2147483648
    %v2804 = vxor.u32 %v2593, 2147483648
    %v2805 = vxor.u32 %v2595, 2147483648
    %v2806 = vxor.u32 %v2598, 2147483648
    %v2807 = vxor.u32 %v2600, 2147483648
    %v2808 = vxor.u32 %v2603, 2147483648
    %v2809 = vxor.u32 %v2605, 2147483648
    %v2810 = vxor.u32 %v2608, 2147483648
    %v2811 = vxor.u32 %v2610, 2147483648
    %v2812 = vxor.u32 %v2613, 2147483648
    %v2813 = vxor.u32 %v2615, 2147483648
    %v2814 = vxor.u32 %v2618, 2147483648
    %v2815 = vxor.u32 %v2620, 2147483648
    %v2816 = vxor.u32 %v2623, 2147483648
    %v2817 = vxor.u32 %v2625, 2147483648
    %v2818 = vxor.u32 %v2628, 2147483648
    %v2819 = vxor.u32 %v2630, 2147483648
    %v2820 = vxor.u32 %v2633, 2147483648
    %v2821 = vxor.u32 %v2635, 2147483648
    %v2822 = vmul.f32 %v2790, 1.442695
    %v2823 = vpow.pop %v2822
    %v2824 = vmul.f32 %v2791, 1.442695
    %v2825 = vpow.pop %v2824
    %v2826 = vmul.f32 %v2792, 1.442695
    %v2827 = vpow.pop %v2826
    %v2828 = vmul.f32 %v2793, 1.442695
    %v2829 = vpow.pop %v2828
    %v2830 = vmul.f32 %v2794, 1.442695
    %v2831 = vpow.pop %v2830
    %v2832 = vmul.f32 %v2795, 1.442695
    %v2833 = vpow.pop %v2832
    %v2834 = vmul.f32 %v2796, 1.442695
    %v2835 = vpow.pop %v2834
    %v2836 = vmul.f32 %v2797, 1.442695
    %v2837 = vpow.pop %v2836
    %v2838 = vmul.f32 %v2798, 1.442695
    %v2839 = vpow.pop %v2838
    %v2840 = vmul.f32 %v2799, 1.442695
    %v2841 = vpow.pop %v2840
    %v2842 = vmul.f32 %v2800, 1.442695
    %v2843 = vpow.pop %v2842
    %v2844 = vmul.f32 %v2801, 1.442695
    %v2845 = vpow.pop %v2844
    %v2846 = vmul.f32 %v2802, 1.442695
    %v2847 = vpow.pop %v2846
    %v2848 = vmul.f32 %v2803, 1.442695
    %v2849 = vpow.pop %v2848
    %v2850 = vmul.f32 %v2804, 1.442695
    %v2851 = vpow.pop %v2850
    %v2852 = vmul.f32 %v2805, 1.442695
    %v2853 = vpow.pop %v2852
    %v2854 = vmul.f32 %v2806, 1.442695
    %v2855 = vpow.pop %v2854
    %v2856 = vmul.f32 %v2807, 1.442695
    %v2857 = vpow.pop %v2856
    %v2858 = vmul.f32 %v2808, 1.442695
    %v2859 = vpow.pop %v2858
    %v2860 = vmul.f32 %v2809, 1.442695
    %v2861 = vpow.pop %v2860
    %v2862 = vmul.f32 %v2810, 1.442695
    %v2863 = vpow.pop %v2862
    %v2864 = vmul.f32 %v2811, 1.442695
    %v2865 = vpow.pop %v2864
    %v2866 = vmul.f32 %v2812, 1.442695
    %v2867 = vpow.pop %v2866
    %v2868 = vmul.f32 %v2813, 1.442695
    %v2869 = vpow.pop %v2868
    %v2870 = vmul.f32 %v2814, 1.442695
    %v2871 = vpow.pop %v2870
    %v2872 = vmul.f32 %v2815, 1.442695
    %v2873 = vpow.pop %v2872
    %v2874 = vmul.f32 %v2816, 1.442695
    %v2875 = vpow.pop %v2874
    %v2876 = vmul.f32 %v2817, 1.442695
    %v2877 = vpow.pop %v2876
    %v2878 = vmul.f32 %v2818, 1.442695
    %v2879 = vpow.pop %v2878
    %v2880 = vmul.f32 %v2819, 1.442695
    %v2881 = vpow.pop %v2880
    %v2882 = vmul.f32 %v2820, 1.442695
    %v2883 = vpow.pop %v2882
    %v2884 = vmul.f32 %v2821, 1.442695
    %v2885 = vpow.pop %v2884
    %v2886 = vadd.f32 %v2823, 1.0
    %v2887 = vadd.f32 %v2825, 1.0
    %v2888 = vadd.f32 %v2827, 1.0
    %v2889 = vadd.f32 %v2829, 1.0
    %v2890 = vadd.f32 %v2831, 1.0
    %v2891 = vadd.f32 %v2833, 1.0
    %v2892 = vadd.f32 %v2835, 1.0
    %v2893 = vadd.f32 %v2837, 1.0
    %v2894 = vadd.f32 %v2839, 1.0
    %v2895 = vadd.f32 %v2841, 1.0
    %v2896 = vadd.f32 %v2843, 1.0
    %v2897 = vadd.f32 %v2845, 1.0
    %v2898 = vadd.f32 %v2847, 1.0
    %v2899 = vadd.f32 %v2849, 1.0
    %v2900 = vadd.f32 %v2851, 1.0
    %v2901 = vadd.f32 %v2853, 1.0
    %v2902 = vadd.f32 %v2855, 1.0
    %v2903 = vadd.f32 %v2857, 1.0
    %v2904 = vadd.f32 %v2859, 1.0
    %v2905 = vadd.f32 %v2861, 1.0
    %v2906 = vadd.f32 %v2863, 1.0
    %v2907 = vadd.f32 %v2865, 1.0
    %v2908 = vadd.f32 %v2867, 1.0
    %v2909 = vadd.f32 %v2869, 1.0
    %v2910 = vadd.f32 %v2871, 1.0
    %v2911 = vadd.f32 %v2873, 1.0
    %v2912 = vadd.f32 %v2875, 1.0
    %v2913 = vadd.f32 %v2877, 1.0
    %v2914 = vadd.f32 %v2879, 1.0
    %v2915 = vadd.f32 %v2881, 1.0
    %v2916 = vadd.f32 %v2883, 1.0
    %v2917 = vadd.f32 %v2885, 1.0
    %v2918 = vrcp.pop %v2886
    %v2919 = vmul.f32 %v2886, %v2918
    %v2920 = vsub.f32 1.0, %v2919
    %v2921 = vmul.f32 %v2918, %v2920
    %v2922 = vadd.f32 %v2918, %v2921
    %vm2923 = vweird.f32 %v2886
    %vm2924 = vweird.f32 %v2918
    %vm2925 = vmor %vm2923, %vm2924
    %v2926 = vsel %vm2925, %v2918, %v2922
    %v2927 = vand.u32 2147483647, %v2886
    %vm2928 = vcmp.eq.f32.partialorder %v2927, 8.507059e+37
    %v2929 = vand.u32 %v2886, 2147483648
    %v2930 = vor.u32 1.1754944e-38, %v2929
    %v2931 = vsel %vm2928, %v2930, %v2926
    %v2932 = vmul.f32 1.0, %v2931
    %v2933 = vrcp.pop %v2887
    %v2934 = vmul.f32 %v2887, %v2933
    %v2935 = vsub.f32 1.0, %v2934
    %v2936 = vmul.f32 %v2933, %v2935
    %v2937 = vadd.f32 %v2933, %v2936
    %vm2938 = vweird.f32 %v2887
    %vm2939 = vweird.f32 %v2933
    %vm2940 = vmor %vm2938, %vm2939
    %v2941 = vsel %vm2940, %v2933, %v2937
    %v2942 = vand.u32 2147483647, %v2887
    %vm2943 = vcmp.eq.f32.partialorder %v2942, 8.507059e+37
    %v2944 = vand.u32 %v2887, 2147483648
    %v2945 = vor.u32 1.1754944e-38, %v2944
    %v2946 = vsel %vm2943, %v2945, %v2941
    %v2947 = vmul.f32 1.0, %v2946
    %v2948 = vrcp.pop %v2888
    %v2949 = vmul.f32 %v2888, %v2948
    %v2950 = vsub.f32 1.0, %v2949
    %v2951 = vmul.f32 %v2948, %v2950
    %v2952 = vadd.f32 %v2948, %v2951
    %vm2953 = vweird.f32 %v2888
    %vm2954 = vweird.f32 %v2948
    %vm2955 = vmor %vm2953, %vm2954
    %v2956 = vsel %vm2955, %v2948, %v2952
    %v2957 = vand.u32 2147483647, %v2888
    %vm2958 = vcmp.eq.f32.partialorder %v2957, 8.507059e+37
    %v2959 = vand.u32 %v2888, 2147483648
    %v2960 = vor.u32 1.1754944e-38, %v2959
    %v2961 = vsel %vm2958, %v2960, %v2956
    %v2962 = vmul.f32 1.0, %v2961
    %v2963 = vrcp.pop %v2889
    %v2964 = vmul.f32 %v2889, %v2963
    %v2965 = vsub.f32 1.0, %v2964
    %v2966 = vmul.f32 %v2963, %v2965
    %v2967 = vadd.f32 %v2963, %v2966
    %vm2968 = vweird.f32 %v2889
    %vm2969 = vweird.f32 %v2963
    %vm2970 = vmor %vm2968, %vm2969
    %v2971 = vsel %vm2970, %v2963, %v2967
    %v2972 = vand.u32 2147483647, %v2889
    %vm2973 = vcmp.eq.f32.partialorder %v2972, 8.507059e+37
    %v2974 = vand.u32 %v2889, 2147483648
    %v2975 = vor.u32 1.1754944e-38, %v2974
    %v2976 = vsel %vm2973, %v2975, %v2971
    %v2977 = vmul.f32 1.0, %v2976
    %v2978 = vrcp.pop %v2890
    %v2979 = vmul.f32 %v2890, %v2978
    %v2980 = vsub.f32 1.0, %v2979
    %v2981 = vmul.f32 %v2978, %v2980
    %v2982 = vadd.f32 %v2978, %v2981
    %vm2983 = vweird.f32 %v2890
    %vm2984 = vweird.f32 %v2978
    %vm2985 = vmor %vm2983, %vm2984
    %v2986 = vsel %vm2985, %v2978, %v2982
    %v2987 = vand.u32 2147483647, %v2890
    %vm2988 = vcmp.eq.f32.partialorder %v2987, 8.507059e+37
    %v2989 = vand.u32 %v2890, 2147483648
    %v2990 = vor.u32 1.1754944e-38, %v2989
    %v2991 = vsel %vm2988, %v2990, %v2986
    %v2992 = vmul.f32 1.0, %v2991
    %v2993 = vrcp.pop %v2891
    %v2994 = vmul.f32 %v2891, %v2993
    %v2995 = vsub.f32 1.0, %v2994
    %v2996 = vmul.f32 %v2993, %v2995
    %v2997 = vadd.f32 %v2993, %v2996
    %vm2998 = vweird.f32 %v2891
    %vm2999 = vweird.f32 %v2993
    %vm3000 = vmor %vm2998, %vm2999
    %v3001 = vsel %vm3000, %v2993, %v2997
    %v3002 = vand.u32 2147483647, %v2891
    %vm3003 = vcmp.eq.f32.partialorder %v3002, 8.507059e+37
    %v3004 = vand.u32 %v2891, 2147483648
    %v3005 = vor.u32 1.1754944e-38, %v3004
    %v3006 = vsel %vm3003, %v3005, %v3001
    %v3007 = vmul.f32 1.0, %v3006
    %v3008 = vrcp.pop %v2892
    %v3009 = vmul.f32 %v2892, %v3008
    %v3010 = vsub.f32 1.0, %v3009
    %v3011 = vmul.f32 %v3008, %v3010
    %v3012 = vadd.f32 %v3008, %v3011
    %vm3013 = vweird.f32 %v2892
    %vm3014 = vweird.f32 %v3008
    %vm3015 = vmor %vm3013, %vm3014
    %v3016 = vsel %vm3015, %v3008, %v3012
    %v3017 = vand.u32 2147483647, %v2892
    %vm3018 = vcmp.eq.f32.partialorder %v3017, 8.507059e+37
    %v3019 = vand.u32 %v2892, 2147483648
    %v3020 = vor.u32 1.1754944e-38, %v3019
    %v3021 = vsel %vm3018, %v3020, %v3016
    %v3022 = vmul.f32 1.0, %v3021
    %v3023 = vrcp.pop %v2893
    %v3024 = vmul.f32 %v2893, %v3023
    %v3025 = vsub.f32 1.0, %v3024
    %v3026 = vmul.f32 %v3023, %v3025
    %v3027 = vadd.f32 %v3023, %v3026
    %vm3028 = vweird.f32 %v2893
    %vm3029 = vweird.f32 %v3023
    %vm3030 = vmor %vm3028, %vm3029
    %v3031 = vsel %vm3030, %v3023, %v3027
    %v3032 = vand.u32 2147483647, %v2893
    %vm3033 = vcmp.eq.f32.partialorder %v3032, 8.507059e+37
    %v3034 = vand.u32 %v2893, 2147483648
    %v3035 = vor.u32 1.1754944e-38, %v3034
    %v3036 = vsel %vm3033, %v3035, %v3031
    %v3037 = vmul.f32 1.0, %v3036
    %v3038 = vrcp.pop %v2894
    %v3039 = vmul.f32 %v2894, %v3038
    %v3040 = vsub.f32 1.0, %v3039
    %v3041 = vmul.f32 %v3038, %v3040
    %v3042 = vadd.f32 %v3038, %v3041
    %vm3043 = vweird.f32 %v2894
    %vm3044 = vweird.f32 %v3038
    %vm3045 = vmor %vm3043, %vm3044
    %v3046 = vsel %vm3045, %v3038, %v3042
    %v3047 = vand.u32 2147483647, %v2894
    %vm3048 = vcmp.eq.f32.partialorder %v3047, 8.507059e+37
    %v3049 = vand.u32 %v2894, 2147483648
    %v3050 = vor.u32 1.1754944e-38, %v3049
    %v3051 = vsel %vm3048, %v3050, %v3046
    %v3052 = vmul.f32 1.0, %v3051
    %v3053 = vrcp.pop %v2895
    %v3054 = vmul.f32 %v2895, %v3053
    %v3055 = vsub.f32 1.0, %v3054
    %v3056 = vmul.f32 %v3053, %v3055
    %v3057 = vadd.f32 %v3053, %v3056
    %vm3058 = vweird.f32 %v2895
    %vm3059 = vweird.f32 %v3053
    %vm3060 = vmor %vm3058, %vm3059
    %v3061 = vsel %vm3060, %v3053, %v3057
    %v3062 = vand.u32 2147483647, %v2895
    %vm3063 = vcmp.eq.f32.partialorder %v3062, 8.507059e+37
    %v3064 = vand.u32 %v2895, 2147483648
    %v3065 = vor.u32 1.1754944e-38, %v3064
    %v3066 = vsel %vm3063, %v3065, %v3061
    %v3067 = vmul.f32 1.0, %v3066
    %v3068 = vrcp.pop %v2896
    %v3069 = vmul.f32 %v2896, %v3068
    %v3070 = vsub.f32 1.0, %v3069
    %v3071 = vmul.f32 %v3068, %v3070
    %v3072 = vadd.f32 %v3068, %v3071
    %vm3073 = vweird.f32 %v2896
    %vm3074 = vweird.f32 %v3068
    %vm3075 = vmor %vm3073, %vm3074
    %v3076 = vsel %vm3075, %v3068, %v3072
    %v3077 = vand.u32 2147483647, %v2896
    %vm3078 = vcmp.eq.f32.partialorder %v3077, 8.507059e+37
    %v3079 = vand.u32 %v2896, 2147483648
    %v3080 = vor.u32 1.1754944e-38, %v3079
    %v3081 = vsel %vm3078, %v3080, %v3076
    %v3082 = vmul.f32 1.0, %v3081
    %v3083 = vrcp.pop %v2897
    %v3084 = vmul.f32 %v2897, %v3083
    %v3085 = vsub.f32 1.0, %v3084
    %v3086 = vmul.f32 %v3083, %v3085
    %v3087 = vadd.f32 %v3083, %v3086
    %vm3088 = vweird.f32 %v2897
    %vm3089 = vweird.f32 %v3083
    %vm3090 = vmor %vm3088, %vm3089
    %v3091 = vsel %vm3090, %v3083, %v3087
    %v3092 = vand.u32 2147483647, %v2897
    %vm3093 = vcmp.eq.f32.partialorder %v3092, 8.507059e+37
    %v3094 = vand.u32 %v2897, 2147483648
    %v3095 = vor.u32 1.1754944e-38, %v3094
    %v3096 = vsel %vm3093, %v3095, %v3091
    %v3097 = vmul.f32 1.0, %v3096
    %v3098 = vrcp.pop %v2898
    %v3099 = vmul.f32 %v2898, %v3098
    %v3100 = vsub.f32 1.0, %v3099
    %v3101 = vmul.f32 %v3098, %v3100
    %v3102 = vadd.f32 %v3098, %v3101
    %vm3103 = vweird.f32 %v2898
    %vm3104 = vweird.f32 %v3098
    %vm3105 = vmor %vm3103, %vm3104
    %v3106 = vsel %vm3105, %v3098, %v3102
    %v3107 = vand.u32 2147483647, %v2898
    %vm3108 = vcmp.eq.f32.partialorder %v3107, 8.507059e+37
    %v3109 = vand.u32 %v2898, 2147483648
    %v3110 = vor.u32 1.1754944e-38, %v3109
    %v3111 = vsel %vm3108, %v3110, %v3106
    %v3112 = vmul.f32 1.0, %v3111
    %v3113 = vrcp.pop %v2899
    %v3114 = vmul.f32 %v2899, %v3113
    %v3115 = vsub.f32 1.0, %v3114
    %v3116 = vmul.f32 %v3113, %v3115
    %v3117 = vadd.f32 %v3113, %v3116
    %vm3118 = vweird.f32 %v2899
    %vm3119 = vweird.f32 %v3113
    %vm3120 = vmor %vm3118, %vm3119
    %v3121 = vsel %vm3120, %v3113, %v3117
    %v3122 = vand.u32 2147483647, %v2899
    %vm3123 = vcmp.eq.f32.partialorder %v3122, 8.507059e+37
    %v3124 = vand.u32 %v2899, 2147483648
    %v3125 = vor.u32 1.1754944e-38, %v3124
    %v3126 = vsel %vm3123, %v3125, %v3121
    %v3127 = vmul.f32 1.0, %v3126
    %v3128 = vrcp.pop %v2900
    %v3129 = vmul.f32 %v2900, %v3128
    %v3130 = vsub.f32 1.0, %v3129
    %v3131 = vmul.f32 %v3128, %v3130
    %v3132 = vadd.f32 %v3128, %v3131
    %vm3133 = vweird.f32 %v2900
    %vm3134 = vweird.f32 %v3128
    %vm3135 = vmor %vm3133, %vm3134
    %v3136 = vsel %vm3135, %v3128, %v3132
    %v3137 = vand.u32 2147483647, %v2900
    %vm3138 = vcmp.eq.f32.partialorder %v3137, 8.507059e+37
    %v3139 = vand.u32 %v2900, 2147483648
    %v3140 = vor.u32 1.1754944e-38, %v3139
    %v3141 = vsel %vm3138, %v3140, %v3136
    %v3142 = vmul.f32 1.0, %v3141
    %v3143 = vrcp.pop %v2901
    %v3144 = vmul.f32 %v2901, %v3143
    %v3145 = vsub.f32 1.0, %v3144
    %v3146 = vmul.f32 %v3143, %v3145
    %v3147 = vadd.f32 %v3143, %v3146
    %vm3148 = vweird.f32 %v2901
    %vm3149 = vweird.f32 %v3143
    %vm3150 = vmor %vm3148, %vm3149
    %v3151 = vsel %vm3150, %v3143, %v3147
    %v3152 = vand.u32 2147483647, %v2901
    %vm3153 = vcmp.eq.f32.partialorder %v3152, 8.507059e+37
    %v3154 = vand.u32 %v2901, 2147483648
    %v3155 = vor.u32 1.1754944e-38, %v3154
    %v3156 = vsel %vm3153, %v3155, %v3151
    %v3157 = vmul.f32 1.0, %v3156
    %v3158 = vrcp.pop %v2902
    %v3159 = vmul.f32 %v2902, %v3158
    %v3160 = vsub.f32 1.0, %v3159
    %v3161 = vmul.f32 %v3158, %v3160
    %v3162 = vadd.f32 %v3158, %v3161
    %vm3163 = vweird.f32 %v2902
    %vm3164 = vweird.f32 %v3158
    %vm3165 = vmor %vm3163, %vm3164
    %v3166 = vsel %vm3165, %v3158, %v3162
    %v3167 = vand.u32 2147483647, %v2902
    %vm3168 = vcmp.eq.f32.partialorder %v3167, 8.507059e+37
    %v3169 = vand.u32 %v2902, 2147483648
    %v3170 = vor.u32 1.1754944e-38, %v3169
    %v3171 = vsel %vm3168, %v3170, %v3166
    %v3172 = vmul.f32 1.0, %v3171
    %v3173 = vrcp.pop %v2903
    %v3174 = vmul.f32 %v2903, %v3173
    %v3175 = vsub.f32 1.0, %v3174
    %v3176 = vmul.f32 %v3173, %v3175
    %v3177 = vadd.f32 %v3173, %v3176
    %vm3178 = vweird.f32 %v2903
    %vm3179 = vweird.f32 %v3173
    %vm3180 = vmor %vm3178, %vm3179
    %v3181 = vsel %vm3180, %v3173, %v3177
    %v3182 = vand.u32 2147483647, %v2903
    %vm3183 = vcmp.eq.f32.partialorder %v3182, 8.507059e+37
    %v3184 = vand.u32 %v2903, 2147483648
    %v3185 = vor.u32 1.1754944e-38, %v3184
    %v3186 = vsel %vm3183, %v3185, %v3181
    %v3187 = vmul.f32 1.0, %v3186
    %v3188 = vrcp.pop %v2904
    %v3189 = vmul.f32 %v2904, %v3188
    %v3190 = vsub.f32 1.0, %v3189
    %v3191 = vmul.f32 %v3188, %v3190
    %v3192 = vadd.f32 %v3188, %v3191
    %vm3193 = vweird.f32 %v2904
    %vm3194 = vweird.f32 %v3188
    %vm3195 = vmor %vm3193, %vm3194
    %v3196 = vsel %vm3195, %v3188, %v3192
    %v3197 = vand.u32 2147483647, %v2904
    %vm3198 = vcmp.eq.f32.partialorder %v3197, 8.507059e+37
    %v3199 = vand.u32 %v2904, 2147483648
    %v3200 = vor.u32 1.1754944e-38, %v3199
    %v3201 = vsel %vm3198, %v3200, %v3196
    %v3202 = vmul.f32 1.0, %v3201
    %v3203 = vrcp.pop %v2905
    %v3204 = vmul.f32 %v2905, %v3203
    %v3205 = vsub.f32 1.0, %v3204
    %v3206 = vmul.f32 %v3203, %v3205
    %v3207 = vadd.f32 %v3203, %v3206
    %vm3208 = vweird.f32 %v2905
    %vm3209 = vweird.f32 %v3203
    %vm3210 = vmor %vm3208, %vm3209
    %v3211 = vsel %vm3210, %v3203, %v3207
    %v3212 = vand.u32 2147483647, %v2905
    %vm3213 = vcmp.eq.f32.partialorder %v3212, 8.507059e+37
    %v3214 = vand.u32 %v2905, 2147483648
    %v3215 = vor.u32 1.1754944e-38, %v3214
    %v3216 = vsel %vm3213, %v3215, %v3211
    %v3217 = vmul.f32 1.0, %v3216
    %v3218 = vrcp.pop %v2906
    %v3219 = vmul.f32 %v2906, %v3218
    %v3220 = vsub.f32 1.0, %v3219
    %v3221 = vmul.f32 %v3218, %v3220
    %v3222 = vadd.f32 %v3218, %v3221
    %vm3223 = vweird.f32 %v2906
    %vm3224 = vweird.f32 %v3218
    %vm3225 = vmor %vm3223, %vm3224
    %v3226 = vsel %vm3225, %v3218, %v3222
    %v3227 = vand.u32 2147483647, %v2906
    %vm3228 = vcmp.eq.f32.partialorder %v3227, 8.507059e+37
    %v3229 = vand.u32 %v2906, 2147483648
    %v3230 = vor.u32 1.1754944e-38, %v3229
    %v3231 = vsel %vm3228, %v3230, %v3226
    %v3232 = vmul.f32 1.0, %v3231
    %v3233 = vrcp.pop %v2907
    %v3234 = vmul.f32 %v2907, %v3233
    %v3235 = vsub.f32 1.0, %v3234
    %v3236 = vmul.f32 %v3233, %v3235
    %v3237 = vadd.f32 %v3233, %v3236
    %vm3238 = vweird.f32 %v2907
    %vm3239 = vweird.f32 %v3233
    %vm3240 = vmor %vm3238, %vm3239
    %v3241 = vsel %vm3240, %v3233, %v3237
    %v3242 = vand.u32 2147483647, %v2907
    %vm3243 = vcmp.eq.f32.partialorder %v3242, 8.507059e+37
    %v3244 = vand.u32 %v2907, 2147483648
    %v3245 = vor.u32 1.1754944e-38, %v3244
    %v3246 = vsel %vm3243, %v3245, %v3241
    %v3247 = vmul.f32 1.0, %v3246
    %v3248 = vrcp.pop %v2908
    %v3249 = vmul.f32 %v2908, %v3248
    %v3250 = vsub.f32 1.0, %v3249
    %v3251 = vmul.f32 %v3248, %v3250
    %v3252 = vadd.f32 %v3248, %v3251
    %vm3253 = vweird.f32 %v2908
    %vm3254 = vweird.f32 %v3248
    %vm3255 = vmor %vm3253, %vm3254
    %v3256 = vsel %vm3255, %v3248, %v3252
    %v3257 = vand.u32 2147483647, %v2908
    %vm3258 = vcmp.eq.f32.partialorder %v3257, 8.507059e+37
    %v3259 = vand.u32 %v2908, 2147483648
    %v3260 = vor.u32 1.1754944e-38, %v3259
    %v3261 = vsel %vm3258, %v3260, %v3256
    %v3262 = vmul.f32 1.0, %v3261
    %v3263 = vrcp.pop %v2909
    %v3264 = vmul.f32 %v2909, %v3263
    %v3265 = vsub.f32 1.0, %v3264
    %v3266 = vmul.f32 %v3263, %v3265
    %v3267 = vadd.f32 %v3263, %v3266
    %vm3268 = vweird.f32 %v2909
    %vm3269 = vweird.f32 %v3263
    %vm3270 = vmor %vm3268, %vm3269
    %v3271 = vsel %vm3270, %v3263, %v3267
    %v3272 = vand.u32 2147483647, %v2909
    %vm3273 = vcmp.eq.f32.partialorder %v3272, 8.507059e+37
    %v3274 = vand.u32 %v2909, 2147483648
    %v3275 = vor.u32 1.1754944e-38, %v3274
    %v3276 = vsel %vm3273, %v3275, %v3271
    %v3277 = vmul.f32 1.0, %v3276
    %v3278 = vrcp.pop %v2910
    %v3279 = vmul.f32 %v2910, %v3278
    %v3280 = vsub.f32 1.0, %v3279
    %v3281 = vmul.f32 %v3278, %v3280
    %v3282 = vadd.f32 %v3278, %v3281
    %vm3283 = vweird.f32 %v2910
    %vm3284 = vweird.f32 %v3278
    %vm3285 = vmor %vm3283, %vm3284
    %v3286 = vsel %vm3285, %v3278, %v3282
    %v3287 = vand.u32 2147483647, %v2910
    %vm3288 = vcmp.eq.f32.partialorder %v3287, 8.507059e+37
    %v3289 = vand.u32 %v2910, 2147483648
    %v3290 = vor.u32 1.1754944e-38, %v3289
    %v3291 = vsel %vm3288, %v3290, %v3286
    %v3292 = vmul.f32 1.0, %v3291
    %v3293 = vrcp.pop %v2911
    %v3294 = vmul.f32 %v2911, %v3293
    %v3295 = vsub.f32 1.0, %v3294
    %v3296 = vmul.f32 %v3293, %v3295
    %v3297 = vadd.f32 %v3293, %v3296
    %vm3298 = vweird.f32 %v2911
    %vm3299 = vweird.f32 %v3293
    %vm3300 = vmor %vm3298, %vm3299
    %v3301 = vsel %vm3300, %v3293, %v3297
    %v3302 = vand.u32 2147483647, %v2911
    %vm3303 = vcmp.eq.f32.partialorder %v3302, 8.507059e+37
    %v3304 = vand.u32 %v2911, 2147483648
    %v3305 = vor.u32 1.1754944e-38, %v3304
    %v3306 = vsel %vm3303, %v3305, %v3301
    %v3307 = vmul.f32 1.0, %v3306
    %v3308 = vrcp.pop %v2912
    %v3309 = vmul.f32 %v2912, %v3308
    %v3310 = vsub.f32 1.0, %v3309
    %v3311 = vmul.f32 %v3308, %v3310
    %v3312 = vadd.f32 %v3308, %v3311
    %vm3313 = vweird.f32 %v2912
    %vm3314 = vweird.f32 %v3308
    %vm3315 = vmor %vm3313, %vm3314
    %v3316 = vsel %vm3315, %v3308, %v3312
    %v3317 = vand.u32 2147483647, %v2912
    %vm3318 = vcmp.eq.f32.partialorder %v3317, 8.507059e+37
    %v3319 = vand.u32 %v2912, 2147483648
    %v3320 = vor.u32 1.1754944e-38, %v3319
    %v3321 = vsel %vm3318, %v3320, %v3316
    %v3322 = vmul.f32 1.0, %v3321
    %v3323 = vrcp.pop %v2913
    %v3324 = vmul.f32 %v2913, %v3323
    %v3325 = vsub.f32 1.0, %v3324
    %v3326 = vmul.f32 %v3323, %v3325
    %v3327 = vadd.f32 %v3323, %v3326
    %vm3328 = vweird.f32 %v2913
    %vm3329 = vweird.f32 %v3323
    %vm3330 = vmor %vm3328, %vm3329
    %v3331 = vsel %vm3330, %v3323, %v3327
    %v3332 = vand.u32 2147483647, %v2913
    %vm3333 = vcmp.eq.f32.partialorder %v3332, 8.507059e+37
    %v3334 = vand.u32 %v2913, 2147483648
    %v3335 = vor.u32 1.1754944e-38, %v3334
    %v3336 = vsel %vm3333, %v3335, %v3331
    %v3337 = vmul.f32 1.0, %v3336
    %v3338 = vrcp.pop %v2914
    %v3339 = vmul.f32 %v2914, %v3338
    %v3340 = vsub.f32 1.0, %v3339
    %v3341 = vmul.f32 %v3338, %v3340
    %v3342 = vadd.f32 %v3338, %v3341
    %vm3343 = vweird.f32 %v2914
    %vm3344 = vweird.f32 %v3338
    %vm3345 = vmor %vm3343, %vm3344
    %v3346 = vsel %vm3345, %v3338, %v3342
    %v3347 = vand.u32 2147483647, %v2914
    %vm3348 = vcmp.eq.f32.partialorder %v3347, 8.507059e+37
    %v3349 = vand.u32 %v2914, 2147483648
    %v3350 = vor.u32 1.1754944e-38, %v3349
    %v3351 = vsel %vm3348, %v3350, %v3346
    %v3352 = vmul.f32 1.0, %v3351
    %v3353 = vrcp.pop %v2915
    %v3354 = vmul.f32 %v2915, %v3353
    %v3355 = vsub.f32 1.0, %v3354
    %v3356 = vmul.f32 %v3353, %v3355
    %v3357 = vadd.f32 %v3353, %v3356
    %vm3358 = vweird.f32 %v2915
    %vm3359 = vweird.f32 %v3353
    %vm3360 = vmor %vm3358, %vm3359
    %v3361 = vsel %vm3360, %v3353, %v3357
    %v3362 = vand.u32 2147483647, %v2915
    %vm3363 = vcmp.eq.f32.partialorder %v3362, 8.507059e+37
    %v3364 = vand.u32 %v2915, 2147483648
    %v3365 = vor.u32 1.1754944e-38, %v3364
    %v3366 = vsel %vm3363, %v3365, %v3361
    %v3367 = vmul.f32 1.0, %v3366
    %v3368 = vrcp.pop %v2916
    %v3369 = vmul.f32 %v2916, %v3368
    %v3370 = vsub.f32 1.0, %v3369
    %v3371 = vmul.f32 %v3368, %v3370
    %v3372 = vadd.f32 %v3368, %v3371
    %vm3373 = vweird.f32 %v2916
    %vm3374 = vweird.f32 %v3368
    %vm3375 = vmor %vm3373, %vm3374
    %v3376 = vsel %vm3375, %v3368, %v3372
    %v3377 = vand.u32 2147483647, %v2916
    %vm3378 = vcmp.eq.f32.partialorder %v3377, 8.507059e+37
    %v3379 = vand.u32 %v2916, 2147483648
    %v3380 = vor.u32 1.1754944e-38, %v3379
    %v3381 = vsel %vm3378, %v3380, %v3376
    %v3382 = vmul.f32 1.0, %v3381
    %v3383 = vrcp.pop %v2917
    %v3384 = vmul.f32 %v2917, %v3383
    %v3385 = vsub.f32 1.0, %v3384
    %v3386 = vmul.f32 %v3383, %v3385
    %v3387 = vadd.f32 %v3383, %v3386
    %vm3388 = vweird.f32 %v2917
    %vm3389 = vweird.f32 %v3383
    %vm3390 = vmor %vm3388, %vm3389
    %v3391 = vsel %vm3390, %v3383, %v3387
    %v3392 = vand.u32 2147483647, %v2917
    %vm3393 = vcmp.eq.f32.partialorder %v3392, 8.507059e+37
    %v3394 = vand.u32 %v2917, 2147483648
    %v3395 = vor.u32 1.1754944e-38, %v3394
    %v3396 = vsel %vm3393, %v3395, %v3391
    %v3397 = vmul.f32 1.0, %v3396
    %v3398 = vmul.f32 %v2558, %v2932
    %v3399 = vmul.f32 %v2560, %v2947
    %v3400 = vmul.f32 %v2563, %v2962
    %v3401 = vmul.f32 %v2565, %v2977
    %v3402 = vmul.f32 %v2568, %v2992
    %v3403 = vmul.f32 %v2570, %v3007
    %v3404 = vmul.f32 %v2573, %v3022
    %v3405 = vmul.f32 %v2575, %v3037
    %v3406 = vmul.f32 %v2578, %v3052
    %v3407 = vmul.f32 %v2580, %v3067
    %v3408 = vmul.f32 %v2583, %v3082
    %v3409 = vmul.f32 %v2585, %v3097
    %v3410 = vmul.f32 %v2588, %v3112
    %v3411 = vmul.f32 %v2590, %v3127
    %v3412 = vmul.f32 %v2593, %v3142
    %v3413 = vmul.f32 %v2595, %v3157
    %v3414 = vmul.f32 %v2598, %v3172
    %v3415 = vmul.f32 %v2600, %v3187
    %v3416 = vmul.f32 %v2603, %v3202
    %v3417 = vmul.f32 %v2605, %v3217
    %v3418 = vmul.f32 %v2608, %v3232
    %v3419 = vmul.f32 %v2610, %v3247
    %v3420 = vmul.f32 %v2613, %v3262
    %v3421 = vmul.f32 %v2615, %v3277
    %v3422 = vmul.f32 %v2618, %v3292
    %v3423 = vmul.f32 %v2620, %v3307
    %v3424 = vmul.f32 %v2623, %v3322
    %v3425 = vmul.f32 %v2625, %v3337
    %v3426 = vmul.f32 %v2628, %v3352
    %v3427 = vmul.f32 %v2630, %v3367
    %v3428 = vmul.f32 %v2633, %v3382
    %v3429 = vmul.f32 %v2635, %v3397
    %v3430 = vmul.f32 %v3398, %v2711
    %v3431 = vmul.f32 %v3399, %v2713
    %v3432 = vmul.f32 %v3400, %v2716
    %v3433 = vmul.f32 %v3401, %v2718
    %v3434 = vmul.f32 %v3402, %v2721
    %v3435 = vmul.f32 %v3403, %v2723
    %v3436 = vmul.f32 %v3404, %v2726
    %v3437 = vmul.f32 %v3405, %v2728
    %v3438 = vmul.f32 %v3406, %v2731
    %v3439 = vmul.f32 %v3407, %v2733
    %v3440 = vmul.f32 %v3408, %v2736
    %v3441 = vmul.f32 %v3409, %v2738
    %v3442 = vmul.f32 %v3410, %v2741
    %v3443 = vmul.f32 %v3411, %v2743
    %v3444 = vmul.f32 %v3412, %v2746
    %v3445 = vmul.f32 %v3413, %v2748
    %v3446 = vmul.f32 %v3414, %v2751
    %v3447 = vmul.f32 %v3415, %v2753
    %v3448 = vmul.f32 %v3416, %v2756
    %v3449 = vmul.f32 %v3417, %v2758
    %v3450 = vmul.f32 %v3418, %v2761
    %v3451 = vmul.f32 %v3419, %v2763
    %v3452 = vmul.f32 %v3420, %v2766
    %v3453 = vmul.f32 %v3421, %v2768
    %v3454 = vmul.f32 %v3422, %v2771
    %v3455 = vmul.f32 %v3423, %v2773
    %v3456 = vmul.f32 %v3424, %v2776
    %v3457 = vmul.f32 %v3425, %v2778
    %v3458 = vmul.f32 %v3426, %v2781
    %v3459 = vmul.f32 %v3427, %v2783
    %v3460 = vmul.f32 %v3428, %v2786
    %v3461 = vmul.f32 %v3429, %v2788
    %v3462 = vpack.c.bf16 %v3431, %v3430
    %v3463 = vpack.c.bf16 %v3433, %v3432
    %v3464 = vpack.c.bf16 %v3435, %v3434
    %v3465 = vpack.c.bf16 %v3437, %v3436
    %v3466 = vpack.c.bf16 %v3439, %v3438
    %v3467 = vpack.c.bf16 %v3441, %v3440
    %v3468 = vpack.c.bf16 %v3443, %v3442
    %v3469 = vpack.c.bf16 %v3445, %v3444
    %v3470 = vpack.c.bf16 %v3447, %v3446
    %v3471 = vpack.c.bf16 %v3449, %v3448
    %v3472 = vpack.c.bf16 %v3451, %v3450
    %v3473 = vpack.c.bf16 %v3453, %v3452
    %v3474 = vpack.c.bf16 %v3455, %v3454
    %v3475 = vpack.c.bf16 %v3457, %v3456
    %v3476 = vpack.c.bf16 %v3459, %v3458
    %v3477 = vpack.c.bf16 %v3461, %v3460
    %v3478 = vld [vmem:[#allocation7 + $0x80] sm:$0xf]
    %v3479 = vld [vmem:[#allocation7 + $0x84] sm:$0xf]
    %v3480 = vld [vmem:[#allocation7 + $0x88] sm:$0xf]
    %v3481 = vld [vmem:[#allocation7 + $0x8c] sm:$0xf]
    %v3482 = vld [vmem:[#allocation7 + $0x90] sm:$0xf]
    %v3483 = vld [vmem:[#allocation7 + $0x94] sm:$0xf]
    %v3484 = vld [vmem:[#allocation7 + $0x98] sm:$0xf]
    %v3485 = vld [vmem:[#allocation7 + $0x9c] sm:$0xf]
    %v3486 = vld [vmem:[#allocation7 + $0xa0] sm:$0xf]
    %v3487 = vld [vmem:[#allocation7 + $0xa4] sm:$0xf]
    %v3488 = vld [vmem:[#allocation7 + $0xa8] sm:$0xf]
    %v3489 = vld [vmem:[#allocation7 + $0xac] sm:$0xf]
    %v3490 = vld [vmem:[#allocation7 + $0xb0] sm:$0xf]
    %v3491 = vld [vmem:[#allocation7 + $0xb4] sm:$0xf]
    %v3492 = vld [vmem:[#allocation7 + $0xb8] sm:$0xf]
    %v3493 = vld [vmem:[#allocation7 + $0xbc] sm:$0xf]
    %v3510 = vunpack.c.l.b16 %v3478
    %v3511 = vunpack.c.l.b16 %v3479
    %v3512 = vunpack.c.l.b16 %v3480
    %v3513 = vunpack.c.l.b16 %v3481
    %v3514 = vunpack.c.l.b16 %v3482
    %v3515 = vunpack.c.l.b16 %v3483
    %v3516 = vunpack.c.l.b16 %v3484
    %v3517 = vunpack.c.l.b16 %v3485
    %v3518 = vunpack.c.l.b16 %v3486
    %v3519 = vunpack.c.l.b16 %v3487
    %v3520 = vunpack.c.l.b16 %v3488
    %v3521 = vunpack.c.l.b16 %v3489
    %v3522 = vunpack.c.l.b16 %v3490
    %v3523 = vunpack.c.l.b16 %v3491
    %v3524 = vunpack.c.l.b16 %v3492
    %v3525 = vunpack.c.l.b16 %v3493
    %v3526 = vpack.c.b16 %v3511, %v3510
    %v3527 = vpack.c.b16 %v3513, %v3512
    %v3528 = vpack.c.b16 %v3515, %v3514
    %v3529 = vpack.c.b16 %v3517, %v3516
    %v3530 = vpack.c.b16 %v3519, %v3518
    %v3531 = vpack.c.b16 %v3521, %v3520
    %v3532 = vpack.c.b16 %v3523, %v3522
    %v3533 = vpack.c.b16 %v3525, %v3524
    %3542 = vmatpush.bf16.msra.mxu0 %v3533
    %3543 = vmatpush.bf16.msra.mxu0 %v3532
    %3544 = vmatpush.bf16.msra.mxu0 %v3531
    %3545 = vmatpush.bf16.msra.mxu0 %v3530
    %3546 = vmatpush.bf16.msra.mxu0 %v3529
    %3547 = vmatpush.bf16.msra.mxu0 %v3528
    %3548 = vmatpush.bf16.msra.mxu0 %v3527
    %3549 = vmatpush.bf16.msra.mxu0 %v3526
    %3550 = vmatmul.bf16.gmra.mxu0 %v3462
    %v3551 = vpop.f32.mrf.mxu0
    %v3552 = vadd.f32 0.0, %v3551
    %v3553 = vpop.f32.mrf.mxu0
    %v3554 = vadd.f32 0.0, %v3553
    %3555 = vmatmul.bf16.gmra.mxu0 %v3463
    %v3556 = vpop.f32.mrf.mxu0
    %v3557 = vadd.f32 0.0, %v3556
    %v3558 = vpop.f32.mrf.mxu0
    %v3559 = vadd.f32 0.0, %v3558
    %3560 = vmatmul.bf16.gmra.mxu0 %v3464
    %v3561 = vpop.f32.mrf.mxu0
    %v3562 = vadd.f32 0.0, %v3561
    %v3563 = vpop.f32.mrf.mxu0
    %v3564 = vadd.f32 0.0, %v3563
    %3565 = vmatmul.bf16.gmra.mxu0 %v3465
    %v3566 = vpop.f32.mrf.mxu0
    %v3567 = vadd.f32 0.0, %v3566
    %v3568 = vpop.f32.mrf.mxu0
    %v3569 = vadd.f32 0.0, %v3568
    %3570 = vmatmul.bf16.gmra.mxu0 %v3466
    %v3571 = vpop.f32.mrf.mxu0
    %v3572 = vadd.f32 0.0, %v3571
    %v3573 = vpop.f32.mrf.mxu0
    %v3574 = vadd.f32 0.0, %v3573
    %3575 = vmatmul.bf16.gmra.mxu0 %v3467
    %v3576 = vpop.f32.mrf.mxu0
    %v3577 = vadd.f32 0.0, %v3576
    %v3578 = vpop.f32.mrf.mxu0
    %v3579 = vadd.f32 0.0, %v3578
    %3580 = vmatmul.bf16.gmra.mxu0 %v3468
    %v3581 = vpop.f32.mrf.mxu0
    %v3582 = vadd.f32 0.0, %v3581
    %v3583 = vpop.f32.mrf.mxu0
    %v3584 = vadd.f32 0.0, %v3583
    %3585 = vmatmul.bf16.gmra.mxu0 %v3469
    %v3586 = vpop.f32.mrf.mxu0
    %v3587 = vadd.f32 0.0, %v3586
    %v3588 = vpop.f32.mrf.mxu0
    %v3589 = vadd.f32 0.0, %v3588
    %3590 = vmatmul.bf16.gmra.mxu0 %v3470
    %v3591 = vpop.f32.mrf.mxu0
    %v3592 = vadd.f32 0.0, %v3591
    %v3593 = vpop.f32.mrf.mxu0
    %v3594 = vadd.f32 0.0, %v3593
    %3595 = vmatmul.bf16.gmra.mxu0 %v3471
    %v3596 = vpop.f32.mrf.mxu0
    %v3597 = vadd.f32 0.0, %v3596
    %v3598 = vpop.f32.mrf.mxu0
    %v3599 = vadd.f32 0.0, %v3598
    %3600 = vmatmul.bf16.gmra.mxu0 %v3472
    %v3601 = vpop.f32.mrf.mxu0
    %v3602 = vadd.f32 0.0, %v3601
    %v3603 = vpop.f32.mrf.mxu0
    %v3604 = vadd.f32 0.0, %v3603
    %3605 = vmatmul.bf16.gmra.mxu0 %v3473
    %v3606 = vpop.f32.mrf.mxu0
    %v3607 = vadd.f32 0.0, %v3606
    %v3608 = vpop.f32.mrf.mxu0
    %v3609 = vadd.f32 0.0, %v3608
    %3610 = vmatmul.bf16.gmra.mxu0 %v3474
    %v3611 = vpop.f32.mrf.mxu0
    %v3612 = vadd.f32 0.0, %v3611
    %v3613 = vpop.f32.mrf.mxu0
    %v3614 = vadd.f32 0.0, %v3613
    %3615 = vmatmul.bf16.gmra.mxu0 %v3475
    %v3616 = vpop.f32.mrf.mxu0
    %v3617 = vadd.f32 0.0, %v3616
    %v3618 = vpop.f32.mrf.mxu0
    %v3619 = vadd.f32 0.0, %v3618
    %3620 = vmatmul.bf16.gmra.mxu0 %v3476
    %v3621 = vpop.f32.mrf.mxu0
    %v3622 = vadd.f32 0.0, %v3621
    %v3623 = vpop.f32.mrf.mxu0
    %v3624 = vadd.f32 0.0, %v3623
    %3625 = vmatmul.bf16.gmra.mxu0 %v3477
    %v3626 = vpop.f32.mrf.mxu0
    %v3627 = vadd.f32 0.0, %v3626
    %v3628 = vpop.f32.mrf.mxu0
    %v3629 = vadd.f32 0.0, %v3628
    %3630 = vdwg.mxu0
    %v3631 = vadd.f32 %v2405, %v3552
    %v3632 = vadd.f32 %v2407, %v3554
    %v3633 = vadd.f32 %v2410, %v3557
    %v3634 = vadd.f32 %v2412, %v3559
    %v3635 = vadd.f32 %v2415, %v3562
    %v3636 = vadd.f32 %v2417, %v3564
    %v3637 = vadd.f32 %v2420, %v3567
    %v3638 = vadd.f32 %v2422, %v3569
    %v3639 = vadd.f32 %v2425, %v3572
    %v3640 = vadd.f32 %v2427, %v3574
    %v3641 = vadd.f32 %v2430, %v3577
    %v3642 = vadd.f32 %v2432, %v3579
    %v3643 = vadd.f32 %v2435, %v3582
    %v3644 = vadd.f32 %v2437, %v3584
    %v3645 = vadd.f32 %v2440, %v3587
    %v3646 = vadd.f32 %v2442, %v3589
    %v3647 = vadd.f32 %v2445, %v3592
    %v3648 = vadd.f32 %v2447, %v3594
    %v3649 = vadd.f32 %v2450, %v3597
    %v3650 = vadd.f32 %v2452, %v3599
    %v3651 = vadd.f32 %v2455, %v3602
    %v3652 = vadd.f32 %v2457, %v3604
    %v3653 = vadd.f32 %v2460, %v3607
    %v3654 = vadd.f32 %v2462, %v3609
    %v3655 = vadd.f32 %v2465, %v3612
    %v3656 = vadd.f32 %v2467, %v3614
    %v3657 = vadd.f32 %v2470, %v3617
    %v3658 = vadd.f32 %v2472, %v3619
    %v3659 = vadd.f32 %v2475, %v3622
    %v3660 = vadd.f32 %v2477, %v3624
    %v3661 = vadd.f32 %v2480, %v3627
    %v3662 = vadd.f32 %v2482, %v3629
    %3663 = vst [vmem:[#allocation8] sm:$0xff] %v3631
    %3664 = vst [vmem:[#allocation8 + $0x8] sm:$0xff] %v3632
    %3665 = vst [vmem:[#allocation8 + $0x10] sm:$0xff] %v3633
    %3666 = vst [vmem:[#allocation8 + $0x18] sm:$0xff] %v3634
    %3667 = vst [vmem:[#allocation8 + $0x20] sm:$0xff] %v3635
    %3668 = vst [vmem:[#allocation8 + $0x28] sm:$0xff] %v3636
    %3669 = vst [vmem:[#allocation8 + $0x30] sm:$0xff] %v3637
    %3670 = vst [vmem:[#allocation8 + $0x38] sm:$0xff] %v3638
    %3671 = vst [vmem:[#allocation8 + $0x40] sm:$0xff] %v3639
    %3672 = vst [vmem:[#allocation8 + $0x48] sm:$0xff] %v3640
    %3673 = vst [vmem:[#allocation8 + $0x50] sm:$0xff] %v3641
    %3674 = vst [vmem:[#allocation8 + $0x58] sm:$0xff] %v3642
    %3675 = vst [vmem:[#allocation8 + $0x60] sm:$0xff] %v3643
    %3676 = vst [vmem:[#allocation8 + $0x68] sm:$0xff] %v3644
    %3677 = vst [vmem:[#allocation8 + $0x70] sm:$0xff] %v3645
    %3678 = vst [vmem:[#allocation8 + $0x78] sm:$0xff] %v3646
    %3679 = vst [vmem:[#allocation8 + $0x80] sm:$0xff] %v3647
    %3680 = vst [vmem:[#allocation8 + $0x88] sm:$0xff] %v3648
    %3681 = vst [vmem:[#allocation8 + $0x90] sm:$0xff] %v3649
    %3682 = vst [vmem:[#allocation8 + $0x98] sm:$0xff] %v3650
    %3683 = vst [vmem:[#allocation8 + $0xa0] sm:$0xff] %v3651
    %3684 = vst [vmem:[#allocation8 + $0xa8] sm:$0xff] %v3652
    %3685 = vst [vmem:[#allocation8 + $0xb0] sm:$0xff] %v3653
    %3686 = vst [vmem:[#allocation8 + $0xb8] sm:$0xff] %v3654
    %3687 = vst [vmem:[#allocation8 + $0xc0] sm:$0xff] %v3655
    %3688 = vst [vmem:[#allocation8 + $0xc8] sm:$0xff] %v3656
    %3689 = vst [vmem:[#allocation8 + $0xd0] sm:$0xff] %v3657
    %3690 = vst [vmem:[#allocation8 + $0xd8] sm:$0xff] %v3658
    %3691 = vst [vmem:[#allocation8 + $0xe0] sm:$0xff] %v3659
    %3692 = vst [vmem:[#allocation8 + $0xe8] sm:$0xff] %v3660
    %3693 = vst [vmem:[#allocation8 + $0xf0] sm:$0xff] %v3661
    %3694 = vst [vmem:[#allocation8 + $0xf8] sm:$0xff] %v3662
    // Predicated region
    $region26: #{tpu_custom_call.1} parent=1 // pred_check
      _
    $region27: #{tpu_custom_call.1} parent=1 // pred_check_branch
      %3696 = sbr.rel (0) target = $region29
    $region28: #{tpu_custom_call.1} parent=1 // pred_region
      %3698 = vsyncadd [#allocation4], 0
      %s3699 = sshll.u32 [#allocation8], 4
      %s3700 = int_to_ptr.vmem [resolvable:$true] %s3699
      %s3701 = sshll.u32 %s3, 4
      %s3702 = int_to_ptr.hbm [resolvable:$true] %s3701
      %3707 = dma.vmem_to_hbm [thread:$0]  %s3700, 4096, %s3702, [#allocation4], 128, 128, 8
    $region29: #{tpu_custom_call.1} parent=1 // pred_fallthru
      _
    // Predicated region
    $region30: #{tpu_custom_call.1} parent=1 // pred_check
      _
    $region31: #{tpu_custom_call.1} parent=1 // pred_check_branch
      %3709 = sbr.rel (0) target = $region33
    $region32: #{tpu_custom_call.1} parent=1 // pred_region
      %3711 = dma.done [#allocation4], 4096
    $region33: #{tpu_custom_call.1} parent=1 // pred_fallthru
      _
    %3712 = vsyncpa [#allocation3], 1
    %3713 = vsyncpa [#allocation6], 1
    %3714 = vsyncpa [#allocation4], 1

</llo_original>
